<compile_context>
chip_gen: v7x
topology: tpu7x:2x2x1
jax: 0.10.0
libtpu: 0.0.40
codegen_flags: <defaults>
</compile_context>

<pallas_src>
import functools
import math

import jax
import jax.numpy as jnp
from jax.experimental import pallas as pl
from jax.experimental.pallas import tpu as pltpu


def get_valid_num_groups(channels):
    for g in [8, 4, 2, 1]:
        if channels % g == 0:
            return g
    return 1


def _vmem_limit_bytes(needed):
    """Explicit scoped-VMEM budget: needed*1.25 + 1MiB, clamped to [32 MiB, physical]."""
    try:
        cap = int(pltpu.get_tpu_info().vmem_capacity_bytes)
    except Exception:
        cap = 64 * 1024 * 1024      # conservative fallback (v7x physical VMEM per TC)
    return int(min(max(needed * 5 // 4 + (1 << 20), 32 * 1024 * 1024), cap))


# ----------------------------------------------------------------------------
# Kernel 1: ConvTranspose2d(kernel=2, stride=2) == one matmul per row tile.
# Each input pixel emits a non-overlapping 2x2 output patch:
#   out[n,2h+ky,2w+kx,co] = sum_ci x[n,h,w,ci] * W[ci,co,ky,kx] + b[co]
# The output array is (N*H, 2, W, 2*Cup) whose row-major order equals
# (N, 2H, 2W, Cup), so the wrapper only reshapes (no HBM scatter/transpose).
# ----------------------------------------------------------------------------
def _upsample_kernel(x_ref, w_ref, b_ref, o_ref, *, W, Cup):
    # x_ref: (GB*W, Cin) f32; w_ref: (Cin, 4*Cup) bf16 (cols ordered ky,kx,co);
    # b_ref: (1, 4*Cup) f32; o_ref: (GB, 2, W, 2*Cup) bf16.
    r = jnp.dot(x_ref[...].astype(jnp.bfloat16), w_ref[...],
                preferred_element_type=jnp.float32) + b_ref[...]
    gb = o_ref.shape[0]
    for ky in range(2):
        blk = r[:, ky * 2 * Cup:(ky + 1) * 2 * Cup]            # (GB*W, 2*Cup)
        o_ref[:, ky, :, :] = blk.reshape(gb, W, 2 * Cup).astype(o_ref.dtype)


def conv_transpose_2x2(x, w, b, *, target_rows=2048):
    """x: (N,H,W,Cin) f32; w: PyTorch ConvTranspose2d layout (Cin, Cup, 2, 2); b: (Cup,).

    Returns (N, 2H, 2W, Cup) in bf16 (only consumed as a bf16 MXU operand downstream).
    """
    N, H, W, Cin = x.shape
    Cup = w.shape[1]
    # w_flat[ci, ky*2*Cup + kx*Cup + co] = w[ci, co, ky, kx]
    w_flat = jnp.transpose(w, (0, 2, 3, 1)).reshape(Cin, 4 * Cup).astype(jnp.bfloat16)
    b_flat = jnp.tile(b, 4).reshape(1, 4 * Cup).astype(jnp.float32)

    GH = N * H                                      # number of (n, h) row groups
    # GB*W must be a multiple of 8 (sublane tiling) unless the block spans all rows.
    m = 8 // math.gcd(W, 8)
    GB = min(GH, max(m, (max(1, target_rows // W) // m) * m))
    if GB < GH and GH % GB != 0:
        # Prefer a nearby exact divisor of GH (no ragged last block); otherwise keep
        # GB and let Pallas mask the ragged tail (never degrade to GB=1).
        for cand in range(GB, max(GB // 2, m - 1), -1):
            if cand % m == 0 and GH % cand == 0:
                GB = cand
                break
    grid = (pl.cdiv(GH, GB),)

    x_flat = x.reshape(GH * W, Cin)                 # free (contiguous) reshape

    blk_bytes = GB * W * Cin * 4 + GB * 2 * W * 2 * Cup * 2
    param_bytes = Cin * 4 * Cup * 2 + 4 * Cup * 4
    limit = _vmem_limit_bytes(2 * (blk_bytes + param_bytes))

    out = pl.pallas_call(
        functools.partial(_upsample_kernel, W=W, Cup=Cup),
        out_shape=jax.ShapeDtypeStruct((GH, 2, W, 2 * Cup), jnp.bfloat16),
        grid=grid,
        in_specs=[
            pl.BlockSpec((GB * W, Cin), lambda i: (i, 0)),
            pl.BlockSpec((Cin, 4 * Cup), lambda i: (0, 0)),
            pl.BlockSpec((1, 4 * Cup), lambda i: (0, 0)),
        ],
        out_specs=pl.BlockSpec((GB, 2, W, 2 * Cup), lambda i: (i, 0, 0, 0)),
        compiler_params=pltpu.CompilerParams(
            dimension_semantics=("parallel",), vmem_limit_bytes=limit),
    )(x_flat, w_flat, b_flat)

    # (N*H, 2, W, 2*Cup) row-major == (N, 2H, 2W, Cup) row-major: reshape is free.
    return out.reshape(N, 2 * H, 2 * W, Cup)


# ----------------------------------------------------------------------------
# Kernel 2: fused [F.pad(x1u) + concat(x2, x1u)] + (Conv3x3 -> GN -> ReLU) x 2.
# Grid over batch.  Pad/concat happen in a single VMEM scratch buffer; the
# intermediate activation never touches HBM.  Two conv strategies (chosen at
# trace time):
#   * tiny channels (Ccat < 128): bf16 im2col slab + one fat matmul (K = 9*Ccat),
#   * realistic channels:         9 accumulated matmuls over shifted views of the
#                                 padded buffer into one f32 VMEM accumulator
#                                 (no im2col slab at all).
# ----------------------------------------------------------------------------
def _convblock_kernel(x2_ref, x1u_ref, w1_ref, b1_ref, g1_ref, bt1_ref,
                      w2_ref, b2_ref, g2_ref, bt2_ref, m_ref, mt_ref,
                      o_ref, *scratch,
                      H, W, C2, Cup, Cout, G, eps, py0, px0, H1u, W1u, use_im2col):
    f32 = jnp.float32
    bf16 = jnp.bfloat16
    Ccat = C2 + Cup
    if use_im2col:
        xcat_ref, yp_ref, p1_ref, p2_ref = scratch
        acc_ref = None
    else:
        xcat_ref, yp_ref, acc_ref = scratch
        p1_ref = p2_ref = None

    # Zero-fill the padded buffers ONCE: scratch persists across the (sequential,
    # "arbitrary") batch grid, only the 1-px borders / outside-x1u-window region must
    # stay zero, and the interiors are fully overwritten every step below.
    @pl.when(pl.program_id(0) == 0)
    def _init():
        xcat_ref[...] = jnp.zeros_like(xcat_ref)
        yp_ref[...] = jnp.zeros_like(yp_ref)

    # --- fused F.pad(x1u) + torch.cat([x2, x1u], channel) + conv "same" padding ---
    xcat_ref[1:1 + H, 1:1 + W, 0:C2] = x2_ref[0]
    xcat_ref[1 + py0:1 + py0 + H1u, 1 + px0:1 + px0 + W1u, C2:Ccat] = (
        x1u_ref[0].astype(f32))

    def gn_relu(a, gamma, beta):
        # Single-pass GroupNorm stats (var = E[x^2] - mean^2) via one-hot group
        # membership matmuls, so the lane (channel) axis never reshapes to (G, C/G)
        # and the activation is traversed once.  All math in f32.
        cnt = f32(H * W * (Cout // G))
        s = jnp.sum(a, axis=0, keepdims=True)                                # (1, Cout)
        ss = jnp.sum(a * a, axis=0, keepdims=True)                           # (1, Cout)
        gmean = jnp.dot(s, m_ref[...], preferred_element_type=f32) / cnt     # (1, G)
        gmsq = jnp.dot(ss, m_ref[...], preferred_element_type=f32) / cnt     # (1, G)
        gvar = jnp.maximum(gmsq - gmean * gmean, 0.0)
        mean_c = jnp.dot(gmean, mt_ref[...], preferred_element_type=f32)     # (1, Cout)
        var_c = jnp.dot(gvar, mt_ref[...], preferred_element_type=f32)       # (1, Cout)
        y = (a - mean_c) * jax.lax.rsqrt(var_c + eps)
        return jnp.maximum(y * gamma + beta, 0.0)

    def conv3x3(src_ref, w_ref, b_row, cin, p_ref):
        # bf16 MXU operands, f32 accumulation.
        if use_im2col:
            # tiny channels: bf16 im2col slab (cast at write time), one K=9*cin matmul
            for k in range(9):
                ky, kx = divmod(k, 3)
                p_ref[:, k * cin:(k + 1) * cin] = (
                    src_ref[ky:ky + H, kx:kx + W, :].reshape(H * W, cin).astype(bf16))
            return jnp.dot(p_ref[...], w_ref[...], preferred_element_type=f32) + b_row
        # realistic channels: no im2col slab -- accumulate 9 tap matmuls into an
        # f32 VMEM accumulator (bias folded into the init).
        acc_ref[...] = jnp.broadcast_to(b_row, (H * W, Cout))
        for k in range(9):
            ky, kx = divmod(k, 3)
            acc_ref[...] += jnp.dot(
                src_ref[ky:ky + H, kx:kx + W, :].reshape(H * W, cin).astype(bf16),
                w_ref[k * cin:(k + 1) * cin, :], preferred_element_type=f32)
        return acc_ref[...]

    # conv1 -> GroupNorm -> ReLU
    a1 = conv3x3(xcat_ref, w1_ref, b1_ref[...], Ccat, p1_ref)
    y1 = gn_relu(a1, g1_ref[...], bt1_ref[...])                              # (H*W, Cout)

    # conv2 on the VMEM-resident intermediate (never written to HBM)
    yp_ref[1:1 + H, 1:1 + W, :] = y1.reshape(H, W, Cout)
    a2 = conv3x3(yp_ref, w2_ref, b2_ref[...], Cout, p2_ref)
    y2 = gn_relu(a2, g2_ref[...], bt2_ref[...])

    # TODO(synk): lane-sparse store for tiny Cout; dense for Cout >= 128 (see header).
    o_ref[0] = y2.astype(o_ref.dtype)                                        # (H*W, Cout)


def conv_block_fused(x2, x1u, w1, b1, g1, bt1, w2, b2, g2, bt2, groups,
                     *, py0, px0, eps=1e-5):
    """x2: (N,H,W,C2) f32; x1u: (N,H1u,W1u,Cup) bf16. Returns (N,H,W,Cout) f32."""
    N, H, W, C2 = x2.shape
    _, H1u, W1u, Cup = x1u.shape
    Ccat = C2 + Cup
    Cout = w1.shape[0]
    G = groups
    use_im2col = Ccat < 128   # im2col only pays off when the per-tap K would be tiny

    # flat conv weights, rows ordered (ky, kx, ci) with ci in torch.cat([x2, x1]) order
    w1f = jnp.transpose(w1, (2, 3, 1, 0)).reshape(9 * Ccat, Cout).astype(jnp.bfloat16)
    w2f = jnp.transpose(w2, (2, 3, 1, 0)).reshape(9 * Cout, Cout).astype(jnp.bfloat16)
    # one-hot channel->group membership, so GN stats never reshape the lane axis
    M = (jnp.arange(Cout)[:, None] // (Cout // G)
         == jnp.arange(G)[None, :]).astype(jnp.float32)
    MT = M.T

    kern = functools.partial(
        _convblock_kernel, H=H, W=W, C2=C2, Cup=Cup, Cout=Cout, G=G, eps=eps,
        py0=py0, px0=px0, H1u=H1u, W1u=W1u, use_im2col=use_im2col)

    pad_hw = (H + 2) * (W + 2)
    # padded buffers stay f32 (robust unaligned spatial slicing); matmul operands are
    # cast to bf16 at im2col-write / tap-read time.
    scratch_shapes = [
        pltpu.VMEM((H + 2, W + 2, Ccat), jnp.float32),   # padded concat(x2, x1u)
        pltpu.VMEM((H + 2, W + 2, Cout), jnp.float32),   # padded intermediate y1
    ]
    scratch_bytes = pad_hw * (Ccat + Cout) * 4
    if use_im2col:
        scratch_shapes += [
            pltpu.VMEM((H * W, 9 * Ccat), jnp.bfloat16),  # bf16 im2col slab (conv1)
            pltpu.VMEM((H * W, 9 * Cout), jnp.bfloat16),  # bf16 im2col slab (conv2)
        ]
        scratch_bytes += H * W * 9 * (Ccat + Cout) * 2
    else:
        scratch_shapes += [pltpu.VMEM((H * W, Cout), jnp.float32)]  # f32 accumulator
        scratch_bytes += H * W * Cout * 4

    blk_bytes = H * W * C2 * 4 + H1u * W1u * Cup * 2 + H * W * Cout * 4
    param_bytes = (9 * Ccat + 9 * Cout) * Cout * 2 + 8 * Cout * 4 + 2 * G * Cout * 4
    limit = _vmem_limit_bytes(scratch_bytes + 2 * (blk_bytes + param_bytes))

    rep = lambda n: (0, 0)   # weights/params stay resident across the batch grid
    out = pl.pallas_call(
        kern,
        out_shape=jax.ShapeDtypeStruct((N, H * W, Cout), jnp.float32),
        grid=(N,),
        in_specs=[
            pl.BlockSpec((1, H, W, C2), lambda n: (n, 0, 0, 0)),
            pl.BlockSpec((1, H1u, W1u, Cup), lambda n: (n, 0, 0, 0)),
            pl.BlockSpec((9 * Ccat, Cout), rep),
            pl.BlockSpec((1, Cout), rep),
            pl.BlockSpec((1, Cout), rep),
            pl.BlockSpec((1, Cout), rep),
            pl.BlockSpec((9 * Cout, Cout), rep),
            pl.BlockSpec((1, Cout), rep),
            pl.BlockSpec((1, Cout), rep),
            pl.BlockSpec((1, Cout), rep),
            pl.BlockSpec((Cout, G), rep),
            pl.BlockSpec((G, Cout), rep),
        ],
        out_specs=pl.BlockSpec((1, H * W, Cout), lambda n: (n, 0, 0)),
        scratch_shapes=scratch_shapes,
        compiler_params=pltpu.CompilerParams(
            # "arbitrary": the init-once zero-fill of the padded scratch must run
            # first (sequential grid).  TODO(synk): on v7x add a "parallel" spatial
            # stripe axis (two-pass GroupNorm) so both TensorCores are busy.
            dimension_semantics=("arbitrary",),
            vmem_limit_bytes=limit),
    )(x2, x1u, w1f,
      b1.reshape(1, Cout), g1.reshape(1, Cout), bt1.reshape(1, Cout),
      w2f,
      b2.reshape(1, Cout), g2.reshape(1, Cout), bt2.reshape(1, Cout),
      M, MT)
    return out.reshape(N, H, W, Cout)   # free reshape of the (N, H*W, Cout) output


# ----------------------------------------------------------------------------
# Up module: parameters + forward
# ----------------------------------------------------------------------------
def init_up_params(key, in_ch_x1, in_ch_x2, out_ch):
    cup = in_ch_x1 // 2
    cin_block = cup + in_ch_x2
    g = get_valid_num_groups(out_ch)
    ks = jax.random.split(key, 6)
    return {
        # ConvTranspose2d weight: (Cin, Cout, kH, kW)
        "up_w": 0.1 * jax.random.normal(ks[0], (in_ch_x1, cup, 2, 2), jnp.float32),
        "up_b": 0.1 * jax.random.normal(ks[1], (cup,), jnp.float32),
        # ConvBlock conv1: (Cout, Cin, 3, 3)
        "c1_w": 0.1 * jax.random.normal(ks[2], (out_ch, cin_block, 3, 3), jnp.float32),
        "c1_b": 0.1 * jax.random.normal(ks[3], (out_ch,), jnp.float32),
        "g1_w": jnp.ones((out_ch,), jnp.float32),
        "g1_b": jnp.zeros((out_ch,), jnp.float32),
        # ConvBlock conv2
        "c2_w": 0.1 * jax.random.normal(ks[4], (out_ch, out_ch, 3, 3), jnp.float32),
        "c2_b": 0.1 * jax.random.normal(ks[5], (out_ch,), jnp.float32),
        "g2_w": jnp.ones((out_ch,), jnp.float32),
        "g2_b": jnp.zeros((out_ch,), jnp.float32),
        "gn_groups": get_valid_num_groups(out_ch),
    }


def up_forward(params, x1_nchw, x2_nchw):
    # NCHW -> NHWC at the module boundary (channels on the lane axis in-kernel).
    x1 = jnp.transpose(x1_nchw, (0, 2, 3, 1)).astype(jnp.float32)
    x2 = jnp.transpose(x2_nchw, (0, 2, 3, 1)).astype(jnp.float32)

    # ConvTranspose2d(k=2, s=2); lands directly in (N, 2H, 2W, Cup) layout (free
    # reshape) and stays bf16 (only consumed as a bf16 MXU operand downstream).
    x1u = conv_transpose_2x2(x1, params["up_w"], params["up_b"])

    diffY = x2.shape[1] - x1u.shape[1]
    diffX = x2.shape[2] - x1u.shape[2]
    # TODO(synk): negative diffs (cropping) unhandled; standard UNet geometry has diff >= 0.
    assert diffY >= 0 and diffX >= 0, (diffY, diffX)

    # F.pad + torch.cat([x2, x1u]) + ConvBlock fused into a single kernel (pad/concat
    # in VMEM, intermediate activation never leaves VMEM).
    y = conv_block_fused(
        x2, x1u,
        params["c1_w"], params["c1_b"], params["g1_w"], params["g1_b"],
        params["c2_w"], params["c2_b"], params["g2_w"], params["g2_b"],
        params["gn_groups"], py0=diffY // 2, px0=diffX // 2)

    # back to NCHW
    return jnp.transpose(y, (0, 3, 1, 2))


if __name__ == "__main__":
    key = jax.random.PRNGKey(0)
    k_p, k_x1, k_x2 = jax.random.split(key, 3)

    # Up(in_channels_x1_before_upsample=8, in_channels_x2_skip_connection=4, out_channels=4)
    in_ch_x1, in_ch_x2, out_ch = 8, 4, 4
    params = init_up_params(k_p, in_ch_x1, in_ch_x2, out_ch)

    # x1 (decoder feature, pre-upsample): NCHW (2, 8, 8, 8)
    # x2 (skip connection):               NCHW (2, 4, 16, 16)
    x1 = jax.random.normal(k_x1, (2, in_ch_x1, 8, 8), jnp.float32)
    x2 = jax.random.normal(k_x2, (2, in_ch_x2, 16, 16), jnp.float32)

    fwd = jax.jit(lambda a, b: up_forward(params, a, b))
    out = jax.block_until_ready(fwd(x1, x2))
    assert out.shape == (2, out_ch, 16, 16), out.shape
    print("KERNEL_OK")
</pallas_src>

<mosaic_0001>
module attributes {stable_mosaic.version = 11 : i64} {
  func.func @_upsample_kernel(%arg0: i32, %arg1: memref<128x8xf32, #tpu.memory_space<vmem>>, %arg2: memref<8x16xbf16, #tpu.memory_space<vmem>>, %arg3: memref<1x16xf32, #tpu.memory_space<vmem>>, %arg4: memref<16x2x8x8xbf16, #tpu.memory_space<vmem>>) attributes {dimension_semantics = [#tpu.dimension_semantics<parallel>], iteration_bounds = array<i64: 1>, scalar_prefetch = 0 : i64, scratch_operands = 0 : i64, tpu.core_type = #tpu.core_type<tc>, window_params = [{transform_indices = @transform_0, window_bounds = array<i64: 128, 8>}, {pipeline_mode = #tpu.pipeline_mode<synchronous>, transform_indices = @transform_1, window_bounds = array<i64: 8, 16>}, {pipeline_mode = #tpu.pipeline_mode<synchronous>, transform_indices = @transform_2, window_bounds = array<i64: 1, 16>}, {transform_indices = @transform_3, window_bounds = array<i64: 16, 2, 8, 8>}]} {
    %c0 = arith.constant 0 : index
    %c0_0 = arith.constant 0 : index
    %0 = vector.load %arg1[%c0, %c0_0] : memref<128x8xf32, #tpu.memory_space<vmem>>, vector<128x8xf32>
    %1 = arith.truncf %0 : vector<128x8xf32> to vector<128x8xbf16>
    %c0_1 = arith.constant 0 : index
    %c0_2 = arith.constant 0 : index
    %2 = vector.load %arg2[%c0_1, %c0_2] : memref<8x16xbf16, #tpu.memory_space<vmem>>, vector<8x16xbf16>
    %cst = arith.constant dense<0.000000e+00> : vector<128x16xf32>
    %3 = tpu.matmul %1, %2, %cst {dimension_numbers = #tpu.dot_dimension_numbers<[1], [0], [0], [1], [0, 0, 1, 1], [], []>} : vector<128x8xbf16>, vector<8x16xbf16>, vector<128x16xf32> -> vector<128x16xf32>
    %c0_3 = arith.constant 0 : index
    %c0_4 = arith.constant 0 : index
    %4 = vector.load %arg3[%c0_3, %c0_4] : memref<1x16xf32, #tpu.memory_space<vmem>>, vector<1x16xf32>
    %5 = vector.broadcast %4 : vector<1x16xf32> to vector<128x16xf32>
    %6 = arith.addf %3, %5 : vector<128x16xf32>
    %7 = vector.extract_strided_slice %6 {offsets = [0, 0], sizes = [128, 8], strides = [1, 1]} : vector<128x16xf32> to vector<128x8xf32>
    %8 = vector.shape_cast %7 : vector<128x8xf32> to vector<16x8x8xf32>
    %9 = arith.truncf %8 : vector<16x8x8xf32> to vector<16x8x8xbf16>
    %c0_5 = arith.constant 0 : index
    %c0_6 = arith.constant 0 : index
    %c0_7 = arith.constant 0 : index
    %c0_8 = arith.constant 0 : index
    %10 = vector.load %arg4[%c0_5, %c0_6, %c0_7, %c0_8] : memref<16x2x8x8xbf16, #tpu.memory_space<vmem>>, vector<16x1x8x8xbf16>
    %11 = vector.shape_cast %10 : vector<16x1x8x8xbf16> to vector<16x8x8xbf16>
    %12 = vector.shape_cast %9 : vector<16x8x8xbf16> to vector<16x1x8x8xbf16>
    tpu.vector_store %arg4[%c0_5, %c0_6, %c0_7, %c0_8], %12 {strides = array<i32>} : memref<16x2x8x8xbf16, #tpu.memory_space<vmem>>, vector<16x1x8x8xbf16>,
    %13 = vector.extract_strided_slice %6 {offsets = [0, 8], sizes = [128, 8], strides = [1, 1]} : vector<128x16xf32> to vector<128x8xf32>
    %14 = vector.shape_cast %13 : vector<128x8xf32> to vector<16x8x8xf32>
    %15 = arith.truncf %14 : vector<16x8x8xf32> to vector<16x8x8xbf16>
    %c0_9 = arith.constant 0 : index
    %c1 = arith.constant 1 : index
    %c0_10 = arith.constant 0 : index
    %c0_11 = arith.constant 0 : index
    %16 = vector.load %arg4[%c0_9, %c1, %c0_10, %c0_11] : memref<16x2x8x8xbf16, #tpu.memory_space<vmem>>, vector<16x1x8x8xbf16>
    %17 = vector.shape_cast %16 : vector<16x1x8x8xbf16> to vector<16x8x8xbf16>
    %18 = vector.shape_cast %15 : vector<16x8x8xbf16> to vector<16x1x8x8xbf16>
    tpu.vector_store %arg4[%c0_9, %c1, %c0_10, %c0_11], %18 {strides = array<i32>} : memref<16x2x8x8xbf16, #tpu.memory_space<vmem>>, vector<16x1x8x8xbf16>,
    return
  }
  func.func @transform_0(%arg0: i32) -> (i32, i32) {
    %c0_i32 = arith.constant 0 : i32
    %c0_i32_0 = arith.constant 0 : i32
    return %arg0, %c0_i32 : i32, i32
  }
  func.func @transform_1(%arg0: i32) -> (i32, i32) {
    %c0_i32 = arith.constant 0 : i32
    %c0_i32_0 = arith.constant 0 : i32
    %c0_i32_1 = arith.constant 0 : i32
    return %c0_i32, %c0_i32_0 : i32, i32
  }
  func.func @transform_2(%arg0: i32) -> (i32, i32) {
    %c0_i32 = arith.constant 0 : i32
    %c0_i32_0 = arith.constant 0 : i32
    %c0_i32_1 = arith.constant 0 : i32
    return %c0_i32, %c0_i32_0 : i32, i32
  }
  func.func @transform_3(%arg0: i32) -> (i32, i32, i32, i32) {
    %c0_i32 = arith.constant 0 : i32
    %c0_i32_0 = arith.constant 0 : i32
    %c0_i32_1 = arith.constant 0 : i32
    %c0_i32_2 = arith.constant 0 : i32
    return %arg0, %c0_i32, %c0_i32_0, %c0_i32_1 : i32, i32, i32, i32
  }
}

module attributes {stable_mosaic.version = 11 : i64} {
  func.func @_convblock_kernel(%arg0: i32, %arg1: memref<1x16x16x4xf32, #tpu.memory_space<vmem>>, %arg2: memref<1x16x16x4xbf16, #tpu.memory_space<vmem>>, %arg3: memref<72x4xbf16, #tpu.memory_space<vmem>>, %arg4: memref<1x4xf32, #tpu.memory_space<vmem>>, %arg5: memref<1x4xf32, #tpu.memory_space<vmem>>, %arg6: memref<1x4xf32, #tpu.memory_space<vmem>>, %arg7: memref<36x4xbf16, #tpu.memory_space<vmem>>, %arg8: memref<1x4xf32, #tpu.memory_space<vmem>>, %arg9: memref<1x4xf32, #tpu.memory_space<vmem>>, %arg10: memref<1x4xf32, #tpu.memory_space<vmem>>, %arg11: memref<4x4xf32, #tpu.memory_space<vmem>>, %arg12: memref<4x4xf32, #tpu.memory_space<vmem>>, %arg13: memref<1x256x4xf32, #tpu.memory_space<vmem>>, %arg14: memref<18x18x8xf32, #tpu.memory_space<vmem>>, %arg15: memref<18x18x4xf32, #tpu.memory_space<vmem>>, %arg16: memref<256x72xbf16, #tpu.memory_space<vmem>>, %arg17: memref<256x36xbf16, #tpu.memory_space<vmem>>) attributes {dimension_semantics = [#tpu.dimension_semantics<arbitrary>], iteration_bounds = array<i64: 2>, scalar_prefetch = 0 : i64, scratch_operands = 4 : i64, tpu.core_type = #tpu.core_type<tc>, window_params = [{transform_indices = @transform_0, window_bounds = array<i64: 1, 16, 16, 4>}, {transform_indices = @transform_1, window_bounds = array<i64: 1, 16, 16, 4>}, {pipeline_mode = #tpu.pipeline_mode<synchronous>, transform_indices = @transform_2, window_bounds = array<i64: 72, 4>}, {pipeline_mode = #tpu.pipeline_mode<synchronous>, transform_indices = @transform_3, window_bounds = array<i64: 1, 4>}, {pipeline_mode = #tpu.pipeline_mode<synchronous>, transform_indices = @transform_4, window_bounds = array<i64: 1, 4>}, {pipeline_mode = #tpu.pipeline_mode<synchronous>, transform_indices = @transform_5, window_bounds = array<i64: 1, 4>}, {pipeline_mode = #tpu.pipeline_mode<synchronous>, transform_indices = @transform_6, window_bounds = array<i64: 36, 4>}, {pipeline_mode = #tpu.pipeline_mode<synchronous>, transform_indices = @transform_7, window_bounds = array<i64: 1, 4>}, {pipeline_mode = #tpu.pipeline_mode<synchronous>, transform_indices = @transform_8, window_bounds = array<i64: 1, 4>}, {pipeline_mode = #tpu.pipeline_mode<synchronous>, transform_indices = @transform_9, window_bounds = array<i64: 1, 4>}, {pipeline_mode = #tpu.pipeline_mode<synchronous>, transform_indices = @transform_10, window_bounds = array<i64: 4, 4>}, {pipeline_mode = #tpu.pipeline_mode<synchronous>, transform_indices = @transform_11, window_bounds = array<i64: 4, 4>}, {transform_indices = @transform_12, window_bounds = array<i64: 1, 256, 4>}]} {
    %c0_i32 = arith.constant 0 : i32
    %0 = arith.cmpi eq, %arg0, %c0_i32 : i32
    %1 = arith.extui %0 : i1 to i32
    %c0_i32_0 = arith.constant 0 : i32
    %2 = arith.cmpi ne, %1, %c0_i32_0 : i32
    scf.if %2 {
      %cst_155 = arith.constant 0.000000e+00 : f32
      %171 = vector.broadcast %cst_155 : f32 to vector<18x18x8xf32>
      %c0_156 = arith.constant 0 : index
      %c0_157 = arith.constant 0 : index
      %c0_158 = arith.constant 0 : index
      %172 = vector.load %arg14[%c0_156, %c0_157, %c0_158] : memref<18x18x8xf32, #tpu.memory_space<vmem>>, vector<18x18x8xf32>
      tpu.vector_store %arg14[%c0_156, %c0_157, %c0_158], %171 {strides = array<i32>} : memref<18x18x8xf32, #tpu.memory_space<vmem>>, vector<18x18x8xf32>,
      %cst_159 = arith.constant 0.000000e+00 : f32
      %173 = vector.broadcast %cst_159 : f32 to vector<18x18x4xf32>
      %c0_160 = arith.constant 0 : index
      %c0_161 = arith.constant 0 : index
      %c0_162 = arith.constant 0 : index
      %174 = vector.load %arg15[%c0_160, %c0_161, %c0_162] : memref<18x18x4xf32, #tpu.memory_space<vmem>>, vector<18x18x4xf32>
      tpu.vector_store %arg15[%c0_160, %c0_161, %c0_162], %173 {strides = array<i32>} : memref<18x18x4xf32, #tpu.memory_space<vmem>>, vector<18x18x4xf32>,
    } else {
    }
    %c0 = arith.constant 0 : index
    %c0_1 = arith.constant 0 : index
    %c0_2 = arith.constant 0 : index
    %c0_3 = arith.constant 0 : index
    %3 = vector.load %arg1[%c0, %c0_1, %c0_2, %c0_3] : memref<1x16x16x4xf32, #tpu.memory_space<vmem>>, vector<1x16x16x4xf32>
    %4 = vector.shape_cast %3 : vector<1x16x16x4xf32> to vector<16x16x4xf32>
    %c1 = arith.constant 1 : index
    %c1_4 = arith.constant 1 : index
    %c0_5 = arith.constant 0 : index
    %5 = vector.load %arg14[%c1, %c1_4, %c0_5] : memref<18x18x8xf32, #tpu.memory_space<vmem>>, vector<16x16x4xf32>
    tpu.vector_store %arg14[%c1, %c1_4, %c0_5], %4 {strides = array<i32>} : memref<18x18x8xf32, #tpu.memory_space<vmem>>, vector<16x16x4xf32>,
    %c0_6 = arith.constant 0 : index
    %c0_7 = arith.constant 0 : index
    %c0_8 = arith.constant 0 : index
    %c0_9 = arith.constant 0 : index
    %6 = vector.load %arg2[%c0_6, %c0_7, %c0_8, %c0_9] : memref<1x16x16x4xbf16, #tpu.memory_space<vmem>>, vector<1x16x16x4xbf16>
    %7 = vector.shape_cast %6 : vector<1x16x16x4xbf16> to vector<16x16x4xbf16>
    %8 = arith.extf %7 : vector<16x16x4xbf16> to vector<16x16x4xf32>
    %c1_10 = arith.constant 1 : index
    %c1_11 = arith.constant 1 : index
    %c4 = arith.constant 4 : index
    %9 = vector.load %arg14[%c1_10, %c1_11, %c4] : memref<18x18x8xf32, #tpu.memory_space<vmem>>, vector<16x16x4xf32>
    tpu.vector_store %arg14[%c1_10, %c1_11, %c4], %8 {strides = array<i32>} : memref<18x18x8xf32, #tpu.memory_space<vmem>>, vector<16x16x4xf32>,
    %c0_12 = arith.constant 0 : index
    %c0_13 = arith.constant 0 : index
    %10 = vector.load %arg4[%c0_12, %c0_13] : memref<1x4xf32, #tpu.memory_space<vmem>>, vector<1x4xf32>
    %c0_14 = arith.constant 0 : index
    %c0_15 = arith.constant 0 : index
    %c0_16 = arith.constant 0 : index
    %11 = vector.load %arg14[%c0_14, %c0_15, %c0_16] : memref<18x18x8xf32, #tpu.memory_space<vmem>>, vector<16x16x8xf32>
    %12 = vector.shape_cast %11 : vector<16x16x8xf32> to vector<256x8xf32>
    %13 = arith.truncf %12 : vector<256x8xf32> to vector<256x8xbf16>
    %c0_17 = arith.constant 0 : index
    %c0_18 = arith.constant 0 : index
    %14 = vector.load %arg16[%c0_17, %c0_18] : memref<256x72xbf16, #tpu.memory_space<vmem>>, vector<256x8xbf16>
    tpu.vector_store %arg16[%c0_17, %c0_18], %13 {strides = array<i32>} : memref<256x72xbf16, #tpu.memory_space<vmem>>, vector<256x8xbf16>,
    %c0_19 = arith.constant 0 : index
    %c1_20 = arith.constant 1 : index
    %c0_21 = arith.constant 0 : index
    %15 = vector.load %arg14[%c0_19, %c1_20, %c0_21] : memref<18x18x8xf32, #tpu.memory_space<vmem>>, vector<16x16x8xf32>
    %16 = vector.shape_cast %15 : vector<16x16x8xf32> to vector<256x8xf32>
    %17 = arith.truncf %16 : vector<256x8xf32> to vector<256x8xbf16>
    %c0_22 = arith.constant 0 : index
    %c8 = arith.constant 8 : index
    %18 = vector.load %arg16[%c0_22, %c8] : memref<256x72xbf16, #tpu.memory_space<vmem>>, vector<256x8xbf16>
    tpu.vector_store %arg16[%c0_22, %c8], %17 {strides = array<i32>} : memref<256x72xbf16, #tpu.memory_space<vmem>>, vector<256x8xbf16>,
    %c0_23 = arith.constant 0 : index
    %c2 = arith.constant 2 : index
    %c0_24 = arith.constant 0 : index
    %19 = vector.load %arg14[%c0_23, %c2, %c0_24] : memref<18x18x8xf32, #tpu.memory_space<vmem>>, vector<16x16x8xf32>
    %20 = vector.shape_cast %19 : vector<16x16x8xf32> to vector<256x8xf32>
    %21 = arith.truncf %20 : vector<256x8xf32> to vector<256x8xbf16>
    %c0_25 = arith.constant 0 : index
    %c16 = arith.constant 16 : index
    %22 = vector.load %arg16[%c0_25, %c16] : memref<256x72xbf16, #tpu.memory_space<vmem>>, vector<256x8xbf16>
    tpu.vector_store %arg16[%c0_25, %c16], %21 {strides = array<i32>} : memref<256x72xbf16, #tpu.memory_space<vmem>>, vector<256x8xbf16>,
    %c1_26 = arith.constant 1 : index
    %c0_27 = arith.constant 0 : index
    %c0_28 = arith.constant 0 : index
    %23 = vector.load %arg14[%c1_26, %c0_27, %c0_28] : memref<18x18x8xf32, #tpu.memory_space<vmem>>, vector<16x16x8xf32>
    %24 = vector.shape_cast %23 : vector<16x16x8xf32> to vector<256x8xf32>
    %25 = arith.truncf %24 : vector<256x8xf32> to vector<256x8xbf16>
    %c0_29 = arith.constant 0 : index
    %c24 = arith.constant 24 : index
    %26 = vector.load %arg16[%c0_29, %c24] : memref<256x72xbf16, #tpu.memory_space<vmem>>, vector<256x8xbf16>
    tpu.vector_store %arg16[%c0_29, %c24], %25 {strides = array<i32>} : memref<256x72xbf16, #tpu.memory_space<vmem>>, vector<256x8xbf16>,
    %c1_30 = arith.constant 1 : index
    %c1_31 = arith.constant 1 : index
    %c0_32 = arith.constant 0 : index
    %27 = vector.load %arg14[%c1_30, %c1_31, %c0_32] : memref<18x18x8xf32, #tpu.memory_space<vmem>>, vector<16x16x8xf32>
    %28 = vector.shape_cast %27 : vector<16x16x8xf32> to vector<256x8xf32>
    %29 = arith.truncf %28 : vector<256x8xf32> to vector<256x8xbf16>
    %c0_33 = arith.constant 0 : index
    %c32 = arith.constant 32 : index
    %30 = vector.load %arg16[%c0_33, %c32] : memref<256x72xbf16, #tpu.memory_space<vmem>>, vector<256x8xbf16>
    tpu.vector_store %arg16[%c0_33, %c32], %29 {strides = array<i32>} : memref<256x72xbf16, #tpu.memory_space<vmem>>, vector<256x8xbf16>,
    %c1_34 = arith.constant 1 : index
    %c2_35 = arith.constant 2 : index
    %c0_36 = arith.constant 0 : index
    %31 = vector.load %arg14[%c1_34, %c2_35, %c0_36] : memref<18x18x8xf32, #tpu.memory_space<vmem>>, vector<16x16x8xf32>
    %32 = vector.shape_cast %31 : vector<16x16x8xf32> to vector<256x8xf32>
    %33 = arith.truncf %32 : vector<256x8xf32> to vector<256x8xbf16>
    %c0_37 = arith.constant 0 : index
    %c40 = arith.constant 40 : index
    %34 = vector.load %arg16[%c0_37, %c40] : memref<256x72xbf16, #tpu.memory_space<vmem>>, vector<256x8xbf16>
    tpu.vector_store %arg16[%c0_37, %c40], %33 {strides = array<i32>} : memref<256x72xbf16, #tpu.memory_space<vmem>>, vector<256x8xbf16>,
    %c2_38 = arith.constant 2 : index
    %c0_39 = arith.constant 0 : index
    %c0_40 = arith.constant 0 : index
    %35 = vector.load %arg14[%c2_38, %c0_39, %c0_40] : memref<18x18x8xf32, #tpu.memory_space<vmem>>, vector<16x16x8xf32>
    %36 = vector.shape_cast %35 : vector<16x16x8xf32> to vector<256x8xf32>
    %37 = arith.truncf %36 : vector<256x8xf32> to vector<256x8xbf16>
    %c0_41 = arith.constant 0 : index
    %c48 = arith.constant 48 : index
    %38 = vector.load %arg16[%c0_41, %c48] : memref<256x72xbf16, #tpu.memory_space<vmem>>, vector<256x8xbf16>
    tpu.vector_store %arg16[%c0_41, %c48], %37 {strides = array<i32>} : memref<256x72xbf16, #tpu.memory_space<vmem>>, vector<256x8xbf16>,
    %c2_42 = arith.constant 2 : index
    %c1_43 = arith.constant 1 : index
    %c0_44 = arith.constant 0 : index
    %39 = vector.load %arg14[%c2_42, %c1_43, %c0_44] : memref<18x18x8xf32, #tpu.memory_space<vmem>>, vector<16x16x8xf32>
    %40 = vector.shape_cast %39 : vector<16x16x8xf32> to vector<256x8xf32>
    %41 = arith.truncf %40 : vector<256x8xf32> to vector<256x8xbf16>
    %c0_45 = arith.constant 0 : index
    %c56 = arith.constant 56 : index
    %42 = vector.load %arg16[%c0_45, %c56] : memref<256x72xbf16, #tpu.memory_space<vmem>>, vector<256x8xbf16>
    tpu.vector_store %arg16[%c0_45, %c56], %41 {strides = array<i32>} : memref<256x72xbf16, #tpu.memory_space<vmem>>, vector<256x8xbf16>,
    %c2_46 = arith.constant 2 : index
    %c2_47 = arith.constant 2 : index
    %c0_48 = arith.constant 0 : index
    %43 = vector.load %arg14[%c2_46, %c2_47, %c0_48] : memref<18x18x8xf32, #tpu.memory_space<vmem>>, vector<16x16x8xf32>
    %44 = vector.shape_cast %43 : vector<16x16x8xf32> to vector<256x8xf32>
    %45 = arith.truncf %44 : vector<256x8xf32> to vector<256x8xbf16>
    %c0_49 = arith.constant 0 : index
    %c64 = arith.constant 64 : index
    %46 = vector.load %arg16[%c0_49, %c64] : memref<256x72xbf16, #tpu.memory_space<vmem>>, vector<256x8xbf16>
    tpu.vector_store %arg16[%c0_49, %c64], %45 {strides = array<i32>} : memref<256x72xbf16, #tpu.memory_space<vmem>>, vector<256x8xbf16>,
    %c0_50 = arith.constant 0 : index
    %c0_51 = arith.constant 0 : index
    %47 = vector.load %arg16[%c0_50, %c0_51] : memref<256x72xbf16, #tpu.memory_space<vmem>>, vector<256x72xbf16>
    %c0_52 = arith.constant 0 : index
    %c0_53 = arith.constant 0 : index
    %48 = vector.load %arg3[%c0_52, %c0_53] : memref<72x4xbf16, #tpu.memory_space<vmem>>, vector<72x4xbf16>
    %cst = arith.constant dense<0.000000e+00> : vector<256x4xf32>
    %49 = tpu.matmul %47, %48, %cst {dimension_numbers = #tpu.dot_dimension_numbers<[1], [0], [0], [1], [0, 0, 1, 1], [], []>} : vector<256x72xbf16>, vector<72x4xbf16>, vector<256x4xf32> -> vector<256x4xf32>
    %50 = vector.broadcast %10 : vector<1x4xf32> to vector<256x4xf32>
    %51 = arith.addf %49, %50 : vector<256x4xf32>
    %c0_54 = arith.constant 0 : index
    %c0_55 = arith.constant 0 : index
    %52 = vector.load %arg5[%c0_54, %c0_55] : memref<1x4xf32, #tpu.memory_space<vmem>>, vector<1x4xf32>
    %c0_56 = arith.constant 0 : index
    %c0_57 = arith.constant 0 : index
    %53 = vector.load %arg6[%c0_56, %c0_57] : memref<1x4xf32, #tpu.memory_space<vmem>>, vector<1x4xf32>
    %cst_58 = arith.constant dense<0.000000e+00> : vector<4xf32>
    %54 = vector.multi_reduction <add>, %51, %cst_58 [0] : vector<256x4xf32> to vector<4xf32>
    %55 = vector.shape_cast %54 : vector<4xf32> to vector<1x4xf32>
    %56 = arith.mulf %51, %51 : vector<256x4xf32>
    %cst_59 = arith.constant dense<0.000000e+00> : vector<4xf32>
    %57 = vector.multi_reduction <add>, %56, %cst_59 [0] : vector<256x4xf32> to vector<4xf32>
    %58 = vector.shape_cast %57 : vector<4xf32> to vector<1x4xf32>
    %c0_60 = arith.constant 0 : index
    %c0_61 = arith.constant 0 : index
    %59 = vector.load %arg11[%c0_60, %c0_61] : memref<4x4xf32, #tpu.memory_space<vmem>>, vector<4x4xf32>
    %cst_62 = arith.constant dense<0.000000e+00> : vector<1x4xf32>
    %60 = tpu.matmul %55, %59, %cst_62 {dimension_numbers = #tpu.dot_dimension_numbers<[1], [0], [0], [1], [0, 0, 1, 1], [], []>} : vector<1x4xf32>, vector<4x4xf32>, vector<1x4xf32> -> vector<1x4xf32>
    %cst_63 = arith.constant 2.560000e+02 : f32
    %61 = vector.broadcast %cst_63 : f32 to vector<1x4xf32>
    %62 = arith.divf %60, %61 : vector<1x4xf32>
    %c0_64 = arith.constant 0 : index
    %c0_65 = arith.constant 0 : index
    %63 = vector.load %arg11[%c0_64, %c0_65] : memref<4x4xf32, #tpu.memory_space<vmem>>, vector<4x4xf32>
    %cst_66 = arith.constant dense<0.000000e+00> : vector<1x4xf32>
    %64 = tpu.matmul %58, %63, %cst_66 {dimension_numbers = #tpu.dot_dimension_numbers<[1], [0], [0], [1], [0, 0, 1, 1], [], []>} : vector<1x4xf32>, vector<4x4xf32>, vector<1x4xf32> -> vector<1x4xf32>
    %cst_67 = arith.constant 2.560000e+02 : f32
    %65 = vector.broadcast %cst_67 : f32 to vector<1x4xf32>
    %66 = arith.divf %64, %65 : vector<1x4xf32>
    %67 = arith.mulf %62, %62 : vector<1x4xf32>
    %68 = arith.subf %66, %67 : vector<1x4xf32>
    %cst_68 = arith.constant 0.000000e+00 : f32
    %69 = vector.broadcast %cst_68 : f32 to vector<1x4xf32>
    %70 = arith.maximumf %68, %69 : vector<1x4xf32>
    %c0_69 = arith.constant 0 : index
    %c0_70 = arith.constant 0 : index
    %71 = vector.load %arg12[%c0_69, %c0_70] : memref<4x4xf32, #tpu.memory_space<vmem>>, vector<4x4xf32>
    %cst_71 = arith.constant dense<0.000000e+00> : vector<1x4xf32>
    %72 = tpu.matmul %62, %71, %cst_71 {dimension_numbers = #tpu.dot_dimension_numbers<[1], [0], [0], [1], [0, 0, 1, 1], [], []>} : vector<1x4xf32>, vector<4x4xf32>, vector<1x4xf32> -> vector<1x4xf32>
    %c0_72 = arith.constant 0 : index
    %c0_73 = arith.constant 0 : index
    %73 = vector.load %arg12[%c0_72, %c0_73] : memref<4x4xf32, #tpu.memory_space<vmem>>, vector<4x4xf32>
    %cst_74 = arith.constant dense<0.000000e+00> : vector<1x4xf32>
    %74 = tpu.matmul %70, %73, %cst_74 {dimension_numbers = #tpu.dot_dimension_numbers<[1], [0], [0], [1], [0, 0, 1, 1], [], []>} : vector<1x4xf32>, vector<4x4xf32>, vector<1x4xf32> -> vector<1x4xf32>
    %75 = vector.broadcast %72 : vector<1x4xf32> to vector<256x4xf32>
    %76 = arith.subf %51, %75 : vector<256x4xf32>
    %cst_75 = arith.constant 9.99999974E-6 : f32
    %77 = vector.broadcast %cst_75 : f32 to vector<1x4xf32>
    %78 = arith.addf %74, %77 : vector<1x4xf32>
    %79 = math.rsqrt %78 : vector<1x4xf32>
    %80 = vector.broadcast %79 : vector<1x4xf32> to vector<256x4xf32>
    %81 = arith.mulf %76, %80 : vector<256x4xf32>
    %82 = vector.broadcast %52 : vector<1x4xf32> to vector<256x4xf32>
    %83 = arith.mulf %81, %82 : vector<256x4xf32>
    %84 = vector.broadcast %53 : vector<1x4xf32> to vector<256x4xf32>
    %85 = arith.addf %83, %84 : vector<256x4xf32>
    %cst_76 = arith.constant 0.000000e+00 : f32
    %86 = vector.broadcast %cst_76 : f32 to vector<256x4xf32>
    %87 = arith.maximumf %85, %86 : vector<256x4xf32>
    %88 = vector.shape_cast %87 : vector<256x4xf32> to vector<16x16x4xf32>
    %c1_77 = arith.constant 1 : index
    %c1_78 = arith.constant 1 : index
    %c0_79 = arith.constant 0 : index
    %89 = vector.load %arg15[%c1_77, %c1_78, %c0_79] : memref<18x18x4xf32, #tpu.memory_space<vmem>>, vector<16x16x4xf32>
    tpu.vector_store %arg15[%c1_77, %c1_78, %c0_79], %88 {strides = array<i32>} : memref<18x18x4xf32, #tpu.memory_space<vmem>>, vector<16x16x4xf32>,
    %c0_80 = arith.constant 0 : index
    %c0_81 = arith.constant 0 : index
    %90 = vector.load %arg8[%c0_80, %c0_81] : memref<1x4xf32, #tpu.memory_space<vmem>>, vector<1x4xf32>
    %c0_82 = arith.constant 0 : index
    %c0_83 = arith.constant 0 : index
    %c0_84 = arith.constant 0 : index
    %91 = vector.load %arg15[%c0_82, %c0_83, %c0_84] : memref<18x18x4xf32, #tpu.memory_space<vmem>>, vector<16x16x4xf32>
    %92 = vector.shape_cast %91 : vector<16x16x4xf32> to vector<256x4xf32>
    %93 = arith.truncf %92 : vector<256x4xf32> to vector<256x4xbf16>
    %c0_85 = arith.constant 0 : index
    %c0_86 = arith.constant 0 : index
    %94 = vector.load %arg17[%c0_85, %c0_86] : memref<256x36xbf16, #tpu.memory_space<vmem>>, vector<256x4xbf16>
    tpu.vector_store %arg17[%c0_85, %c0_86], %93 {strides = array<i32>} : memref<256x36xbf16, #tpu.memory_space<vmem>>, vector<256x4xbf16>,
    %c0_87 = arith.constant 0 : index
    %c1_88 = arith.constant 1 : index
    %c0_89 = arith.constant 0 : index
    %95 = vector.load %arg15[%c0_87, %c1_88, %c0_89] : memref<18x18x4xf32, #tpu.memory_space<vmem>>, vector<16x16x4xf32>
    %96 = vector.shape_cast %95 : vector<16x16x4xf32> to vector<256x4xf32>
    %97 = arith.truncf %96 : vector<256x4xf32> to vector<256x4xbf16>
    %c0_90 = arith.constant 0 : index
    %c4_91 = arith.constant 4 : index
    %98 = vector.load %arg17[%c0_90, %c4_91] : memref<256x36xbf16, #tpu.memory_space<vmem>>, vector<256x4xbf16>
    tpu.vector_store %arg17[%c0_90, %c4_91], %97 {strides = array<i32>} : memref<256x36xbf16, #tpu.memory_space<vmem>>, vector<256x4xbf16>,
    %c0_92 = arith.constant 0 : index
    %c2_93 = arith.constant 2 : index
    %c0_94 = arith.constant 0 : index
    %99 = vector.load %arg15[%c0_92, %c2_93, %c0_94] : memref<18x18x4xf32, #tpu.memory_space<vmem>>, vector<16x16x4xf32>
    %100 = vector.shape_cast %99 : vector<16x16x4xf32> to vector<256x4xf32>
    %101 = arith.truncf %100 : vector<256x4xf32> to vector<256x4xbf16>
    %c0_95 = arith.constant 0 : index
    %c8_96 = arith.constant 8 : index
    %102 = vector.load %arg17[%c0_95, %c8_96] : memref<256x36xbf16, #tpu.memory_space<vmem>>, vector<256x4xbf16>
    tpu.vector_store %arg17[%c0_95, %c8_96], %101 {strides = array<i32>} : memref<256x36xbf16, #tpu.memory_space<vmem>>, vector<256x4xbf16>,
    %c1_97 = arith.constant 1 : index
    %c0_98 = arith.constant 0 : index
    %c0_99 = arith.constant 0 : index
    %103 = vector.load %arg15[%c1_97, %c0_98, %c0_99] : memref<18x18x4xf32, #tpu.memory_space<vmem>>, vector<16x16x4xf32>
    %104 = vector.shape_cast %103 : vector<16x16x4xf32> to vector<256x4xf32>
    %105 = arith.truncf %104 : vector<256x4xf32> to vector<256x4xbf16>
    %c0_100 = arith.constant 0 : index
    %c12 = arith.constant 12 : index
    %106 = vector.load %arg17[%c0_100, %c12] : memref<256x36xbf16, #tpu.memory_space<vmem>>, vector<256x4xbf16>
    tpu.vector_store %arg17[%c0_100, %c12], %105 {strides = array<i32>} : memref<256x36xbf16, #tpu.memory_space<vmem>>, vector<256x4xbf16>,
    %c1_101 = arith.constant 1 : index
    %c1_102 = arith.constant 1 : index
    %c0_103 = arith.constant 0 : index
    %107 = vector.load %arg15[%c1_101, %c1_102, %c0_103] : memref<18x18x4xf32, #tpu.memory_space<vmem>>, vector<16x16x4xf32>
    %108 = vector.shape_cast %107 : vector<16x16x4xf32> to vector<256x4xf32>
    %109 = arith.truncf %108 : vector<256x4xf32> to vector<256x4xbf16>
    %c0_104 = arith.constant 0 : index
    %c16_105 = arith.constant 16 : index
    %110 = vector.load %arg17[%c0_104, %c16_105] : memref<256x36xbf16, #tpu.memory_space<vmem>>, vector<256x4xbf16>
    tpu.vector_store %arg17[%c0_104, %c16_105], %109 {strides = array<i32>} : memref<256x36xbf16, #tpu.memory_space<vmem>>, vector<256x4xbf16>,
    %c1_106 = arith.constant 1 : index
    %c2_107 = arith.constant 2 : index
    %c0_108 = arith.constant 0 : index
    %111 = vector.load %arg15[%c1_106, %c2_107, %c0_108] : memref<18x18x4xf32, #tpu.memory_space<vmem>>, vector<16x16x4xf32>
    %112 = vector.shape_cast %111 : vector<16x16x4xf32> to vector<256x4xf32>
    %113 = arith.truncf %112 : vector<256x4xf32> to vector<256x4xbf16>
    %c0_109 = arith.constant 0 : index
    %c20 = arith.constant 20 : index
    %114 = vector.load %arg17[%c0_109, %c20] : memref<256x36xbf16, #tpu.memory_space<vmem>>, vector<256x4xbf16>
    tpu.vector_store %arg17[%c0_109, %c20], %113 {strides = array<i32>} : memref<256x36xbf16, #tpu.memory_space<vmem>>, vector<256x4xbf16>,
    %c2_110 = arith.constant 2 : index
    %c0_111 = arith.constant 0 : index
    %c0_112 = arith.constant 0 : index
    %115 = vector.load %arg15[%c2_110, %c0_111, %c0_112] : memref<18x18x4xf32, #tpu.memory_space<vmem>>, vector<16x16x4xf32>
    %116 = vector.shape_cast %115 : vector<16x16x4xf32> to vector<256x4xf32>
    %117 = arith.truncf %116 : vector<256x4xf32> to vector<256x4xbf16>
    %c0_113 = arith.constant 0 : index
    %c24_114 = arith.constant 24 : index
    %118 = vector.load %arg17[%c0_113, %c24_114] : memref<256x36xbf16, #tpu.memory_space<vmem>>, vector<256x4xbf16>
    tpu.vector_store %arg17[%c0_113, %c24_114], %117 {strides = array<i32>} : memref<256x36xbf16, #tpu.memory_space<vmem>>, vector<256x4xbf16>,
    %c2_115 = arith.constant 2 : index
    %c1_116 = arith.constant 1 : index
    %c0_117 = arith.constant 0 : index
    %119 = vector.load %arg15[%c2_115, %c1_116, %c0_117] : memref<18x18x4xf32, #tpu.memory_space<vmem>>, vector<16x16x4xf32>
    %120 = vector.shape_cast %119 : vector<16x16x4xf32> to vector<256x4xf32>
    %121 = arith.truncf %120 : vector<256x4xf32> to vector<256x4xbf16>
    %c0_118 = arith.constant 0 : index
    %c28 = arith.constant 28 : index
    %122 = vector.load %arg17[%c0_118, %c28] : memref<256x36xbf16, #tpu.memory_space<vmem>>, vector<256x4xbf16>
    tpu.vector_store %arg17[%c0_118, %c28], %121 {strides = array<i32>} : memref<256x36xbf16, #tpu.memory_space<vmem>>, vector<256x4xbf16>,
    %c2_119 = arith.constant 2 : index
    %c2_120 = arith.constant 2 : index
    %c0_121 = arith.constant 0 : index
    %123 = vector.load %arg15[%c2_119, %c2_120, %c0_121] : memref<18x18x4xf32, #tpu.memory_space<vmem>>, vector<16x16x4xf32>
    %124 = vector.shape_cast %123 : vector<16x16x4xf32> to vector<256x4xf32>
    %125 = arith.truncf %124 : vector<256x4xf32> to vector<256x4xbf16>
    %c0_122 = arith.constant 0 : index
    %c32_123 = arith.constant 32 : index
    %126 = vector.load %arg17[%c0_122, %c32_123] : memref<256x36xbf16, #tpu.memory_space<vmem>>, vector<256x4xbf16>
    tpu.vector_store %arg17[%c0_122, %c32_123], %125 {strides = array<i32>} : memref<256x36xbf16, #tpu.memory_space<vmem>>, vector<256x4xbf16>,
    %c0_124 = arith.constant 0 : index
    %c0_125 = arith.constant 0 : index
    %127 = vector.load %arg17[%c0_124, %c0_125] : memref<256x36xbf16, #tpu.memory_space<vmem>>, vector<256x36xbf16>
    %c0_126 = arith.constant 0 : index
    %c0_127 = arith.constant 0 : index
    %128 = vector.load %arg7[%c0_126, %c0_127] : memref<36x4xbf16, #tpu.memory_space<vmem>>, vector<36x4xbf16>
    %cst_128 = arith.constant dense<0.000000e+00> : vector<256x4xf32>
    %129 = tpu.matmul %127, %128, %cst_128 {dimension_numbers = #tpu.dot_dimension_numbers<[1], [0], [0], [1], [0, 0, 1, 1], [], []>} : vector<256x36xbf16>, vector<36x4xbf16>, vector<256x4xf32> -> vector<256x4xf32>
    %130 = vector.broadcast %90 : vector<1x4xf32> to vector<256x4xf32>
    %131 = arith.addf %129, %130 : vector<256x4xf32>
    %c0_129 = arith.constant 0 : index
    %c0_130 = arith.constant 0 : index
    %132 = vector.load %arg9[%c0_129, %c0_130] : memref<1x4xf32, #tpu.memory_space<vmem>>, vector<1x4xf32>
    %c0_131 = arith.constant 0 : index
    %c0_132 = arith.constant 0 : index
    %133 = vector.load %arg10[%c0_131, %c0_132] : memref<1x4xf32, #tpu.memory_space<vmem>>, vector<1x4xf32>
    %cst_133 = arith.constant dense<0.000000e+00> : vector<4xf32>
    %134 = vector.multi_reduction <add>, %131, %cst_133 [0] : vector<256x4xf32> to vector<4xf32>
    %135 = vector.shape_cast %134 : vector<4xf32> to vector<1x4xf32>
    %136 = arith.mulf %131, %131 : vector<256x4xf32>
    %cst_134 = arith.constant dense<0.000000e+00> : vector<4xf32>
    %137 = vector.multi_reduction <add>, %136, %cst_134 [0] : vector<256x4xf32> to vector<4xf32>
    %138 = vector.shape_cast %137 : vector<4xf32> to vector<1x4xf32>
    %c0_135 = arith.constant 0 : index
    %c0_136 = arith.constant 0 : index
    %139 = vector.load %arg11[%c0_135, %c0_136] : memref<4x4xf32, #tpu.memory_space<vmem>>, vector<4x4xf32>
    %cst_137 = arith.constant dense<0.000000e+00> : vector<1x4xf32>
    %140 = tpu.matmul %135, %139, %cst_137 {dimension_numbers = #tpu.dot_dimension_numbers<[1], [0], [0], [1], [0, 0, 1, 1], [], []>} : vector<1x4xf32>, vector<4x4xf32>, vector<1x4xf32> -> vector<1x4xf32>
    %cst_138 = arith.constant 2.560000e+02 : f32
    %141 = vector.broadcast %cst_138 : f32 to vector<1x4xf32>
    %142 = arith.divf %140, %141 : vector<1x4xf32>
    %c0_139 = arith.constant 0 : index
    %c0_140 = arith.constant 0 : index
    %143 = vector.load %arg11[%c0_139, %c0_140] : memref<4x4xf32, #tpu.memory_space<vmem>>, vector<4x4xf32>
    %cst_141 = arith.constant dense<0.000000e+00> : vector<1x4xf32>
    %144 = tpu.matmul %138, %143, %cst_141 {dimension_numbers = #tpu.dot_dimension_numbers<[1], [0], [0], [1], [0, 0, 1, 1], [], []>} : vector<1x4xf32>, vector<4x4xf32>, vector<1x4xf32> -> vector<1x4xf32>
    %cst_142 = arith.constant 2.560000e+02 : f32
    %145 = vector.broadcast %cst_142 : f32 to vector<1x4xf32>
    %146 = arith.divf %144, %145 : vector<1x4xf32>
    %147 = arith.mulf %142, %142 : vector<1x4xf32>
    %148 = arith.subf %146, %147 : vector<1x4xf32>
    %cst_143 = arith.constant 0.000000e+00 : f32
    %149 = vector.broadcast %cst_143 : f32 to vector<1x4xf32>
    %150 = arith.maximumf %148, %149 : vector<1x4xf32>
    %c0_144 = arith.constant 0 : index
    %c0_145 = arith.constant 0 : index
    %151 = vector.load %arg12[%c0_144, %c0_145] : memref<4x4xf32, #tpu.memory_space<vmem>>, vector<4x4xf32>
    %cst_146 = arith.constant dense<0.000000e+00> : vector<1x4xf32>
    %152 = tpu.matmul %142, %151, %cst_146 {dimension_numbers = #tpu.dot_dimension_numbers<[1], [0], [0], [1], [0, 0, 1, 1], [], []>} : vector<1x4xf32>, vector<4x4xf32>, vector<1x4xf32> -> vector<1x4xf32>
    %c0_147 = arith.constant 0 : index
    %c0_148 = arith.constant 0 : index
    %153 = vector.load %arg12[%c0_147, %c0_148] : memref<4x4xf32, #tpu.memory_space<vmem>>, vector<4x4xf32>
    %cst_149 = arith.constant dense<0.000000e+00> : vector<1x4xf32>
    %154 = tpu.matmul %150, %153, %cst_149 {dimension_numbers = #tpu.dot_dimension_numbers<[1], [0], [0], [1], [0, 0, 1, 1], [], []>} : vector<1x4xf32>, vector<4x4xf32>, vector<1x4xf32> -> vector<1x4xf32>
    %155 = vector.broadcast %152 : vector<1x4xf32> to vector<256x4xf32>
    %156 = arith.subf %131, %155 : vector<256x4xf32>
    %cst_150 = arith.constant 9.99999974E-6 : f32
    %157 = vector.broadcast %cst_150 : f32 to vector<1x4xf32>
    %158 = arith.addf %154, %157 : vector<1x4xf32>
    %159 = math.rsqrt %158 : vector<1x4xf32>
    %160 = vector.broadcast %159 : vector<1x4xf32> to vector<256x4xf32>
    %161 = arith.mulf %156, %160 : vector<256x4xf32>
    %162 = vector.broadcast %132 : vector<1x4xf32> to vector<256x4xf32>
    %163 = arith.mulf %161, %162 : vector<256x4xf32>
    %164 = vector.broadcast %133 : vector<1x4xf32> to vector<256x4xf32>
    %165 = arith.addf %163, %164 : vector<256x4xf32>
    %cst_151 = arith.constant 0.000000e+00 : f32
    %166 = vector.broadcast %cst_151 : f32 to vector<256x4xf32>
    %167 = arith.maximumf %165, %166 : vector<256x4xf32>
    %c0_152 = arith.constant 0 : index
    %c0_153 = arith.constant 0 : index
    %c0_154 = arith.constant 0 : index
    %168 = vector.load %arg13[%c0_152, %c0_153, %c0_154] : memref<1x256x4xf32, #tpu.memory_space<vmem>>, vector<1x256x4xf32>
    %169 = vector.shape_cast %168 : vector<1x256x4xf32> to vector<256x4xf32>
    %170 = vector.shape_cast %167 : vector<256x4xf32> to vector<1x256x4xf32>
    tpu.vector_store %arg13[%c0_152, %c0_153, %c0_154], %170 {strides = array<i32>} : memref<1x256x4xf32, #tpu.memory_space<vmem>>, vector<1x256x4xf32>,
    return
  }
  func.func @transform_0(%arg0: i32) -> (i32, i32, i32, i32) {
    %c0_i32 = arith.constant 0 : i32
    %c0_i32_0 = arith.constant 0 : i32
    %c0_i32_1 = arith.constant 0 : i32
    %c0_i32_2 = arith.constant 0 : i32
    return %arg0, %c0_i32, %c0_i32_0, %c0_i32_1 : i32, i32, i32, i32
  }
  func.func @transform_1(%arg0: i32) -> (i32, i32, i32, i32) {
    %c0_i32 = arith.constant 0 : i32
    %c0_i32_0 = arith.constant 0 : i32
    %c0_i32_1 = arith.constant 0 : i32
    %c0_i32_2 = arith.constant 0 : i32
    return %arg0, %c0_i32, %c0_i32_0, %c0_i32_1 : i32, i32, i32, i32
  }
  func.func @transform_2(%arg0: i32) -> (i32, i32) {
    %c0_i32 = arith.constant 0 : i32
    %c0_i32_0 = arith.constant 0 : i32
    %c0_i32_1 = arith.constant 0 : i32
    return %c0_i32, %c0_i32_0 : i32, i32
  }
  func.func @transform_3(%arg0: i32) -> (i32, i32) {
    %c0_i32 = arith.constant 0 : i32
    %c0_i32_0 = arith.constant 0 : i32
    %c0_i32_1 = arith.constant 0 : i32
    return %c0_i32, %c0_i32_0 : i32, i32
  }
  func.func @transform_4(%arg0: i32) -> (i32, i32) {
    %c0_i32 = arith.constant 0 : i32
    %c0_i32_0 = arith.constant 0 : i32
    %c0_i32_1 = arith.constant 0 : i32
    return %c0_i32, %c0_i32_0 : i32, i32
  }
  func.func @transform_5(%arg0: i32) -> (i32, i32) {
    %c0_i32 = arith.constant 0 : i32
    %c0_i32_0 = arith.constant 0 : i32
    %c0_i32_1 = arith.constant 0 : i32
    return %c0_i32, %c0_i32_0 : i32, i32
  }
  func.func @transform_6(%arg0: i32) -> (i32, i32) {
    %c0_i32 = arith.constant 0 : i32
    %c0_i32_0 = arith.constant 0 : i32
    %c0_i32_1 = arith.constant 0 : i32
    return %c0_i32, %c0_i32_0 : i32, i32
  }
  func.func @transform_7(%arg0: i32) -> (i32, i32) {
    %c0_i32 = arith.constant 0 : i32
    %c0_i32_0 = arith.constant 0 : i32
    %c0_i32_1 = arith.constant 0 : i32
    return %c0_i32, %c0_i32_0 : i32, i32
  }
  func.func @transform_8(%arg0: i32) -> (i32, i32) {
    %c0_i32 = arith.constant 0 : i32
    %c0_i32_0 = arith.constant 0 : i32
    %c0_i32_1 = arith.constant 0 : i32
    return %c0_i32, %c0_i32_0 : i32, i32
  }
  func.func @transform_9(%arg0: i32) -> (i32, i32) {
    %c0_i32 = arith.constant 0 : i32
    %c0_i32_0 = arith.constant 0 : i32
    %c0_i32_1 = arith.constant 0 : i32
    return %c0_i32, %c0_i32_0 : i32, i32
  }
  func.func @transform_10(%arg0: i32) -> (i32, i32) {
    %c0_i32 = arith.constant 0 : i32
    %c0_i32_0 = arith.constant 0 : i32
    %c0_i32_1 = arith.constant 0 : i32
    return %c0_i32, %c0_i32_0 : i32, i32
  }
  func.func @transform_11(%arg0: i32) -> (i32, i32) {
    %c0_i32 = arith.constant 0 : i32
    %c0_i32_0 = arith.constant 0 : i32
    %c0_i32_1 = arith.constant 0 : i32
    return %c0_i32, %c0_i32_0 : i32, i32
  }
  func.func @transform_12(%arg0: i32) -> (i32, i32, i32) {
    %c0_i32 = arith.constant 0 : i32
    %c0_i32_0 = arith.constant 0 : i32
    %c0_i32_1 = arith.constant 0 : i32
    return %arg0, %c0_i32, %c0_i32_0 : i32, i32, i32
  }
}

</mosaic_0001>

<llo_original>
// kernel: tile.6
$region0: #{tile.6}
  #allocation0 [shape = 's32[1]{0}', space=sflag, size = 0x4, scoped, tag = 'scoped memory for tile.6']
  %s0 = inlined_call_operand.vmem [shape: f32[4], index: 0, kind: input, shape index: {}]
  %s1 = inlined_call_operand.vmem [shape: f32[4,4], index: 1, kind: output, shape index: {}]
  // Predicated region
  $region2: #{tile.6} parent=0 // pred_check
    _
  $region3: #{tile.6} parent=0 // pred_check_branch
    %3 = sbr.rel (0) target = $region5
  $region4: #{tile.6} parent=0 // pred_region
    _
  $region5: #{tile.6} parent=0 // pred_fallthru
    _
  %v4 = vld [vmem:[%s0] ss:$0 sm:$0xff]
  %5 = vst [vmem:[%s1] sm:$0xf] %v4

// kernel: tile.7
$region0: #{tile.7}
  %s0 = inlined_call_operand.vmem [shape: f32[4,4], index: 0, kind: input, shape index: {}]
  %s1 = inlined_call_operand.vmem [shape: f32[1,16], index: 1, kind: output, shape index: {}]
  $region1: #{tile.7} parent=0
    #allocation0 [shape = 'u8[4096]{0}', space=vmem, size = 0x1000, scoped, tag = 'scoped mem for output reshape']
    #allocation1 [shape = 'u8[4096]{0}', space=vmem, size = 0x1000, scoped, tag = 'scoped mem for input reshape']
    %s3 = sshllo.u32 0, 4
    %v4 = vld [vmem:[%s0] sm:%s3]
    %5 = vst [vmem:[#allocation1] sm:%s3] %v4
    %v6 = vld [vmem:[#allocation1] sm:$0x1]
    %vm7 = vcmask 31744
    %8 = vst.msk [vmem:[#allocation0] sm:$0x1] %vm7, %v6
    %s9 = scalar_lea.vmem [#allocation1], 3
    %v10 = vld [vmem:[%s9] sm:$0x1]
    %11 = vrot.lane.b32.xlu0 %v10, 12
    %v12 = vpop.permute.xlu0 %11
    %vm13 = vcmask 130144
    %14 = vst.msk [vmem:[#allocation0] sm:$0x1] %vm13, %v12
    %s15 = scalar_lea.vmem [#allocation1], 2
    %v16 = vld [vmem:[%s15] sm:$0x1]
    %17 = vrot.lane.b32.xlu0 %v16, 8
    %v18 = vpop.permute.xlu0 %17
    %vm19 = vcmask 97344
    %20 = vst.msk [vmem:[#allocation0] sm:$0x1] %vm19, %v18
    %s21 = scalar_lea.vmem [#allocation1], 1
    %v22 = vld [vmem:[%s21] sm:$0x1]
    %23 = vrot.lane.b32.xlu0 %v22, 4
    %v24 = vpop.permute.xlu0 %23
    %vm25 = vcmask 64544
    %26 = vst.msk [vmem:[#allocation0] sm:$0x1] %vm25, %v24
    %s28 = sshllo.u32 0, 1
    %v30 = vld [vmem:[#allocation0] sm:%s28]
    %s31 = sshllo.u32 0, 1
    %32 = vst [vmem:[%s1] sm:%s31] %v30

// kernel: _lambda_.2
$region0: #{_lambda_.2}
  #allocation0 [shape = 'u32[]', space=smem, size = 0x4, offset = 0x4, fixed_abs, tag = 'smem constant byte address 0x4 - core index']
  #allocation1 [shape = 'u32[144,128]{1,0:T(1,128)}', space=vmem, size = 0x12000, scoped, tag = 'internal scratch']
  %s0 = inlined_call_operand.vmem [shape: f32[128,8], index: 0, kind: input, shape index: {}]
  %s1 = inlined_call_operand.vmem [shape: bf16[8,16], index: 1, kind: input, shape index: {}]
  %s2 = inlined_call_operand.vmem [shape: f32[1,16], index: 2, kind: input, shape index: {}]
  %s3 = inlined_call_operand.vmem [shape: bf16[16,2,8,8], index: 3, kind: output, shape index: {}]
  %s4 = sld [smem:[#allocation0]]
  $region22: #{_lambda_.2} parent=0
    _
  %s6 = ssub.s32 1, %s4
  %s7 = scalar_select 0, %s6, %s4
  // Predicated region
  $region2: #{_lambda_.2} parent=0 // pred_check
    _
  $region3: #{_lambda_.2} parent=0 // pred_check_branch
    %9 = sbr.rel (0) target = $region5
  $region4: #{_lambda_.2} parent=0 // pred_region
    _
  $region5: #{_lambda_.2} parent=0 // pred_fallthru
    _
  // Predicated region
  $region6: #{_lambda_.2} parent=0 // pred_check
    _
  $region7: #{_lambda_.2} parent=0 // pred_check_branch
    %11 = sbr.rel (0) target = $region9
  $region8: #{_lambda_.2} parent=0 // pred_region
    _
  $region9: #{_lambda_.2} parent=0 // pred_fallthru
    _
  // Predicated region
  $region10: #{_lambda_.2} parent=0 // pred_check
    _
  $region11: #{_lambda_.2} parent=0 // pred_check_branch
    %13 = sbr.rel (0) target = $region13
  $region12: #{_lambda_.2} parent=0 // pred_region
    _
  $region13: #{_lambda_.2} parent=0 // pred_fallthru
    _
  %v15 = vld [vmem:[%s0] sm:$0xff]
  %v16 = vld [vmem:[%s0 + $0x8] sm:$0xff]
  %v17 = vld [vmem:[%s0 + $0x10] sm:$0xff]
  %v18 = vld [vmem:[%s0 + $0x18] sm:$0xff]
  %v19 = vld [vmem:[%s0 + $0x20] sm:$0xff]
  %v20 = vld [vmem:[%s0 + $0x28] sm:$0xff]
  %v21 = vld [vmem:[%s0 + $0x30] sm:$0xff]
  %v22 = vld [vmem:[%s0 + $0x38] sm:$0xff]
  %v23 = vld [vmem:[%s0 + $0x40] sm:$0xff]
  %v24 = vld [vmem:[%s0 + $0x48] sm:$0xff]
  %v25 = vld [vmem:[%s0 + $0x50] sm:$0xff]
  %v26 = vld [vmem:[%s0 + $0x58] sm:$0xff]
  %v27 = vld [vmem:[%s0 + $0x60] sm:$0xff]
  %v28 = vld [vmem:[%s0 + $0x68] sm:$0xff]
  %v29 = vld [vmem:[%s0 + $0x70] sm:$0xff]
  %v30 = vld [vmem:[%s0 + $0x78] sm:$0xff]
  %v31 = vpack.c.bf16 %v16, %v15
  %v32 = vpack.c.bf16 %v18, %v17
  %v33 = vpack.c.bf16 %v20, %v19
  %v34 = vpack.c.bf16 %v22, %v21
  %v35 = vpack.c.bf16 %v24, %v23
  %v36 = vpack.c.bf16 %v26, %v25
  %v37 = vpack.c.bf16 %v28, %v27
  %v38 = vpack.c.bf16 %v30, %v29
  %v39 = vld [vmem:[%s1] sm:$0xf]
  %v40 = vld [vmem:[%s2] sm:$0x1]
  %v42 = vlaneseq
  %v43 = vshrl.u32 %v42, 7
  %v44 = vsub.s32 0, %v43
  %v45 = vrot.slane %v40, %v44
  %vm47 = vcmask 64512
  %v49 = vsel %vm47, %v31, 0
  %v52 = vsel %vm47, %v32, 0
  %v55 = vsel %vm47, %v33, 0
  %v58 = vsel %vm47, %v34, 0
  %v61 = vsel %vm47, %v35, 0
  %v64 = vsel %vm47, %v36, 0
  %v67 = vsel %vm47, %v37, 0
  %v70 = vsel %vm47, %v38, 0
  %vm72 = vcmask 1043456
  %v74 = vsel %vm72, %v39, 0
  %76 = vmatprep.subr.bf16.mxu0 0
  %77 = vmatpush1.bf16.msra.mxu0 %v74
  %78 = vmatprep.subr.bf16.mxu0 0
  %79 = vmatpush1.bf16.msra.mxu0 0
  %80 = vmatprep.subr.bf16.mxu0 0
  %81 = vmatpush1.bf16.msra.mxu0 0
  %82 = vmatprep.subr.bf16.mxu0 0
  %83 = vmatpush1.bf16.msra.mxu0 0
  %84 = vmatprep.subr.bf16.mxu0 0
  %85 = vmatpush1.bf16.msra.mxu0 0
  %86 = vmatprep.subr.bf16.mxu0 0
  %87 = vmatpush1.bf16.msra.mxu0 0
  %88 = vmatprep.subr.bf16.mxu0 0
  %89 = vmatpush1.bf16.msra.mxu0 0
  %90 = vmatprep.subr.bf16.mxu0 0
  %91 = vmatpush1.bf16.msra.mxu0 0
  %92 = vmatprep.subr.bf16.mxu0 0
  %93 = vmatpush1.bf16.msra.mxu0 0
  %94 = vmatprep.subr.bf16.mxu0 0
  %95 = vmatpush1.bf16.msra.mxu0 0
  %96 = vmatprep.subr.bf16.mxu0 0
  %97 = vmatpush1.bf16.msra.mxu0 0
  %98 = vmatprep.subr.bf16.mxu0 0
  %99 = vmatpush1.bf16.msra.mxu0 0
  %100 = vmatprep.subr.bf16.mxu0 0
  %101 = vmatpush1.bf16.msra.mxu0 0
  %102 = vmatprep.subr.bf16.mxu0 0
  %103 = vmatpush1.bf16.msra.mxu0 0
  %104 = vmatprep.subr.bf16.mxu0 0
  %105 = vmatpush1.bf16.msra.mxu0 0
  %106 = vmatprep.subr.bf16.mxu0 0
  %107 = vmatpush1.bf16.msra.mxu0 0
  %108 = vmatprep.mubr.bf16.mxu0 0
  %109 = vmatmul.mubr.bf16.gmra.mrb[0].mxu0 %v49
  %v110 = vpop.f32.mrb[0].mxu0
  %v111 = vadd.f32 %v45, %v110
  %v112 = vpop.f32.mrb[0].mxu0
  %v113 = vpop.f32.mrb[0].mxu0
  %v114 = vadd.f32 %v45, %v113
  %v115 = vpop.f32.mrb[0].mxu0
  %116 = vmatprep.mubr.bf16.mxu0 0
  %117 = vmatmul.mubr.bf16.gmra.mrb[0].mxu0 %v52
  %v118 = vpop.f32.mrb[0].mxu0
  %v119 = vadd.f32 %v45, %v118
  %v120 = vpop.f32.mrb[0].mxu0
  %v121 = vpop.f32.mrb[0].mxu0
  %v122 = vadd.f32 %v45, %v121
  %v123 = vpop.f32.mrb[0].mxu0
  %124 = vmatprep.mubr.bf16.mxu0 0
  %125 = vmatmul.mubr.bf16.gmra.mrb[0].mxu0 %v55
  %v126 = vpop.f32.mrb[0].mxu0
  %v127 = vadd.f32 %v45, %v126
  %v128 = vpop.f32.mrb[0].mxu0
  %v129 = vpop.f32.mrb[0].mxu0
  %v130 = vadd.f32 %v45, %v129
  %v131 = vpop.f32.mrb[0].mxu0
  %132 = vmatprep.mubr.bf16.mxu0 0
  %133 = vmatmul.mubr.bf16.gmra.mrb[0].mxu0 %v58
  %v134 = vpop.f32.mrb[0].mxu0
  %v135 = vadd.f32 %v45, %v134
  %v136 = vpop.f32.mrb[0].mxu0
  %v137 = vpop.f32.mrb[0].mxu0
  %v138 = vadd.f32 %v45, %v137
  %v139 = vpop.f32.mrb[0].mxu0
  %140 = vmatprep.mubr.bf16.mxu0 0
  %141 = vmatmul.mubr.bf16.gmra.mrb[0].mxu0 %v61
  %v142 = vpop.f32.mrb[0].mxu0
  %v143 = vadd.f32 %v45, %v142
  %v144 = vpop.f32.mrb[0].mxu0
  %v145 = vpop.f32.mrb[0].mxu0
  %v146 = vadd.f32 %v45, %v145
  %v147 = vpop.f32.mrb[0].mxu0
  %148 = vmatprep.mubr.bf16.mxu0 0
  %149 = vmatmul.mubr.bf16.gmra.mrb[0].mxu0 %v64
  %v150 = vpop.f32.mrb[0].mxu0
  %v151 = vadd.f32 %v45, %v150
  %v152 = vpop.f32.mrb[0].mxu0
  %v153 = vpop.f32.mrb[0].mxu0
  %v154 = vadd.f32 %v45, %v153
  %v155 = vpop.f32.mrb[0].mxu0
  %156 = vmatprep.mubr.bf16.mxu0 0
  %157 = vmatmul.mubr.bf16.gmra.mrb[0].mxu0 %v67
  %v158 = vpop.f32.mrb[0].mxu0
  %v159 = vadd.f32 %v45, %v158
  %v160 = vpop.f32.mrb[0].mxu0
  %v161 = vpop.f32.mrb[0].mxu0
  %v162 = vadd.f32 %v45, %v161
  %v163 = vpop.f32.mrb[0].mxu0
  %164 = vmatprep.mubr.bf16.mxu0 0
  %165 = vmatmul.mubr.bf16.gmra.mrb[0].mxu0 %v70
  %v166 = vpop.f32.mrb[0].mxu0
  %v167 = vadd.f32 %v45, %v166
  %v168 = vpop.f32.mrb[0].mxu0
  %v169 = vpop.f32.mrb[0].mxu0
  %v170 = vadd.f32 %v45, %v169
  %v171 = vpop.f32.mrb[0].mxu0
  %172 = vdwg.mxu0
  %v173 = vpack.c.bf16 %v111, %v111
  %v174 = vpack.c.bf16 %v114, %v114
  %v175 = vpack.c.bf16 %v119, %v119
  %v176 = vpack.c.bf16 %v122, %v122
  %v177 = vpack.c.bf16 %v127, %v127
  %v178 = vpack.c.bf16 %v130, %v130
  %v179 = vpack.c.bf16 %v135, %v135
  %v180 = vpack.c.bf16 %v138, %v138
  %v181 = vpack.c.bf16 %v143, %v143
  %v182 = vpack.c.bf16 %v146, %v146
  %v183 = vpack.c.bf16 %v151, %v151
  %v184 = vpack.c.bf16 %v154, %v154
  %v185 = vpack.c.bf16 %v159, %v159
  %v186 = vpack.c.bf16 %v162, %v162
  %v187 = vpack.c.bf16 %v167, %v167
  %v188 = vpack.c.bf16 %v170, %v170
  %vm189 = vcmask 60416
  %190 = vst.msk [vmem:[%s3] sm:$0xf] %vm189, %v173
  %191 = vst.msk [vmem:[%s3 + $0x8] sm:$0xf] %vm189, %v174
  %192 = vst.msk [vmem:[%s3 + $0x10] sm:$0xf] %vm189, %v175
  %193 = vst.msk [vmem:[%s3 + $0x18] sm:$0xf] %vm189, %v176
  %194 = vst.msk [vmem:[%s3 + $0x20] sm:$0xf] %vm189, %v177
  %195 = vst.msk [vmem:[%s3 + $0x28] sm:$0xf] %vm189, %v178
  %196 = vst.msk [vmem:[%s3 + $0x30] sm:$0xf] %vm189, %v179
  %197 = vst.msk [vmem:[%s3 + $0x38] sm:$0xf] %vm189, %v180
  %198 = vst.msk [vmem:[%s3 + $0x40] sm:$0xf] %vm189, %v181
  %199 = vst.msk [vmem:[%s3 + $0x48] sm:$0xf] %vm189, %v182
  %200 = vst.msk [vmem:[%s3 + $0x50] sm:$0xf] %vm189, %v183
  %201 = vst.msk [vmem:[%s3 + $0x58] sm:$0xf] %vm189, %v184
  %202 = vst.msk [vmem:[%s3 + $0x60] sm:$0xf] %vm189, %v185
  %203 = vst.msk [vmem:[%s3 + $0x68] sm:$0xf] %vm189, %v186
  %204 = vst.msk [vmem:[%s3 + $0x70] sm:$0xf] %vm189, %v187
  %205 = vst.msk [vmem:[%s3 + $0x78] sm:$0xf] %vm189, %v188
  %v222 = vunpack.c.l.b16 %v173
  %v223 = vunpack.c.l.b16 %v174
  %v224 = vunpack.c.l.b16 %v175
  %v225 = vunpack.c.l.b16 %v176
  %v226 = vunpack.c.l.b16 %v177
  %v227 = vunpack.c.l.b16 %v178
  %v228 = vunpack.c.l.b16 %v179
  %v229 = vunpack.c.l.b16 %v180
  %v230 = vunpack.c.l.b16 %v181
  %v231 = vunpack.c.l.b16 %v182
  %v232 = vunpack.c.l.b16 %v183
  %v233 = vunpack.c.l.b16 %v184
  %v234 = vunpack.c.l.b16 %v185
  %v235 = vunpack.c.l.b16 %v186
  %v236 = vunpack.c.l.b16 %v187
  %v237 = vunpack.c.l.b16 %v188
  %v238 = vpack.c.b16 %v222, %v222
  %v239 = vpack.c.b16 %v223, %v223
  %v240 = vpack.c.b16 %v224, %v224
  %v241 = vpack.c.b16 %v225, %v225
  %v242 = vpack.c.b16 %v226, %v226
  %v243 = vpack.c.b16 %v227, %v227
  %v244 = vpack.c.b16 %v228, %v228
  %v245 = vpack.c.b16 %v229, %v229
  %v246 = vpack.c.b16 %v230, %v230
  %v247 = vpack.c.b16 %v231, %v231
  %v248 = vpack.c.b16 %v232, %v232
  %v249 = vpack.c.b16 %v233, %v233
  %v250 = vpack.c.b16 %v234, %v234
  %v251 = vpack.c.b16 %v235, %v235
  %v252 = vpack.c.b16 %v236, %v236
  %v253 = vpack.c.b16 %v237, %v237
  %254 = vrot.lane.b32.xlu0 %v238, 120
  %v255 = vpop.permute.xlu0 %254
  %256 = vrot.lane.b32.xlu0 %v239, 120
  %v257 = vpop.permute.xlu0 %256
  %258 = vrot.lane.b32.xlu0 %v240, 120
  %v259 = vpop.permute.xlu0 %258
  %260 = vrot.lane.b32.xlu0 %v241, 120
  %v261 = vpop.permute.xlu0 %260
  %262 = vrot.lane.b32.xlu0 %v242, 120
  %v263 = vpop.permute.xlu0 %262
  %264 = vrot.lane.b32.xlu0 %v243, 120
  %v265 = vpop.permute.xlu0 %264
  %266 = vrot.lane.b32.xlu0 %v244, 120
  %v267 = vpop.permute.xlu0 %266
  %268 = vrot.lane.b32.xlu0 %v245, 120
  %v269 = vpop.permute.xlu0 %268
  %270 = vrot.lane.b32.xlu0 %v246, 120
  %v271 = vpop.permute.xlu0 %270
  %272 = vrot.lane.b32.xlu0 %v247, 120
  %v273 = vpop.permute.xlu0 %272
  %274 = vrot.lane.b32.xlu0 %v248, 120
  %v275 = vpop.permute.xlu0 %274
  %276 = vrot.lane.b32.xlu0 %v249, 120
  %v277 = vpop.permute.xlu0 %276
  %278 = vrot.lane.b32.xlu0 %v250, 120
  %v279 = vpop.permute.xlu0 %278
  %280 = vrot.lane.b32.xlu0 %v251, 120
  %v281 = vpop.permute.xlu0 %280
  %282 = vrot.lane.b32.xlu0 %v252, 120
  %v283 = vpop.permute.xlu0 %282
  %284 = vrot.lane.b32.xlu0 %v253, 120
  %v285 = vpop.permute.xlu0 %284
  %s302 = scalar_lea.vmem %s3, 4
  %303 = vst.msk [vmem:[%s302] sm:$0xf] %vm189, %v255
  %304 = vst.msk [vmem:[%s302 + $0x8] sm:$0xf] %vm189, %v257
  %305 = vst.msk [vmem:[%s302 + $0x10] sm:$0xf] %vm189, %v259
  %306 = vst.msk [vmem:[%s302 + $0x18] sm:$0xf] %vm189, %v261
  %307 = vst.msk [vmem:[%s302 + $0x20] sm:$0xf] %vm189, %v263
  %308 = vst.msk [vmem:[%s302 + $0x28] sm:$0xf] %vm189, %v265
  %309 = vst.msk [vmem:[%s302 + $0x30] sm:$0xf] %vm189, %v267
  %310 = vst.msk [vmem:[%s302 + $0x38] sm:$0xf] %vm189, %v269
  %311 = vst.msk [vmem:[%s302 + $0x40] sm:$0xf] %vm189, %v271
  %312 = vst.msk [vmem:[%s302 + $0x48] sm:$0xf] %vm189, %v273
  %313 = vst.msk [vmem:[%s302 + $0x50] sm:$0xf] %vm189, %v275
  %314 = vst.msk [vmem:[%s302 + $0x58] sm:$0xf] %vm189, %v277
  %315 = vst.msk [vmem:[%s302 + $0x60] sm:$0xf] %vm189, %v279
  %316 = vst.msk [vmem:[%s302 + $0x68] sm:$0xf] %vm189, %v281
  %317 = vst.msk [vmem:[%s302 + $0x70] sm:$0xf] %vm189, %v283
  %318 = vst.msk [vmem:[%s302 + $0x78] sm:$0xf] %vm189, %v285
  // Predicated region
  $region14: #{_lambda_.2} parent=0 // pred_check
    _
  $region15: #{_lambda_.2} parent=0 // pred_check_branch
    %320 = sbr.rel (0) target = $region17
  $region16: #{_lambda_.2} parent=0 // pred_region
    _
  $region17: #{_lambda_.2} parent=0 // pred_fallthru
    _
  // Predicated region
  $region18: #{_lambda_.2} parent=0 // pred_check
    _
  $region19: #{_lambda_.2} parent=0 // pred_check_branch
    %322 = sbr.rel (0) target = $region21
  $region20: #{_lambda_.2} parent=0 // pred_region
    _
  $region21: #{_lambda_.2} parent=0 // pred_fallthru
    _

// kernel: _lambda_.3
$region0: #{_lambda_.3}
  #allocation0 [shape = 'u32[]', space=smem, size = 0x4, offset = 0x4, fixed_abs, tag = 'smem constant byte address 0x4 - core index']
  #allocation1 [shape = 'u32[144,128]{1,0:T(1,128)}', space=vmem, size = 0x12000, scoped, tag = 'internal scratch']
  #allocation2 [shape = 'f32[18,18,8]{2,1,0:T(8,128)}', space=vmem, size = 0x36000, scoped, tag = 'scratch operand']
  #allocation3 [shape = 'f32[18,18,4]{2,1,0:T(8,128)}', space=vmem, size = 0x36000, scoped, tag = 'scratch operand']
  #allocation4 [shape = 'bf16[256,72]{1,0:T(16,128)(2,1)}', space=vmem, size = 0x10000, scoped, tag = 'scratch operand']
  #allocation5 [shape = 'bf16[256,36]{1,0:T(16,128)(2,1)}', space=vmem, size = 0x10000, scoped, tag = 'scratch operand']
  %s0 = inlined_call_operand.vmem [shape: f32[2,16,16,4], index: 0, kind: input, shape index: {}]
  %s1 = inlined_call_operand.vmem [shape: bf16[2,16,16,4], index: 1, kind: input, shape index: {}]
  %s2 = inlined_call_operand.vmem [shape: bf16[72,4], index: 2, kind: input, shape index: {}]
  %s3 = inlined_call_operand.vmem [shape: f32[1,4], index: 3, kind: input, shape index: {}]
  %s4 = inlined_call_operand.vmem [shape: f32[1,4], index: 4, kind: input, shape index: {}, may-alias: {4,8}]
  %s5 = inlined_call_operand.vmem [shape: f32[1,4], index: 5, kind: input, shape index: {}, may-alias: {5,9}]
  %s6 = inlined_call_operand.vmem [shape: bf16[36,4], index: 6, kind: input, shape index: {}]
  %s7 = inlined_call_operand.vmem [shape: f32[1,4], index: 7, kind: input, shape index: {}]
  %s8 = inlined_call_operand.vmem [shape: f32[1,4], index: 8, kind: input, shape index: {}, may-alias: {4,8}]
  %s9 = inlined_call_operand.vmem [shape: f32[1,4], index: 9, kind: input, shape index: {}, may-alias: {5,9}]
  %s10 = inlined_call_operand.vmem [shape: f32[4,4], index: 10, kind: input, shape index: {}]
  %s11 = inlined_call_operand.vmem [shape: f32[4,4], index: 11, kind: input, shape index: {}]
  %s12 = inlined_call_operand.vmem [shape: f32[2,256,4], index: 12, kind: output, shape index: {}]
  %s13 = sld [smem:[#allocation0]]
  $region85: #{_lambda_.3} parent=0
    _
  %s15 = ssub.s32 1, %s13
  %s16 = scalar_select 0, %s15, %s13
  loop: start=0, step=1, limit=4
  $region2: #{_lambda_.3} parent=0 // loop_pre_header
    _
  $region3: #{_lambda_.3} parent=0 // loop_header
    %s18 = sphi 0, %s22
    %p19 = scmp.ge.s32.totalorder %s18, 4
    %s28 = sphi 0, %s30
    %s31 = sphi 0, %s28
    %s32 = sphi 0, %s31
    %s48 = sphi 0, %s32
    %s54 = sphi 0, %s56
    %s57 = sphi 0, %s54
    %s58 = sphi 0, %s57
    %s74 = sphi 0, %s58
    %s78 = sphi 0, %s78
    %s80 = sphi 0, %s78
    %s81 = sphi 0, %s80
    %s95 = sphi 0, %s81
    %s99 = sphi 0, %s99
    %s101 = sphi 0, %s99
    %s102 = sphi 0, %s101
    %s116 = sphi 0, %s102
    %s120 = sphi 0, %s120
    %s122 = sphi 0, %s120
    %s123 = sphi 0, %s122
    %s137 = sphi 0, %s123
    %s141 = sphi 0, %s141
    %s143 = sphi 0, %s141
    %s144 = sphi 0, %s143
    %s158 = sphi 0, %s144
    %s162 = sphi 0, %s162
    %s164 = sphi 0, %s162
    %s165 = sphi 0, %s164
    %s179 = sphi 0, %s165
    %s183 = sphi 0, %s183
    %s185 = sphi 0, %s183
    %s186 = sphi 0, %s185
    %s200 = sphi 0, %s186
    %s204 = sphi 0, %s204
    %s206 = sphi 0, %s204
    %s207 = sphi 0, %s206
    %s221 = sphi 0, %s207
    %s225 = sphi 0, %s225
    %s227 = sphi 0, %s225
    %s228 = sphi 0, %s227
    %s242 = sphi 0, %s228
    %s246 = sphi 0, %s246
    %s248 = sphi 0, %s246
    %s249 = sphi 0, %s248
    %s263 = sphi 0, %s249
    %s267 = sphi 0, %s267
    %s269 = sphi 0, %s267
    %s270 = sphi 0, %s269
    %s284 = sphi 0, %s270
    %s290 = sphi 0, %s292
    %s293 = sphi 0, %s290
    %s294 = sphi 0, %s293
    %s310 = sphi 0, %s294
  $region4: #{_lambda_.3} parent=0 // loop_header_branch
    %21 = sbr.rel (%p19) target = $region8
  $region5: #{_lambda_.3} parent=0 // loop_body
    %s23 = ssub.s32 %s18, 1
    %s24 = ssub.s32 %s18, 2
    %s25 = sadd.s32 %s18, 1
    %s26 = ssub.s32 %s18, %s25
    %p27 = scmp.eq.s32.totalorder %s26, 0
    %s29 = sadd.s32 %s28, 1
    %s30 = scalar_select %p27, %s28, %s29
    %p33 = pneg %p27
    %p34 = scmp.eq.s32.totalorder %s18, 1
    %p35 = por %p33, %p34
    %p36 = scmp.ne.s32.totalorder %s28, %s31
    %p37 = scmp.eq.s32.totalorder %s18, 0
    %p38 = por %p36, %p37
    %p39 = scmp.ne.s32.totalorder %s28, %s31
    %p40 = scmp.eq.s32.totalorder %s23, 1
    %p41 = por %p39, %p40
    %p42 = scmp.ne.s32.totalorder %s31, %s32
    %p43 = scmp.eq.s32.totalorder %s23, 0
    %p44 = por %p42, %p43
    %p45 = scmp.ne.s32.totalorder %s31, %s32
    %p46 = scmp.eq.s32.totalorder %s24, 1
    %p47 = por %p45, %p46
    %p49 = scmp.ne.s32.totalorder %s32, %s48
    %p50 = scmp.eq.s32.totalorder %s24, 0
    %p51 = por %p49, %p50
    %s52 = ssub.s32 %s18, %s25
    %p53 = scmp.eq.s32.totalorder %s52, 0
    %s55 = sadd.s32 %s54, 1
    %s56 = scalar_select %p53, %s54, %s55
    %p59 = pneg %p53
    %p60 = scmp.eq.s32.totalorder %s18, 1
    %p61 = por %p59, %p60
    %p62 = scmp.ne.s32.totalorder %s54, %s57
    %p63 = scmp.eq.s32.totalorder %s18, 0
    %p64 = por %p62, %p63
    %p65 = scmp.ne.s32.totalorder %s54, %s57
    %p66 = scmp.eq.s32.totalorder %s23, 1
    %p67 = por %p65, %p66
    %p68 = scmp.ne.s32.totalorder %s57, %s58
    %p69 = scmp.eq.s32.totalorder %s23, 0
    %p70 = por %p68, %p69
    %p71 = scmp.ne.s32.totalorder %s57, %s58
    %p72 = scmp.eq.s32.totalorder %s24, 1
    %p73 = por %p71, %p72
    %p75 = scmp.ne.s32.totalorder %s58, %s74
    %p76 = scmp.eq.s32.totalorder %s24, 0
    %p77 = por %p75, %p76
    %s79 = sadd.s32 %s78, 1
    %p82 = scmp.eq.s32.totalorder %s18, 1
    %p83 = scmp.ne.s32.totalorder %s78, %s80
    %p84 = scmp.eq.s32.totalorder %s18, 0
    %p85 = por %p83, %p84
    %p86 = scmp.ne.s32.totalorder %s78, %s80
    %p87 = scmp.eq.s32.totalorder %s23, 1
    %p88 = por %p86, %p87
    %p89 = scmp.ne.s32.totalorder %s80, %s81
    %p90 = scmp.eq.s32.totalorder %s23, 0
    %p91 = por %p89, %p90
    %p92 = scmp.ne.s32.totalorder %s80, %s81
    %p93 = scmp.eq.s32.totalorder %s24, 1
    %p94 = por %p92, %p93
    %p96 = scmp.ne.s32.totalorder %s81, %s95
    %p97 = scmp.eq.s32.totalorder %s24, 0
    %p98 = por %p96, %p97
    %s100 = sadd.s32 %s99, 1
    %p103 = scmp.eq.s32.totalorder %s18, 1
    %p104 = scmp.ne.s32.totalorder %s99, %s101
    %p105 = scmp.eq.s32.totalorder %s18, 0
    %p106 = por %p104, %p105
    %p107 = scmp.ne.s32.totalorder %s99, %s101
    %p108 = scmp.eq.s32.totalorder %s23, 1
    %p109 = por %p107, %p108
    %p110 = scmp.ne.s32.totalorder %s101, %s102
    %p111 = scmp.eq.s32.totalorder %s23, 0
    %p112 = por %p110, %p111
    %p113 = scmp.ne.s32.totalorder %s101, %s102
    %p114 = scmp.eq.s32.totalorder %s24, 1
    %p115 = por %p113, %p114
    %p117 = scmp.ne.s32.totalorder %s102, %s116
    %p118 = scmp.eq.s32.totalorder %s24, 0
    %p119 = por %p117, %p118
    %s121 = sadd.s32 %s120, 1
    %p124 = scmp.eq.s32.totalorder %s18, 1
    %p125 = scmp.ne.s32.totalorder %s120, %s122
    %p126 = scmp.eq.s32.totalorder %s18, 0
    %p127 = por %p125, %p126
    %p128 = scmp.ne.s32.totalorder %s120, %s122
    %p129 = scmp.eq.s32.totalorder %s23, 1
    %p130 = por %p128, %p129
    %p131 = scmp.ne.s32.totalorder %s122, %s123
    %p132 = scmp.eq.s32.totalorder %s23, 0
    %p133 = por %p131, %p132
    %p134 = scmp.ne.s32.totalorder %s122, %s123
    %p135 = scmp.eq.s32.totalorder %s24, 1
    %p136 = por %p134, %p135
    %p138 = scmp.ne.s32.totalorder %s123, %s137
    %p139 = scmp.eq.s32.totalorder %s24, 0
    %p140 = por %p138, %p139
    %s142 = sadd.s32 %s141, 1
    %p145 = scmp.eq.s32.totalorder %s18, 1
    %p146 = scmp.ne.s32.totalorder %s141, %s143
    %p147 = scmp.eq.s32.totalorder %s18, 0
    %p148 = por %p146, %p147
    %p149 = scmp.ne.s32.totalorder %s141, %s143
    %p150 = scmp.eq.s32.totalorder %s23, 1
    %p151 = por %p149, %p150
    %p152 = scmp.ne.s32.totalorder %s143, %s144
    %p153 = scmp.eq.s32.totalorder %s23, 0
    %p154 = por %p152, %p153
    %p155 = scmp.ne.s32.totalorder %s143, %s144
    %p156 = scmp.eq.s32.totalorder %s24, 1
    %p157 = por %p155, %p156
    %p159 = scmp.ne.s32.totalorder %s144, %s158
    %p160 = scmp.eq.s32.totalorder %s24, 0
    %p161 = por %p159, %p160
    %s163 = sadd.s32 %s162, 1
    %p166 = scmp.eq.s32.totalorder %s18, 1
    %p167 = scmp.ne.s32.totalorder %s162, %s164
    %p168 = scmp.eq.s32.totalorder %s18, 0
    %p169 = por %p167, %p168
    %p170 = scmp.ne.s32.totalorder %s162, %s164
    %p171 = scmp.eq.s32.totalorder %s23, 1
    %p172 = por %p170, %p171
    %p173 = scmp.ne.s32.totalorder %s164, %s165
    %p174 = scmp.eq.s32.totalorder %s23, 0
    %p175 = por %p173, %p174
    %p176 = scmp.ne.s32.totalorder %s164, %s165
    %p177 = scmp.eq.s32.totalorder %s24, 1
    %p178 = por %p176, %p177
    %p180 = scmp.ne.s32.totalorder %s165, %s179
    %p181 = scmp.eq.s32.totalorder %s24, 0
    %p182 = por %p180, %p181
    %s184 = sadd.s32 %s183, 1
    %p187 = scmp.eq.s32.totalorder %s18, 1
    %p188 = scmp.ne.s32.totalorder %s183, %s185
    %p189 = scmp.eq.s32.totalorder %s18, 0
    %p190 = por %p188, %p189
    %p191 = scmp.ne.s32.totalorder %s183, %s185
    %p192 = scmp.eq.s32.totalorder %s23, 1
    %p193 = por %p191, %p192
    %p194 = scmp.ne.s32.totalorder %s185, %s186
    %p195 = scmp.eq.s32.totalorder %s23, 0
    %p196 = por %p194, %p195
    %p197 = scmp.ne.s32.totalorder %s185, %s186
    %p198 = scmp.eq.s32.totalorder %s24, 1
    %p199 = por %p197, %p198
    %p201 = scmp.ne.s32.totalorder %s186, %s200
    %p202 = scmp.eq.s32.totalorder %s24, 0
    %p203 = por %p201, %p202
    %s205 = sadd.s32 %s204, 1
    %p208 = scmp.eq.s32.totalorder %s18, 1
    %p209 = scmp.ne.s32.totalorder %s204, %s206
    %p210 = scmp.eq.s32.totalorder %s18, 0
    %p211 = por %p209, %p210
    %p212 = scmp.ne.s32.totalorder %s204, %s206
    %p213 = scmp.eq.s32.totalorder %s23, 1
    %p214 = por %p212, %p213
    %p215 = scmp.ne.s32.totalorder %s206, %s207
    %p216 = scmp.eq.s32.totalorder %s23, 0
    %p217 = por %p215, %p216
    %p218 = scmp.ne.s32.totalorder %s206, %s207
    %p219 = scmp.eq.s32.totalorder %s24, 1
    %p220 = por %p218, %p219
    %p222 = scmp.ne.s32.totalorder %s207, %s221
    %p223 = scmp.eq.s32.totalorder %s24, 0
    %p224 = por %p222, %p223
    %s226 = sadd.s32 %s225, 1
    %p229 = scmp.eq.s32.totalorder %s18, 1
    %p230 = scmp.ne.s32.totalorder %s225, %s227
    %p231 = scmp.eq.s32.totalorder %s18, 0
    %p232 = por %p230, %p231
    %p233 = scmp.ne.s32.totalorder %s225, %s227
    %p234 = scmp.eq.s32.totalorder %s23, 1
    %p235 = por %p233, %p234
    %p236 = scmp.ne.s32.totalorder %s227, %s228
    %p237 = scmp.eq.s32.totalorder %s23, 0
    %p238 = por %p236, %p237
    %p239 = scmp.ne.s32.totalorder %s227, %s228
    %p240 = scmp.eq.s32.totalorder %s24, 1
    %p241 = por %p239, %p240
    %p243 = scmp.ne.s32.totalorder %s228, %s242
    %p244 = scmp.eq.s32.totalorder %s24, 0
    %p245 = por %p243, %p244
    %s247 = sadd.s32 %s246, 1
    %p250 = scmp.eq.s32.totalorder %s18, 1
    %p251 = scmp.ne.s32.totalorder %s246, %s248
    %p252 = scmp.eq.s32.totalorder %s18, 0
    %p253 = por %p251, %p252
    %p254 = scmp.ne.s32.totalorder %s246, %s248
    %p255 = scmp.eq.s32.totalorder %s23, 1
    %p256 = por %p254, %p255
    %p257 = scmp.ne.s32.totalorder %s248, %s249
    %p258 = scmp.eq.s32.totalorder %s23, 0
    %p259 = por %p257, %p258
    %p260 = scmp.ne.s32.totalorder %s248, %s249
    %p261 = scmp.eq.s32.totalorder %s24, 1
    %p262 = por %p260, %p261
    %p264 = scmp.ne.s32.totalorder %s249, %s263
    %p265 = scmp.eq.s32.totalorder %s24, 0
    %p266 = por %p264, %p265
    %s268 = sadd.s32 %s267, 1
    %p271 = scmp.eq.s32.totalorder %s18, 1
    %p272 = scmp.ne.s32.totalorder %s267, %s269
    %p273 = scmp.eq.s32.totalorder %s18, 0
    %p274 = por %p272, %p273
    %p275 = scmp.ne.s32.totalorder %s267, %s269
    %p276 = scmp.eq.s32.totalorder %s23, 1
    %p277 = por %p275, %p276
    %p278 = scmp.ne.s32.totalorder %s269, %s270
    %p279 = scmp.eq.s32.totalorder %s23, 0
    %p280 = por %p278, %p279
    %p281 = scmp.ne.s32.totalorder %s269, %s270
    %p282 = scmp.eq.s32.totalorder %s24, 1
    %p283 = por %p281, %p282
    %p285 = scmp.ne.s32.totalorder %s270, %s284
    %p286 = scmp.eq.s32.totalorder %s24, 0
    %p287 = por %p285, %p286
    %s288 = ssub.s32 %s18, %s25
    %p289 = scmp.eq.s32.totalorder %s288, 0
    %s291 = sadd.s32 %s290, 1
    %s292 = scalar_select %p289, %s290, %s291
    %p295 = pneg %p289
    %p296 = scmp.eq.s32.totalorder %s18, 1
    %p297 = por %p295, %p296
    %p298 = scmp.ne.s32.totalorder %s290, %s293
    %p299 = scmp.eq.s32.totalorder %s18, 0
    %p300 = por %p298, %p299
    %p301 = scmp.ne.s32.totalorder %s290, %s293
    %p302 = scmp.eq.s32.totalorder %s23, 1
    %p303 = por %p301, %p302
    %p304 = scmp.ne.s32.totalorder %s293, %s294
    %p305 = scmp.eq.s32.totalorder %s23, 0
    %p306 = por %p304, %p305
    %p307 = scmp.ne.s32.totalorder %s293, %s294
    %p308 = scmp.eq.s32.totalorder %s24, 1
    %p309 = por %p307, %p308
    %p311 = scmp.ne.s32.totalorder %s294, %s310
    %p312 = scmp.eq.s32.totalorder %s24, 0
    %p313 = por %p311, %p312
    %p314 = scmp.le.s32.totalorder 1, %s18
    %p315 = scmp.lt.s32.totalorder %s18, 3
    %p316 = pnand %p314, %p315
    %p317 = pneg %p316
    // Predicated region
    $region9: #{_lambda_.3} parent=5 // pred_check
      _
    $region10: #{_lambda_.3} parent=5 // pred_check_branch
      %319 = sbr.rel (%p316) target = $region12
    $region11: #{_lambda_.3} parent=5 // pred_region
      %s320 = ssub.s32 %s18, 1
      // Predicated region
      $region13: #{_lambda_.3} parent=11 // pred_check
        %p321 = pneg %p91
      $region14: #{_lambda_.3} parent=11 // pred_check_branch
        %323 = sbr.rel (%p321) target = $region16
      $region15: #{_lambda_.3} parent=11 // pred_region
        _
      $region16: #{_lambda_.3} parent=11 // pred_fallthru
        _
      // Predicated region
      $region17: #{_lambda_.3} parent=11 // pred_check
        %p324 = pneg %p112
      $region18: #{_lambda_.3} parent=11 // pred_check_branch
        %326 = sbr.rel (%p324) target = $region20
      $region19: #{_lambda_.3} parent=11 // pred_region
        _
      $region20: #{_lambda_.3} parent=11 // pred_fallthru
        _
      // Predicated region
      $region21: #{_lambda_.3} parent=11 // pred_check
        %p327 = pneg %p133
      $region22: #{_lambda_.3} parent=11 // pred_check_branch
        %329 = sbr.rel (%p327) target = $region24
      $region23: #{_lambda_.3} parent=11 // pred_region
        _
      $region24: #{_lambda_.3} parent=11 // pred_fallthru
        _
      // Predicated region
      $region25: #{_lambda_.3} parent=11 // pred_check
        %p330 = pneg %p154
      $region26: #{_lambda_.3} parent=11 // pred_check_branch
        %332 = sbr.rel (%p330) target = $region28
      $region27: #{_lambda_.3} parent=11 // pred_region
        _
      $region28: #{_lambda_.3} parent=11 // pred_fallthru
        _
      // Predicated region
      $region29: #{_lambda_.3} parent=11 // pred_check
        %p333 = pneg %p175
      $region30: #{_lambda_.3} parent=11 // pred_check_branch
        %335 = sbr.rel (%p333) target = $region32
      $region31: #{_lambda_.3} parent=11 // pred_region
        _
      $region32: #{_lambda_.3} parent=11 // pred_fallthru
        _
      // Predicated region
      $region33: #{_lambda_.3} parent=11 // pred_check
        %p336 = pneg %p196
      $region34: #{_lambda_.3} parent=11 // pred_check_branch
        %338 = sbr.rel (%p336) target = $region36
      $region35: #{_lambda_.3} parent=11 // pred_region
        _
      $region36: #{_lambda_.3} parent=11 // pred_fallthru
        _
      // Predicated region
      $region37: #{_lambda_.3} parent=11 // pred_check
        %p339 = pneg %p217
      $region38: #{_lambda_.3} parent=11 // pred_check_branch
        %341 = sbr.rel (%p339) target = $region40
      $region39: #{_lambda_.3} parent=11 // pred_region
        _
      $region40: #{_lambda_.3} parent=11 // pred_fallthru
        _
      // Predicated region
      $region41: #{_lambda_.3} parent=11 // pred_check
        %p342 = pneg %p238
      $region42: #{_lambda_.3} parent=11 // pred_check_branch
        %344 = sbr.rel (%p342) target = $region44
      $region43: #{_lambda_.3} parent=11 // pred_region
        _
      $region44: #{_lambda_.3} parent=11 // pred_fallthru
        _
      // Predicated region
      $region45: #{_lambda_.3} parent=11 // pred_check
        %p345 = pneg %p259
      $region46: #{_lambda_.3} parent=11 // pred_check_branch
        %347 = sbr.rel (%p345) target = $region48
      $region47: #{_lambda_.3} parent=11 // pred_region
        _
      $region48: #{_lambda_.3} parent=11 // pred_fallthru
        _
      // Predicated region
      $region49: #{_lambda_.3} parent=11 // pred_check
        %p348 = pneg %p280
      $region50: #{_lambda_.3} parent=11 // pred_check_branch
        %350 = sbr.rel (%p348) target = $region52
      $region51: #{_lambda_.3} parent=11 // pred_region
        _
      $region52: #{_lambda_.3} parent=11 // pred_fallthru
        _
    $region12: #{_lambda_.3} parent=5 // pred_fallthru
      _
    %p351 = scmp.lt.s32.totalorder %s18, 2
    // Predicated region
    $region53: #{_lambda_.3} parent=5 // pred_check
      %p352 = pneg %p351
    $region54: #{_lambda_.3} parent=5 // pred_check_branch
      %354 = sbr.rel (%p352) target = $region56
    $region55: #{_lambda_.3} parent=5 // pred_region
      // Predicated region
      $region57: #{_lambda_.3} parent=55 // pred_check
        %p355 = pneg %p38
      $region58: #{_lambda_.3} parent=55 // pred_check_branch
        %357 = sbr.rel (%p355) target = $region60
      $region59: #{_lambda_.3} parent=55 // pred_region
        %p358 = scmp.lt.s32.totalorder %s18, 1
        %s359 = scalar_select %p358, %s18, 1
        %s360 = smul.addr %s359, 32
        %s361 = smul.addr %s360, 8
        %s362 = scalar_lea.vmem %s0, %s361
      $region60: #{_lambda_.3} parent=55 // pred_fallthru
        _
      // Predicated region
      $region61: #{_lambda_.3} parent=55 // pred_check
        %p363 = pneg %p64
      $region62: #{_lambda_.3} parent=55 // pred_check_branch
        %365 = sbr.rel (%p363) target = $region64
      $region63: #{_lambda_.3} parent=55 // pred_region
        %p366 = scmp.lt.s32.totalorder %s18, 1
        %s367 = scalar_select %p366, %s18, 1
        %s368 = smul.addr %s367, 32
        %s369 = smul.addr %s368, 4
        %s370 = scalar_lea.vmem %s1, %s369
      $region64: #{_lambda_.3} parent=55 // pred_fallthru
        _
    $region56: #{_lambda_.3} parent=5 // pred_fallthru
      _
    %p371 = scmp.le.s32.totalorder 1, %s18
    %p372 = scmp.lt.s32.totalorder %s18, 3
    %p373 = pnand %p371, %p372
    %p374 = pneg %p373
    // Predicated region
    $region65: #{_lambda_.3} parent=5 // pred_check
      _
    $region66: #{_lambda_.3} parent=5 // pred_check_branch
      %376 = sbr.rel (%p373) target = $region68
    $region67: #{_lambda_.3} parent=5 // pred_region
      %s377 = ssub.s32 %s18, 1
      %p378 = scmp.lt.s32.totalorder %s23, 1
      %s379 = scalar_select %p378, %s23, 1
      %s380 = smul.addr %s379, 32
      %s381 = smul.addr %s380, 8
      %s382 = scalar_lea.vmem %s0, %s381
      %p383 = pneg %p44
      %p384 = pneg %p41
      %p385 = scmp.lt.s32.totalorder %s23, 1
      %s386 = scalar_select %p385, %s23, 1
      %s387 = smul.addr %s386, 32
      %s388 = smul.addr %s387, 4
      %s389 = scalar_lea.vmem %s1, %s388
      %p390 = pneg %p70
      %p391 = pneg %p67
      %p392 = pneg %p91
      %p393 = pneg %p88
      %p394 = pneg %p112
      %p395 = pneg %p109
      %p396 = pneg %p133
      %p397 = pneg %p130
      %p398 = pneg %p154
      %p399 = pneg %p151
      %p400 = pneg %p175
      %p401 = pneg %p172
      %p402 = pneg %p196
      %p403 = pneg %p193
      %p404 = pneg %p217
      %p405 = pneg %p214
      %p406 = pneg %p238
      %p407 = pneg %p235
      %p408 = pneg %p259
      %p409 = pneg %p256
      %p410 = pneg %p280
      %p411 = pneg %p277
      %p412 = pneg %p306
      %p413 = pneg %p303
      %p414 = scmp.lt.s32.totalorder %s23, 1
      %s415 = scalar_select %p414, %s23, 1
      %s416 = smul.addr %s415, 32
      %s417 = smul.addr %s416, 8
      %s418 = scalar_lea.vmem %s12, %s417
      %p419 = scmp.lt.s32.totalorder %s23, 1
      %s420 = scalar_select %p419, %s23, 1
      %s421 = smul.addr %s420, 32
      %s422 = smul.addr %s421, 8
      %s423 = scalar_lea.vmem %s0, %s422
      %p424 = scmp.lt.s32.totalorder %s23, 1
      %s425 = scalar_select %p424, %s23, 1
      %s426 = smul.addr %s425, 32
      %s427 = smul.addr %s426, 4
      %s428 = scalar_lea.vmem %s1, %s427
      %p429 = scmp.lt.s32.totalorder %s23, 1
      %s430 = scalar_select %p429, %s23, 1
      %s431 = smul.addr %s430, 32
      %s432 = smul.addr %s431, 8
      %s433 = scalar_lea.vmem %s12, %s432
      %p435 = scmp.eq.s32.totalorder %s23, 0
      // Predicated region
      $region69: #{_lambda_.3} parent=67 // pred_check
        %p436 = pneg %p435
      $region70: #{_lambda_.3} parent=67 // pred_check_branch
        %438 = sbr.rel (%p436) target = $region72
      $region71: #{_lambda_.3} parent=67 // pred_region
        %vm439 = vcmask 64512
        %440 = vst.msk [vmem:[#allocation2] sm:$0xff] %vm439, 0.0
        %441 = vst.msk [vmem:[#allocation2 + $0x8] sm:$0xff] %vm439, 0.0
        %vm442 = vcmask 58368
        %443 = vst.msk [vmem:[#allocation2 + $0x10] sm:$0x3] %vm442, 0.0
        %444 = vst.msk [vmem:[#allocation2 + $0x18] sm:$0xff] %vm439, 0.0
        %445 = vst.msk [vmem:[#allocation2 + $0x20] sm:$0xff] %vm439, 0.0
        %446 = vst.msk [vmem:[#allocation2 + $0x28] sm:$0x3] %vm442, 0.0
        %447 = vst.msk [vmem:[#allocation2 + $0x30] sm:$0xff] %vm439, 0.0
        %448 = vst.msk [vmem:[#allocation2 + $0x38] sm:$0xff] %vm439, 0.0
        %449 = vst.msk [vmem:[#allocation2 + $0x40] sm:$0x3] %vm442, 0.0
        %450 = vst.msk [vmem:[#allocation2 + $0x48] sm:$0xff] %vm439, 0.0
        %451 = vst.msk [vmem:[#allocation2 + $0x50] sm:$0xff] %vm439, 0.0
        %452 = vst.msk [vmem:[#allocation2 + $0x58] sm:$0x3] %vm442, 0.0
        %453 = vst.msk [vmem:[#allocation2 + $0x60] sm:$0xff] %vm439, 0.0
        %454 = vst.msk [vmem:[#allocation2 + $0x68] sm:$0xff] %vm439, 0.0
        %455 = vst.msk [vmem:[#allocation2 + $0x70] sm:$0x3] %vm442, 0.0
        %456 = vst.msk [vmem:[#allocation2 + $0x78] sm:$0xff] %vm439, 0.0
        %457 = vst.msk [vmem:[#allocation2 + $0x80] sm:$0xff] %vm439, 0.0
        %458 = vst.msk [vmem:[#allocation2 + $0x88] sm:$0x3] %vm442, 0.0
        %459 = vst.msk [vmem:[#allocation2 + $0x90] sm:$0xff] %vm439, 0.0
        %460 = vst.msk [vmem:[#allocation2 + $0x98] sm:$0xff] %vm439, 0.0
        %461 = vst.msk [vmem:[#allocation2 + $0xa0] sm:$0x3] %vm442, 0.0
        %462 = vst.msk [vmem:[#allocation2 + $0xa8] sm:$0xff] %vm439, 0.0
        %463 = vst.msk [vmem:[#allocation2 + $0xb0] sm:$0xff] %vm439, 0.0
        %464 = vst.msk [vmem:[#allocation2 + $0xb8] sm:$0x3] %vm442, 0.0
        %465 = vst.msk [vmem:[#allocation2 + $0xc0] sm:$0xff] %vm439, 0.0
        %466 = vst.msk [vmem:[#allocation2 + $0xc8] sm:$0xff] %vm439, 0.0
        %467 = vst.msk [vmem:[#allocation2 + $0xd0] sm:$0x3] %vm442, 0.0
        %468 = vst.msk [vmem:[#allocation2 + $0xd8] sm:$0xff] %vm439, 0.0
        %469 = vst.msk [vmem:[#allocation2 + $0xe0] sm:$0xff] %vm439, 0.0
        %470 = vst.msk [vmem:[#allocation2 + $0xe8] sm:$0x3] %vm442, 0.0
        %471 = vst.msk [vmem:[#allocation2 + $0xf0] sm:$0xff] %vm439, 0.0
        %472 = vst.msk [vmem:[#allocation2 + $0xf8] sm:$0xff] %vm439, 0.0
        %473 = vst.msk [vmem:[#allocation2 + $0x100] sm:$0x3] %vm442, 0.0
        %474 = vst.msk [vmem:[#allocation2 + $0x108] sm:$0xff] %vm439, 0.0
        %475 = vst.msk [vmem:[#allocation2 + $0x110] sm:$0xff] %vm439, 0.0
        %476 = vst.msk [vmem:[#allocation2 + $0x118] sm:$0x3] %vm442, 0.0
        %477 = vst.msk [vmem:[#allocation2 + $0x120] sm:$0xff] %vm439, 0.0
        %478 = vst.msk [vmem:[#allocation2 + $0x128] sm:$0xff] %vm439, 0.0
        %479 = vst.msk [vmem:[#allocation2 + $0x130] sm:$0x3] %vm442, 0.0
        %480 = vst.msk [vmem:[#allocation2 + $0x138] sm:$0xff] %vm439, 0.0
        %481 = vst.msk [vmem:[#allocation2 + $0x140] sm:$0xff] %vm439, 0.0
        %482 = vst.msk [vmem:[#allocation2 + $0x148] sm:$0x3] %vm442, 0.0
        %483 = vst.msk [vmem:[#allocation2 + $0x150] sm:$0xff] %vm439, 0.0
        %484 = vst.msk [vmem:[#allocation2 + $0x158] sm:$0xff] %vm439, 0.0
        %485 = vst.msk [vmem:[#allocation2 + $0x160] sm:$0x3] %vm442, 0.0
        %486 = vst.msk [vmem:[#allocation2 + $0x168] sm:$0xff] %vm439, 0.0
        %487 = vst.msk [vmem:[#allocation2 + $0x170] sm:$0xff] %vm439, 0.0
        %488 = vst.msk [vmem:[#allocation2 + $0x178] sm:$0x3] %vm442, 0.0
        %489 = vst.msk [vmem:[#allocation2 + $0x180] sm:$0xff] %vm439, 0.0
        %490 = vst.msk [vmem:[#allocation2 + $0x188] sm:$0xff] %vm439, 0.0
        %491 = vst.msk [vmem:[#allocation2 + $0x190] sm:$0x3] %vm442, 0.0
        %492 = vst.msk [vmem:[#allocation2 + $0x198] sm:$0xff] %vm439, 0.0
        %493 = vst.msk [vmem:[#allocation2 + $0x1a0] sm:$0xff] %vm439, 0.0
        %494 = vst.msk [vmem:[#allocation2 + $0x1a8] sm:$0x3] %vm442, 0.0
        %vm495 = vcmask 31744
        %496 = vst.msk [vmem:[#allocation3] sm:$0xff] %vm495, 0.0
        %497 = vst.msk [vmem:[#allocation3 + $0x8] sm:$0xff] %vm495, 0.0
        %vm498 = vcmask 25600
        %499 = vst.msk [vmem:[#allocation3 + $0x10] sm:$0x3] %vm498, 0.0
        %500 = vst.msk [vmem:[#allocation3 + $0x18] sm:$0xff] %vm495, 0.0
        %501 = vst.msk [vmem:[#allocation3 + $0x20] sm:$0xff] %vm495, 0.0
        %502 = vst.msk [vmem:[#allocation3 + $0x28] sm:$0x3] %vm498, 0.0
        %503 = vst.msk [vmem:[#allocation3 + $0x30] sm:$0xff] %vm495, 0.0
        %504 = vst.msk [vmem:[#allocation3 + $0x38] sm:$0xff] %vm495, 0.0
        %505 = vst.msk [vmem:[#allocation3 + $0x40] sm:$0x3] %vm498, 0.0
        %506 = vst.msk [vmem:[#allocation3 + $0x48] sm:$0xff] %vm495, 0.0
        %507 = vst.msk [vmem:[#allocation3 + $0x50] sm:$0xff] %vm495, 0.0
        %508 = vst.msk [vmem:[#allocation3 + $0x58] sm:$0x3] %vm498, 0.0
        %509 = vst.msk [vmem:[#allocation3 + $0x60] sm:$0xff] %vm495, 0.0
        %510 = vst.msk [vmem:[#allocation3 + $0x68] sm:$0xff] %vm495, 0.0
        %511 = vst.msk [vmem:[#allocation3 + $0x70] sm:$0x3] %vm498, 0.0
        %512 = vst.msk [vmem:[#allocation3 + $0x78] sm:$0xff] %vm495, 0.0
        %513 = vst.msk [vmem:[#allocation3 + $0x80] sm:$0xff] %vm495, 0.0
        %514 = vst.msk [vmem:[#allocation3 + $0x88] sm:$0x3] %vm498, 0.0
        %515 = vst.msk [vmem:[#allocation3 + $0x90] sm:$0xff] %vm495, 0.0
        %516 = vst.msk [vmem:[#allocation3 + $0x98] sm:$0xff] %vm495, 0.0
        %517 = vst.msk [vmem:[#allocation3 + $0xa0] sm:$0x3] %vm498, 0.0
        %518 = vst.msk [vmem:[#allocation3 + $0xa8] sm:$0xff] %vm495, 0.0
        %519 = vst.msk [vmem:[#allocation3 + $0xb0] sm:$0xff] %vm495, 0.0
        %520 = vst.msk [vmem:[#allocation3 + $0xb8] sm:$0x3] %vm498, 0.0
        %521 = vst.msk [vmem:[#allocation3 + $0xc0] sm:$0xff] %vm495, 0.0
        %522 = vst.msk [vmem:[#allocation3 + $0xc8] sm:$0xff] %vm495, 0.0
        %523 = vst.msk [vmem:[#allocation3 + $0xd0] sm:$0x3] %vm498, 0.0
        %524 = vst.msk [vmem:[#allocation3 + $0xd8] sm:$0xff] %vm495, 0.0
        %525 = vst.msk [vmem:[#allocation3 + $0xe0] sm:$0xff] %vm495, 0.0
        %526 = vst.msk [vmem:[#allocation3 + $0xe8] sm:$0x3] %vm498, 0.0
        %527 = vst.msk [vmem:[#allocation3 + $0xf0] sm:$0xff] %vm495, 0.0
        %528 = vst.msk [vmem:[#allocation3 + $0xf8] sm:$0xff] %vm495, 0.0
        %529 = vst.msk [vmem:[#allocation3 + $0x100] sm:$0x3] %vm498, 0.0
        %530 = vst.msk [vmem:[#allocation3 + $0x108] sm:$0xff] %vm495, 0.0
        %531 = vst.msk [vmem:[#allocation3 + $0x110] sm:$0xff] %vm495, 0.0
        %532 = vst.msk [vmem:[#allocation3 + $0x118] sm:$0x3] %vm498, 0.0
        %533 = vst.msk [vmem:[#allocation3 + $0x120] sm:$0xff] %vm495, 0.0
        %534 = vst.msk [vmem:[#allocation3 + $0x128] sm:$0xff] %vm495, 0.0
        %535 = vst.msk [vmem:[#allocation3 + $0x130] sm:$0x3] %vm498, 0.0
        %536 = vst.msk [vmem:[#allocation3 + $0x138] sm:$0xff] %vm495, 0.0
        %537 = vst.msk [vmem:[#allocation3 + $0x140] sm:$0xff] %vm495, 0.0
        %538 = vst.msk [vmem:[#allocation3 + $0x148] sm:$0x3] %vm498, 0.0
        %539 = vst.msk [vmem:[#allocation3 + $0x150] sm:$0xff] %vm495, 0.0
        %540 = vst.msk [vmem:[#allocation3 + $0x158] sm:$0xff] %vm495, 0.0
        %541 = vst.msk [vmem:[#allocation3 + $0x160] sm:$0x3] %vm498, 0.0
        %542 = vst.msk [vmem:[#allocation3 + $0x168] sm:$0xff] %vm495, 0.0
        %543 = vst.msk [vmem:[#allocation3 + $0x170] sm:$0xff] %vm495, 0.0
        %544 = vst.msk [vmem:[#allocation3 + $0x178] sm:$0x3] %vm498, 0.0
        %545 = vst.msk [vmem:[#allocation3 + $0x180] sm:$0xff] %vm495, 0.0
        %546 = vst.msk [vmem:[#allocation3 + $0x188] sm:$0xff] %vm495, 0.0
        %547 = vst.msk [vmem:[#allocation3 + $0x190] sm:$0x3] %vm498, 0.0
        %548 = vst.msk [vmem:[#allocation3 + $0x198] sm:$0xff] %vm495, 0.0
        %549 = vst.msk [vmem:[#allocation3 + $0x1a0] sm:$0xff] %vm495, 0.0
        %550 = vst.msk [vmem:[#allocation3 + $0x1a8] sm:$0x3] %vm498, 0.0
      $region72: #{_lambda_.3} parent=67 // pred_fallthru
        _
      %v551 = vld [vmem:[%s423] sm:$0xff]
      %v552 = vld [vmem:[%s423 + $0x8] sm:$0xff]
      %v553 = vld [vmem:[%s423 + $0x10] sm:$0xff]
      %v554 = vld [vmem:[%s423 + $0x18] sm:$0xff]
      %v555 = vld [vmem:[%s423 + $0x20] sm:$0xff]
      %v556 = vld [vmem:[%s423 + $0x28] sm:$0xff]
      %v557 = vld [vmem:[%s423 + $0x30] sm:$0xff]
      %v558 = vld [vmem:[%s423 + $0x38] sm:$0xff]
      %v559 = vld [vmem:[%s423 + $0x40] sm:$0xff]
      %v560 = vld [vmem:[%s423 + $0x48] sm:$0xff]
      %v561 = vld [vmem:[%s423 + $0x50] sm:$0xff]
      %v562 = vld [vmem:[%s423 + $0x58] sm:$0xff]
      %v563 = vld [vmem:[%s423 + $0x60] sm:$0xff]
      %v564 = vld [vmem:[%s423 + $0x68] sm:$0xff]
      %v565 = vld [vmem:[%s423 + $0x70] sm:$0xff]
      %v566 = vld [vmem:[%s423 + $0x78] sm:$0xff]
      %v567 = vld [vmem:[%s423 + $0x80] sm:$0xff]
      %v568 = vld [vmem:[%s423 + $0x88] sm:$0xff]
      %v569 = vld [vmem:[%s423 + $0x90] sm:$0xff]
      %v570 = vld [vmem:[%s423 + $0x98] sm:$0xff]
      %v571 = vld [vmem:[%s423 + $0xa0] sm:$0xff]
      %v572 = vld [vmem:[%s423 + $0xa8] sm:$0xff]
      %v573 = vld [vmem:[%s423 + $0xb0] sm:$0xff]
      %v574 = vld [vmem:[%s423 + $0xb8] sm:$0xff]
      %v575 = vld [vmem:[%s423 + $0xc0] sm:$0xff]
      %v576 = vld [vmem:[%s423 + $0xc8] sm:$0xff]
      %v577 = vld [vmem:[%s423 + $0xd0] sm:$0xff]
      %v578 = vld [vmem:[%s423 + $0xd8] sm:$0xff]
      %v579 = vld [vmem:[%s423 + $0xe0] sm:$0xff]
      %v580 = vld [vmem:[%s423 + $0xe8] sm:$0xff]
      %v581 = vld [vmem:[%s423 + $0xf0] sm:$0xff]
      %v582 = vld [vmem:[%s423 + $0xf8] sm:$0xff]
      %s583 = scalar_lea.vmem [#allocation2], 24
      %vm584 = vcmask 31744
      %585 = vst.msk [vmem:[%s583 + $0x1] sm:$0xff] %vm584, %v551
      %586 = vst.msk [vmem:[%s583 + $0x9] sm:$0xff] %vm584, %v552
      %587 = vst.msk [vmem:[%s583 + $0x19] sm:$0xff] %vm584, %v553
      %588 = vst.msk [vmem:[%s583 + $0x21] sm:$0xff] %vm584, %v554
      %589 = vst.msk [vmem:[%s583 + $0x31] sm:$0xff] %vm584, %v555
      %590 = vst.msk [vmem:[%s583 + $0x39] sm:$0xff] %vm584, %v556
      %591 = vst.msk [vmem:[%s583 + $0x49] sm:$0xff] %vm584, %v557
      %592 = vst.msk [vmem:[%s583 + $0x51] sm:$0xff] %vm584, %v558
      %593 = vst.msk [vmem:[%s583 + $0x61] sm:$0xff] %vm584, %v559
      %594 = vst.msk [vmem:[%s583 + $0x69] sm:$0xff] %vm584, %v560
      %595 = vst.msk [vmem:[%s583 + $0x79] sm:$0xff] %vm584, %v561
      %596 = vst.msk [vmem:[%s583 + $0x81] sm:$0xff] %vm584, %v562
      %597 = vst.msk [vmem:[%s583 + $0x91] sm:$0xff] %vm584, %v563
      %598 = vst.msk [vmem:[%s583 + $0x99] sm:$0xff] %vm584, %v564
      %599 = vst.msk [vmem:[%s583 + $0xa9] sm:$0xff] %vm584, %v565
      %600 = vst.msk [vmem:[%s583 + $0xb1] sm:$0xff] %vm584, %v566
      %601 = vst.msk [vmem:[%s583 + $0xc1] sm:$0xff] %vm584, %v567
      %602 = vst.msk [vmem:[%s583 + $0xc9] sm:$0xff] %vm584, %v568
      %603 = vst.msk [vmem:[%s583 + $0xd9] sm:$0xff] %vm584, %v569
      %604 = vst.msk [vmem:[%s583 + $0xe1] sm:$0xff] %vm584, %v570
      %605 = vst.msk [vmem:[%s583 + $0xf1] sm:$0xff] %vm584, %v571
      %606 = vst.msk [vmem:[%s583 + $0xf9] sm:$0xff] %vm584, %v572
      %607 = vst.msk [vmem:[%s583 + $0x109] sm:$0xff] %vm584, %v573
      %608 = vst.msk [vmem:[%s583 + $0x111] sm:$0xff] %vm584, %v574
      %609 = vst.msk [vmem:[%s583 + $0x121] sm:$0xff] %vm584, %v575
      %610 = vst.msk [vmem:[%s583 + $0x129] sm:$0xff] %vm584, %v576
      %611 = vst.msk [vmem:[%s583 + $0x139] sm:$0xff] %vm584, %v577
      %612 = vst.msk [vmem:[%s583 + $0x141] sm:$0xff] %vm584, %v578
      %613 = vst.msk [vmem:[%s583 + $0x151] sm:$0xff] %vm584, %v579
      %614 = vst.msk [vmem:[%s583 + $0x159] sm:$0xff] %vm584, %v580
      %615 = vst.msk [vmem:[%s583 + $0x169] sm:$0xff] %vm584, %v581
      %616 = vst.msk [vmem:[%s583 + $0x171] sm:$0xff] %vm584, %v582
      %v617 = vld [vmem:[%s428] sm:$0xf]
      %v618 = vld [vmem:[%s428 + $0x4] sm:$0xf]
      %v619 = vld [vmem:[%s428 + $0x8] sm:$0xf]
      %v620 = vld [vmem:[%s428 + $0xc] sm:$0xf]
      %v621 = vld [vmem:[%s428 + $0x10] sm:$0xf]
      %v622 = vld [vmem:[%s428 + $0x14] sm:$0xf]
      %v623 = vld [vmem:[%s428 + $0x18] sm:$0xf]
      %v624 = vld [vmem:[%s428 + $0x1c] sm:$0xf]
      %v625 = vld [vmem:[%s428 + $0x20] sm:$0xf]
      %v626 = vld [vmem:[%s428 + $0x24] sm:$0xf]
      %v627 = vld [vmem:[%s428 + $0x28] sm:$0xf]
      %v628 = vld [vmem:[%s428 + $0x2c] sm:$0xf]
      %v629 = vld [vmem:[%s428 + $0x30] sm:$0xf]
      %v630 = vld [vmem:[%s428 + $0x34] sm:$0xf]
      %v631 = vld [vmem:[%s428 + $0x38] sm:$0xf]
      %v632 = vld [vmem:[%s428 + $0x3c] sm:$0xf]
      %v633 = vld [vmem:[%s428 + $0x40] sm:$0xf]
      %v634 = vld [vmem:[%s428 + $0x44] sm:$0xf]
      %v635 = vld [vmem:[%s428 + $0x48] sm:$0xf]
      %v636 = vld [vmem:[%s428 + $0x4c] sm:$0xf]
      %v637 = vld [vmem:[%s428 + $0x50] sm:$0xf]
      %v638 = vld [vmem:[%s428 + $0x54] sm:$0xf]
      %v639 = vld [vmem:[%s428 + $0x58] sm:$0xf]
      %v640 = vld [vmem:[%s428 + $0x5c] sm:$0xf]
      %v641 = vld [vmem:[%s428 + $0x60] sm:$0xf]
      %v642 = vld [vmem:[%s428 + $0x64] sm:$0xf]
      %v643 = vld [vmem:[%s428 + $0x68] sm:$0xf]
      %v644 = vld [vmem:[%s428 + $0x6c] sm:$0xf]
      %v645 = vld [vmem:[%s428 + $0x70] sm:$0xf]
      %v646 = vld [vmem:[%s428 + $0x74] sm:$0xf]
      %v647 = vld [vmem:[%s428 + $0x78] sm:$0xf]
      %v648 = vld [vmem:[%s428 + $0x7c] sm:$0xf]
      %v649 = vunpack.c.l.bf16 %v617
      %v650 = vunpack.c.l.bf16 %v618
      %v651 = vunpack.c.l.bf16 %v619
      %v652 = vunpack.c.l.bf16 %v620
      %v653 = vunpack.c.l.bf16 %v621
      %v654 = vunpack.c.l.bf16 %v622
      %v655 = vunpack.c.l.bf16 %v623
      %v656 = vunpack.c.l.bf16 %v624
      %v657 = vunpack.c.l.bf16 %v625
      %v658 = vunpack.c.l.bf16 %v626
      %v659 = vunpack.c.l.bf16 %v627
      %v660 = vunpack.c.l.bf16 %v628
      %v661 = vunpack.c.l.bf16 %v629
      %v662 = vunpack.c.l.bf16 %v630
      %v663 = vunpack.c.l.bf16 %v631
      %v664 = vunpack.c.l.bf16 %v632
      %v665 = vunpack.c.l.bf16 %v633
      %v666 = vunpack.c.l.bf16 %v634
      %v667 = vunpack.c.l.bf16 %v635
      %v668 = vunpack.c.l.bf16 %v636
      %v669 = vunpack.c.l.bf16 %v637
      %v670 = vunpack.c.l.bf16 %v638
      %v671 = vunpack.c.l.bf16 %v639
      %v672 = vunpack.c.l.bf16 %v640
      %v673 = vunpack.c.l.bf16 %v641
      %v674 = vunpack.c.l.bf16 %v642
      %v675 = vunpack.c.l.bf16 %v643
      %v676 = vunpack.c.l.bf16 %v644
      %v677 = vunpack.c.l.bf16 %v645
      %v678 = vunpack.c.l.bf16 %v646
      %v679 = vunpack.c.l.bf16 %v647
      %v680 = vunpack.c.l.bf16 %v648
      %713 = vrot.lane.b32.xlu0 %v649, 4
      %v714 = vpop.permute.xlu0 %713
      %715 = vrot.lane.b32.xlu0 %v650, 4
      %v716 = vpop.permute.xlu0 %715
      %717 = vrot.lane.b32.xlu0 %v651, 4
      %v718 = vpop.permute.xlu0 %717
      %719 = vrot.lane.b32.xlu0 %v652, 4
      %v720 = vpop.permute.xlu0 %719
      %721 = vrot.lane.b32.xlu0 %v653, 4
      %v722 = vpop.permute.xlu0 %721
      %723 = vrot.lane.b32.xlu0 %v654, 4
      %v724 = vpop.permute.xlu0 %723
      %725 = vrot.lane.b32.xlu0 %v655, 4
      %v726 = vpop.permute.xlu0 %725
      %727 = vrot.lane.b32.xlu0 %v656, 4
      %v728 = vpop.permute.xlu0 %727
      %729 = vrot.lane.b32.xlu0 %v657, 4
      %v730 = vpop.permute.xlu0 %729
      %731 = vrot.lane.b32.xlu0 %v658, 4
      %v732 = vpop.permute.xlu0 %731
      %733 = vrot.lane.b32.xlu0 %v659, 4
      %v734 = vpop.permute.xlu0 %733
      %735 = vrot.lane.b32.xlu0 %v660, 4
      %v736 = vpop.permute.xlu0 %735
      %737 = vrot.lane.b32.xlu0 %v661, 4
      %v738 = vpop.permute.xlu0 %737
      %739 = vrot.lane.b32.xlu0 %v662, 4
      %v740 = vpop.permute.xlu0 %739
      %741 = vrot.lane.b32.xlu0 %v663, 4
      %v742 = vpop.permute.xlu0 %741
      %743 = vrot.lane.b32.xlu0 %v664, 4
      %v744 = vpop.permute.xlu0 %743
      %745 = vrot.lane.b32.xlu0 %v665, 4
      %v746 = vpop.permute.xlu0 %745
      %747 = vrot.lane.b32.xlu0 %v666, 4
      %v748 = vpop.permute.xlu0 %747
      %749 = vrot.lane.b32.xlu0 %v667, 4
      %v750 = vpop.permute.xlu0 %749
      %751 = vrot.lane.b32.xlu0 %v668, 4
      %v752 = vpop.permute.xlu0 %751
      %753 = vrot.lane.b32.xlu0 %v669, 4
      %v754 = vpop.permute.xlu0 %753
      %755 = vrot.lane.b32.xlu0 %v670, 4
      %v756 = vpop.permute.xlu0 %755
      %757 = vrot.lane.b32.xlu0 %v671, 4
      %v758 = vpop.permute.xlu0 %757
      %759 = vrot.lane.b32.xlu0 %v672, 4
      %v760 = vpop.permute.xlu0 %759
      %761 = vrot.lane.b32.xlu0 %v673, 4
      %v762 = vpop.permute.xlu0 %761
      %763 = vrot.lane.b32.xlu0 %v674, 4
      %v764 = vpop.permute.xlu0 %763
      %765 = vrot.lane.b32.xlu0 %v675, 4
      %v766 = vpop.permute.xlu0 %765
      %767 = vrot.lane.b32.xlu0 %v676, 4
      %v768 = vpop.permute.xlu0 %767
      %769 = vrot.lane.b32.xlu0 %v677, 4
      %v770 = vpop.permute.xlu0 %769
      %771 = vrot.lane.b32.xlu0 %v678, 4
      %v772 = vpop.permute.xlu0 %771
      %773 = vrot.lane.b32.xlu0 %v679, 4
      %v774 = vpop.permute.xlu0 %773
      %775 = vrot.lane.b32.xlu0 %v680, 4
      %v776 = vpop.permute.xlu0 %775
      %vm809 = vcmask 64544
      %810 = vst.msk [vmem:[%s583 + $0x1] sm:$0xff] %vm809, %v714
      %811 = vst.msk [vmem:[%s583 + $0x9] sm:$0xff] %vm809, %v716
      %812 = vst.msk [vmem:[%s583 + $0x19] sm:$0xff] %vm809, %v718
      %813 = vst.msk [vmem:[%s583 + $0x21] sm:$0xff] %vm809, %v720
      %814 = vst.msk [vmem:[%s583 + $0x31] sm:$0xff] %vm809, %v722
      %815 = vst.msk [vmem:[%s583 + $0x39] sm:$0xff] %vm809, %v724
      %816 = vst.msk [vmem:[%s583 + $0x49] sm:$0xff] %vm809, %v726
      %817 = vst.msk [vmem:[%s583 + $0x51] sm:$0xff] %vm809, %v728
      %818 = vst.msk [vmem:[%s583 + $0x61] sm:$0xff] %vm809, %v730
      %819 = vst.msk [vmem:[%s583 + $0x69] sm:$0xff] %vm809, %v732
      %820 = vst.msk [vmem:[%s583 + $0x79] sm:$0xff] %vm809, %v734
      %821 = vst.msk [vmem:[%s583 + $0x81] sm:$0xff] %vm809, %v736
      %822 = vst.msk [vmem:[%s583 + $0x91] sm:$0xff] %vm809, %v738
      %823 = vst.msk [vmem:[%s583 + $0x99] sm:$0xff] %vm809, %v740
      %824 = vst.msk [vmem:[%s583 + $0xa9] sm:$0xff] %vm809, %v742
      %825 = vst.msk [vmem:[%s583 + $0xb1] sm:$0xff] %vm809, %v744
      %826 = vst.msk [vmem:[%s583 + $0xc1] sm:$0xff] %vm809, %v746
      %827 = vst.msk [vmem:[%s583 + $0xc9] sm:$0xff] %vm809, %v748
      %828 = vst.msk [vmem:[%s583 + $0xd9] sm:$0xff] %vm809, %v750
      %829 = vst.msk [vmem:[%s583 + $0xe1] sm:$0xff] %vm809, %v752
      %830 = vst.msk [vmem:[%s583 + $0xf1] sm:$0xff] %vm809, %v754
      %831 = vst.msk [vmem:[%s583 + $0xf9] sm:$0xff] %vm809, %v756
      %832 = vst.msk [vmem:[%s583 + $0x109] sm:$0xff] %vm809, %v758
      %833 = vst.msk [vmem:[%s583 + $0x111] sm:$0xff] %vm809, %v760
      %834 = vst.msk [vmem:[%s583 + $0x121] sm:$0xff] %vm809, %v762
      %835 = vst.msk [vmem:[%s583 + $0x129] sm:$0xff] %vm809, %v764
      %836 = vst.msk [vmem:[%s583 + $0x139] sm:$0xff] %vm809, %v766
      %837 = vst.msk [vmem:[%s583 + $0x141] sm:$0xff] %vm809, %v768
      %838 = vst.msk [vmem:[%s583 + $0x151] sm:$0xff] %vm809, %v770
      %839 = vst.msk [vmem:[%s583 + $0x159] sm:$0xff] %vm809, %v772
      %840 = vst.msk [vmem:[%s583 + $0x169] sm:$0xff] %vm809, %v774
      %841 = vst.msk [vmem:[%s583 + $0x171] sm:$0xff] %vm809, %v776
      %v842 = vld [vmem:[%s3] sm:$0x1]
      %v843 = vld [vmem:[#allocation2] sm:$0xff]
      %v844 = vld [vmem:[#allocation2 + $0x8] sm:$0xff]
      %v845 = vld [vmem:[#allocation2 + $0x18] sm:$0xff]
      %v846 = vld [vmem:[#allocation2 + $0x20] sm:$0xff]
      %v847 = vld [vmem:[#allocation2 + $0x30] sm:$0xff]
      %v848 = vld [vmem:[#allocation2 + $0x38] sm:$0xff]
      %v849 = vld [vmem:[#allocation2 + $0x48] sm:$0xff]
      %v850 = vld [vmem:[#allocation2 + $0x50] sm:$0xff]
      %v851 = vld [vmem:[#allocation2 + $0x60] sm:$0xff]
      %v852 = vld [vmem:[#allocation2 + $0x68] sm:$0xff]
      %v853 = vld [vmem:[#allocation2 + $0x78] sm:$0xff]
      %v854 = vld [vmem:[#allocation2 + $0x80] sm:$0xff]
      %v855 = vld [vmem:[#allocation2 + $0x90] sm:$0xff]
      %v856 = vld [vmem:[#allocation2 + $0x98] sm:$0xff]
      %v857 = vld [vmem:[#allocation2 + $0xa8] sm:$0xff]
      %v858 = vld [vmem:[#allocation2 + $0xb0] sm:$0xff]
      %v859 = vld [vmem:[#allocation2 + $0xc0] sm:$0xff]
      %v860 = vld [vmem:[#allocation2 + $0xc8] sm:$0xff]
      %v861 = vld [vmem:[#allocation2 + $0xd8] sm:$0xff]
      %v862 = vld [vmem:[#allocation2 + $0xe0] sm:$0xff]
      %v863 = vld [vmem:[#allocation2 + $0xf0] sm:$0xff]
      %v864 = vld [vmem:[#allocation2 + $0xf8] sm:$0xff]
      %v865 = vld [vmem:[#allocation2 + $0x108] sm:$0xff]
      %v866 = vld [vmem:[#allocation2 + $0x110] sm:$0xff]
      %v867 = vld [vmem:[#allocation2 + $0x120] sm:$0xff]
      %v868 = vld [vmem:[#allocation2 + $0x128] sm:$0xff]
      %v869 = vld [vmem:[#allocation2 + $0x138] sm:$0xff]
      %v870 = vld [vmem:[#allocation2 + $0x140] sm:$0xff]
      %v871 = vld [vmem:[#allocation2 + $0x150] sm:$0xff]
      %v872 = vld [vmem:[#allocation2 + $0x158] sm:$0xff]
      %v873 = vld [vmem:[#allocation2 + $0x168] sm:$0xff]
      %v874 = vld [vmem:[#allocation2 + $0x170] sm:$0xff]
      %v875 = vpack.c.bf16 %v844, %v843
      %v876 = vpack.c.bf16 %v846, %v845
      %v877 = vpack.c.bf16 %v848, %v847
      %v878 = vpack.c.bf16 %v850, %v849
      %v879 = vpack.c.bf16 %v852, %v851
      %v880 = vpack.c.bf16 %v854, %v853
      %v881 = vpack.c.bf16 %v856, %v855
      %v882 = vpack.c.bf16 %v858, %v857
      %v883 = vpack.c.bf16 %v860, %v859
      %v884 = vpack.c.bf16 %v862, %v861
      %v885 = vpack.c.bf16 %v864, %v863
      %v886 = vpack.c.bf16 %v866, %v865
      %v887 = vpack.c.bf16 %v868, %v867
      %v888 = vpack.c.bf16 %v870, %v869
      %v889 = vpack.c.bf16 %v872, %v871
      %v890 = vpack.c.bf16 %v874, %v873
      %vm891 = vcmask 64512
      %892 = vst.msk [vmem:[#allocation4] sm:$0xff] %vm891, %v875
      %893 = vst.msk [vmem:[#allocation4 + $0x8] sm:$0xff] %vm891, %v876
      %894 = vst.msk [vmem:[#allocation4 + $0x10] sm:$0xff] %vm891, %v877
      %895 = vst.msk [vmem:[#allocation4 + $0x18] sm:$0xff] %vm891, %v878
      %896 = vst.msk [vmem:[#allocation4 + $0x20] sm:$0xff] %vm891, %v879
      %897 = vst.msk [vmem:[#allocation4 + $0x28] sm:$0xff] %vm891, %v880
      %898 = vst.msk [vmem:[#allocation4 + $0x30] sm:$0xff] %vm891, %v881
      %899 = vst.msk [vmem:[#allocation4 + $0x38] sm:$0xff] %vm891, %v882
      %900 = vst.msk [vmem:[#allocation4 + $0x40] sm:$0xff] %vm891, %v883
      %901 = vst.msk [vmem:[#allocation4 + $0x48] sm:$0xff] %vm891, %v884
      %902 = vst.msk [vmem:[#allocation4 + $0x50] sm:$0xff] %vm891, %v885
      %903 = vst.msk [vmem:[#allocation4 + $0x58] sm:$0xff] %vm891, %v886
      %904 = vst.msk [vmem:[#allocation4 + $0x60] sm:$0xff] %vm891, %v887
      %905 = vst.msk [vmem:[#allocation4 + $0x68] sm:$0xff] %vm891, %v888
      %906 = vst.msk [vmem:[#allocation4 + $0x70] sm:$0xff] %vm891, %v889
      %907 = vst.msk [vmem:[#allocation4 + $0x78] sm:$0xff] %vm891, %v890
      %v908 = vld [vmem:[#allocation2 + $0x1] sm:$0xff]
      %v909 = vld [vmem:[#allocation2 + $0x9] sm:$0xff]
      %v910 = vld [vmem:[#allocation2 + $0x19] sm:$0xff]
      %v911 = vld [vmem:[#allocation2 + $0x21] sm:$0xff]
      %v912 = vld [vmem:[#allocation2 + $0x31] sm:$0xff]
      %v913 = vld [vmem:[#allocation2 + $0x39] sm:$0xff]
      %v914 = vld [vmem:[#allocation2 + $0x49] sm:$0xff]
      %v915 = vld [vmem:[#allocation2 + $0x51] sm:$0xff]
      %v916 = vld [vmem:[#allocation2 + $0x61] sm:$0xff]
      %v917 = vld [vmem:[#allocation2 + $0x69] sm:$0xff]
      %v918 = vld [vmem:[#allocation2 + $0x79] sm:$0xff]
      %v919 = vld [vmem:[#allocation2 + $0x81] sm:$0xff]
      %v920 = vld [vmem:[#allocation2 + $0x91] sm:$0xff]
      %v921 = vld [vmem:[#allocation2 + $0x99] sm:$0xff]
      %v922 = vld [vmem:[#allocation2 + $0xa9] sm:$0xff]
      %v923 = vld [vmem:[#allocation2 + $0xb1] sm:$0xff]
      %v924 = vld [vmem:[#allocation2 + $0xc1] sm:$0xff]
      %v925 = vld [vmem:[#allocation2 + $0xc9] sm:$0xff]
      %v926 = vld [vmem:[#allocation2 + $0xd9] sm:$0xff]
      %v927 = vld [vmem:[#allocation2 + $0xe1] sm:$0xff]
      %v928 = vld [vmem:[#allocation2 + $0xf1] sm:$0xff]
      %v929 = vld [vmem:[#allocation2 + $0xf9] sm:$0xff]
      %v930 = vld [vmem:[#allocation2 + $0x109] sm:$0xff]
      %v931 = vld [vmem:[#allocation2 + $0x111] sm:$0xff]
      %v932 = vld [vmem:[#allocation2 + $0x121] sm:$0xff]
      %v933 = vld [vmem:[#allocation2 + $0x129] sm:$0xff]
      %v934 = vld [vmem:[#allocation2 + $0x139] sm:$0xff]
      %v935 = vld [vmem:[#allocation2 + $0x141] sm:$0xff]
      %v936 = vld [vmem:[#allocation2 + $0x151] sm:$0xff]
      %v937 = vld [vmem:[#allocation2 + $0x159] sm:$0xff]
      %v938 = vld [vmem:[#allocation2 + $0x169] sm:$0xff]
      %v939 = vld [vmem:[#allocation2 + $0x171] sm:$0xff]
      %v940 = vpack.c.bf16 %v909, %v908
      %v941 = vpack.c.bf16 %v911, %v910
      %v942 = vpack.c.bf16 %v913, %v912
      %v943 = vpack.c.bf16 %v915, %v914
      %v944 = vpack.c.bf16 %v917, %v916
      %v945 = vpack.c.bf16 %v919, %v918
      %v946 = vpack.c.bf16 %v921, %v920
      %v947 = vpack.c.bf16 %v923, %v922
      %v948 = vpack.c.bf16 %v925, %v924
      %v949 = vpack.c.bf16 %v927, %v926
      %v950 = vpack.c.bf16 %v929, %v928
      %v951 = vpack.c.bf16 %v931, %v930
      %v952 = vpack.c.bf16 %v933, %v932
      %v953 = vpack.c.bf16 %v935, %v934
      %v954 = vpack.c.bf16 %v937, %v936
      %v955 = vpack.c.bf16 %v939, %v938
      %972 = vrot.lane.b32.xlu0 %v940, 8
      %v973 = vpop.permute.xlu0 %972
      %974 = vrot.lane.b32.xlu0 %v941, 8
      %v975 = vpop.permute.xlu0 %974
      %976 = vrot.lane.b32.xlu0 %v942, 8
      %v977 = vpop.permute.xlu0 %976
      %978 = vrot.lane.b32.xlu0 %v943, 8
      %v979 = vpop.permute.xlu0 %978
      %980 = vrot.lane.b32.xlu0 %v944, 8
      %v981 = vpop.permute.xlu0 %980
      %982 = vrot.lane.b32.xlu0 %v945, 8
      %v983 = vpop.permute.xlu0 %982
      %984 = vrot.lane.b32.xlu0 %v946, 8
      %v985 = vpop.permute.xlu0 %984
      %986 = vrot.lane.b32.xlu0 %v947, 8
      %v987 = vpop.permute.xlu0 %986
      %988 = vrot.lane.b32.xlu0 %v948, 8
      %v989 = vpop.permute.xlu0 %988
      %990 = vrot.lane.b32.xlu0 %v949, 8
      %v991 = vpop.permute.xlu0 %990
      %992 = vrot.lane.b32.xlu0 %v950, 8
      %v993 = vpop.permute.xlu0 %992
      %994 = vrot.lane.b32.xlu0 %v951, 8
      %v995 = vpop.permute.xlu0 %994
      %996 = vrot.lane.b32.xlu0 %v952, 8
      %v997 = vpop.permute.xlu0 %996
      %998 = vrot.lane.b32.xlu0 %v953, 8
      %v999 = vpop.permute.xlu0 %998
      %1000 = vrot.lane.b32.xlu0 %v954, 8
      %v1001 = vpop.permute.xlu0 %1000
      %1002 = vrot.lane.b32.xlu0 %v955, 8
      %v1003 = vpop.permute.xlu0 %1002
      %vm1020 = vcmask 130112
      %1021 = vst.msk [vmem:[#allocation4] sm:$0xff] %vm1020, %v973
      %1022 = vst.msk [vmem:[#allocation4 + $0x8] sm:$0xff] %vm1020, %v975
      %1023 = vst.msk [vmem:[#allocation4 + $0x10] sm:$0xff] %vm1020, %v977
      %1024 = vst.msk [vmem:[#allocation4 + $0x18] sm:$0xff] %vm1020, %v979
      %1025 = vst.msk [vmem:[#allocation4 + $0x20] sm:$0xff] %vm1020, %v981
      %1026 = vst.msk [vmem:[#allocation4 + $0x28] sm:$0xff] %vm1020, %v983
      %1027 = vst.msk [vmem:[#allocation4 + $0x30] sm:$0xff] %vm1020, %v985
      %1028 = vst.msk [vmem:[#allocation4 + $0x38] sm:$0xff] %vm1020, %v987
      %1029 = vst.msk [vmem:[#allocation4 + $0x40] sm:$0xff] %vm1020, %v989
      %1030 = vst.msk [vmem:[#allocation4 + $0x48] sm:$0xff] %vm1020, %v991
      %1031 = vst.msk [vmem:[#allocation4 + $0x50] sm:$0xff] %vm1020, %v993
      %1032 = vst.msk [vmem:[#allocation4 + $0x58] sm:$0xff] %vm1020, %v995
      %1033 = vst.msk [vmem:[#allocation4 + $0x60] sm:$0xff] %vm1020, %v997
      %1034 = vst.msk [vmem:[#allocation4 + $0x68] sm:$0xff] %vm1020, %v999
      %1035 = vst.msk [vmem:[#allocation4 + $0x70] sm:$0xff] %vm1020, %v1001
      %1036 = vst.msk [vmem:[#allocation4 + $0x78] sm:$0xff] %vm1020, %v1003
      %v1037 = vld [vmem:[#allocation2 + $0x2] sm:$0xff]
      %v1038 = vld [vmem:[#allocation2 + $0xa] sm:$0xff]
      %v1039 = vld [vmem:[#allocation2 + $0x1a] sm:$0xff]
      %v1040 = vld [vmem:[#allocation2 + $0x22] sm:$0xff]
      %v1041 = vld [vmem:[#allocation2 + $0x32] sm:$0xff]
      %v1042 = vld [vmem:[#allocation2 + $0x3a] sm:$0xff]
      %v1043 = vld [vmem:[#allocation2 + $0x4a] sm:$0xff]
      %v1044 = vld [vmem:[#allocation2 + $0x52] sm:$0xff]
      %v1045 = vld [vmem:[#allocation2 + $0x62] sm:$0xff]
      %v1046 = vld [vmem:[#allocation2 + $0x6a] sm:$0xff]
      %v1047 = vld [vmem:[#allocation2 + $0x7a] sm:$0xff]
      %v1048 = vld [vmem:[#allocation2 + $0x82] sm:$0xff]
      %v1049 = vld [vmem:[#allocation2 + $0x92] sm:$0xff]
      %v1050 = vld [vmem:[#allocation2 + $0x9a] sm:$0xff]
      %v1051 = vld [vmem:[#allocation2 + $0xaa] sm:$0xff]
      %v1052 = vld [vmem:[#allocation2 + $0xb2] sm:$0xff]
      %v1053 = vld [vmem:[#allocation2 + $0xc2] sm:$0xff]
      %v1054 = vld [vmem:[#allocation2 + $0xca] sm:$0xff]
      %v1055 = vld [vmem:[#allocation2 + $0xda] sm:$0xff]
      %v1056 = vld [vmem:[#allocation2 + $0xe2] sm:$0xff]
      %v1057 = vld [vmem:[#allocation2 + $0xf2] sm:$0xff]
      %v1058 = vld [vmem:[#allocation2 + $0xfa] sm:$0xff]
      %v1059 = vld [vmem:[#allocation2 + $0x10a] sm:$0xff]
      %v1060 = vld [vmem:[#allocation2 + $0x112] sm:$0xff]
      %v1061 = vld [vmem:[#allocation2 + $0x122] sm:$0xff]
      %v1062 = vld [vmem:[#allocation2 + $0x12a] sm:$0xff]
      %v1063 = vld [vmem:[#allocation2 + $0x13a] sm:$0xff]
      %v1064 = vld [vmem:[#allocation2 + $0x142] sm:$0xff]
      %v1065 = vld [vmem:[#allocation2 + $0x152] sm:$0xff]
      %v1066 = vld [vmem:[#allocation2 + $0x15a] sm:$0xff]
      %v1067 = vld [vmem:[#allocation2 + $0x16a] sm:$0xff]
      %v1068 = vld [vmem:[#allocation2 + $0x172] sm:$0xff]
      %v1069 = vpack.c.bf16 %v1038, %v1037
      %v1070 = vpack.c.bf16 %v1040, %v1039
      %v1071 = vpack.c.bf16 %v1042, %v1041
      %v1072 = vpack.c.bf16 %v1044, %v1043
      %v1073 = vpack.c.bf16 %v1046, %v1045
      %v1074 = vpack.c.bf16 %v1048, %v1047
      %v1075 = vpack.c.bf16 %v1050, %v1049
      %v1076 = vpack.c.bf16 %v1052, %v1051
      %v1077 = vpack.c.bf16 %v1054, %v1053
      %v1078 = vpack.c.bf16 %v1056, %v1055
      %v1079 = vpack.c.bf16 %v1058, %v1057
      %v1080 = vpack.c.bf16 %v1060, %v1059
      %v1081 = vpack.c.bf16 %v1062, %v1061
      %v1082 = vpack.c.bf16 %v1064, %v1063
      %v1083 = vpack.c.bf16 %v1066, %v1065
      %v1084 = vpack.c.bf16 %v1068, %v1067
      %1101 = vrot.lane.b32.xlu0 %v1069, 16
      %v1102 = vpop.permute.xlu0 %1101
      %1103 = vrot.lane.b32.xlu0 %v1070, 16
      %v1104 = vpop.permute.xlu0 %1103
      %1105 = vrot.lane.b32.xlu0 %v1071, 16
      %v1106 = vpop.permute.xlu0 %1105
      %1107 = vrot.lane.b32.xlu0 %v1072, 16
      %v1108 = vpop.permute.xlu0 %1107
      %1109 = vrot.lane.b32.xlu0 %v1073, 16
      %v1110 = vpop.permute.xlu0 %1109
      %1111 = vrot.lane.b32.xlu0 %v1074, 16
      %v1112 = vpop.permute.xlu0 %1111
      %1113 = vrot.lane.b32.xlu0 %v1075, 16
      %v1114 = vpop.permute.xlu0 %1113
      %1115 = vrot.lane.b32.xlu0 %v1076, 16
      %v1116 = vpop.permute.xlu0 %1115
      %1117 = vrot.lane.b32.xlu0 %v1077, 16
      %v1118 = vpop.permute.xlu0 %1117
      %1119 = vrot.lane.b32.xlu0 %v1078, 16
      %v1120 = vpop.permute.xlu0 %1119
      %1121 = vrot.lane.b32.xlu0 %v1079, 16
      %v1122 = vpop.permute.xlu0 %1121
      %1123 = vrot.lane.b32.xlu0 %v1080, 16
      %v1124 = vpop.permute.xlu0 %1123
      %1125 = vrot.lane.b32.xlu0 %v1081, 16
      %v1126 = vpop.permute.xlu0 %1125
      %1127 = vrot.lane.b32.xlu0 %v1082, 16
      %v1128 = vpop.permute.xlu0 %1127
      %1129 = vrot.lane.b32.xlu0 %v1083, 16
      %v1130 = vpop.permute.xlu0 %1129
      %1131 = vrot.lane.b32.xlu0 %v1084, 16
      %v1132 = vpop.permute.xlu0 %1131
      %vm1149 = vcmask 195712
      %1150 = vst.msk [vmem:[#allocation4] sm:$0xff] %vm1149, %v1102
      %1151 = vst.msk [vmem:[#allocation4 + $0x8] sm:$0xff] %vm1149, %v1104
      %1152 = vst.msk [vmem:[#allocation4 + $0x10] sm:$0xff] %vm1149, %v1106
      %1153 = vst.msk [vmem:[#allocation4 + $0x18] sm:$0xff] %vm1149, %v1108
      %1154 = vst.msk [vmem:[#allocation4 + $0x20] sm:$0xff] %vm1149, %v1110
      %1155 = vst.msk [vmem:[#allocation4 + $0x28] sm:$0xff] %vm1149, %v1112
      %1156 = vst.msk [vmem:[#allocation4 + $0x30] sm:$0xff] %vm1149, %v1114
      %1157 = vst.msk [vmem:[#allocation4 + $0x38] sm:$0xff] %vm1149, %v1116
      %1158 = vst.msk [vmem:[#allocation4 + $0x40] sm:$0xff] %vm1149, %v1118
      %1159 = vst.msk [vmem:[#allocation4 + $0x48] sm:$0xff] %vm1149, %v1120
      %1160 = vst.msk [vmem:[#allocation4 + $0x50] sm:$0xff] %vm1149, %v1122
      %1161 = vst.msk [vmem:[#allocation4 + $0x58] sm:$0xff] %vm1149, %v1124
      %1162 = vst.msk [vmem:[#allocation4 + $0x60] sm:$0xff] %vm1149, %v1126
      %1163 = vst.msk [vmem:[#allocation4 + $0x68] sm:$0xff] %vm1149, %v1128
      %1164 = vst.msk [vmem:[#allocation4 + $0x70] sm:$0xff] %vm1149, %v1130
      %1165 = vst.msk [vmem:[#allocation4 + $0x78] sm:$0xff] %vm1149, %v1132
      %v1166 = vld [vmem:[%s583] sm:$0xff]
      %v1167 = vld [vmem:[%s583 + $0x8] sm:$0xff]
      %v1168 = vld [vmem:[%s583 + $0x18] sm:$0xff]
      %v1169 = vld [vmem:[%s583 + $0x20] sm:$0xff]
      %v1170 = vld [vmem:[%s583 + $0x30] sm:$0xff]
      %v1171 = vld [vmem:[%s583 + $0x38] sm:$0xff]
      %v1172 = vld [vmem:[%s583 + $0x48] sm:$0xff]
      %v1173 = vld [vmem:[%s583 + $0x50] sm:$0xff]
      %v1174 = vld [vmem:[%s583 + $0x60] sm:$0xff]
      %v1175 = vld [vmem:[%s583 + $0x68] sm:$0xff]
      %v1176 = vld [vmem:[%s583 + $0x78] sm:$0xff]
      %v1177 = vld [vmem:[%s583 + $0x80] sm:$0xff]
      %v1178 = vld [vmem:[%s583 + $0x90] sm:$0xff]
      %v1179 = vld [vmem:[%s583 + $0x98] sm:$0xff]
      %v1180 = vld [vmem:[%s583 + $0xa8] sm:$0xff]
      %v1181 = vld [vmem:[%s583 + $0xb0] sm:$0xff]
      %v1182 = vld [vmem:[%s583 + $0xc0] sm:$0xff]
      %v1183 = vld [vmem:[%s583 + $0xc8] sm:$0xff]
      %v1184 = vld [vmem:[%s583 + $0xd8] sm:$0xff]
      %v1185 = vld [vmem:[%s583 + $0xe0] sm:$0xff]
      %v1186 = vld [vmem:[%s583 + $0xf0] sm:$0xff]
      %v1187 = vld [vmem:[%s583 + $0xf8] sm:$0xff]
      %v1188 = vld [vmem:[%s583 + $0x108] sm:$0xff]
      %v1189 = vld [vmem:[%s583 + $0x110] sm:$0xff]
      %v1190 = vld [vmem:[%s583 + $0x120] sm:$0xff]
      %v1191 = vld [vmem:[%s583 + $0x128] sm:$0xff]
      %v1192 = vld [vmem:[%s583 + $0x138] sm:$0xff]
      %v1193 = vld [vmem:[%s583 + $0x140] sm:$0xff]
      %v1194 = vld [vmem:[%s583 + $0x150] sm:$0xff]
      %v1195 = vld [vmem:[%s583 + $0x158] sm:$0xff]
      %v1196 = vld [vmem:[%s583 + $0x168] sm:$0xff]
      %v1197 = vld [vmem:[%s583 + $0x170] sm:$0xff]
      %v1198 = vpack.c.bf16 %v1167, %v1166
      %v1199 = vpack.c.bf16 %v1169, %v1168
      %v1200 = vpack.c.bf16 %v1171, %v1170
      %v1201 = vpack.c.bf16 %v1173, %v1172
      %v1202 = vpack.c.bf16 %v1175, %v1174
      %v1203 = vpack.c.bf16 %v1177, %v1176
      %v1204 = vpack.c.bf16 %v1179, %v1178
      %v1205 = vpack.c.bf16 %v1181, %v1180
      %v1206 = vpack.c.bf16 %v1183, %v1182
      %v1207 = vpack.c.bf16 %v1185, %v1184
      %v1208 = vpack.c.bf16 %v1187, %v1186
      %v1209 = vpack.c.bf16 %v1189, %v1188
      %v1210 = vpack.c.bf16 %v1191, %v1190
      %v1211 = vpack.c.bf16 %v1193, %v1192
      %v1212 = vpack.c.bf16 %v1195, %v1194
      %v1213 = vpack.c.bf16 %v1197, %v1196
      %1230 = vrot.lane.b32.xlu0 %v1198, 24
      %v1231 = vpop.permute.xlu0 %1230
      %1232 = vrot.lane.b32.xlu0 %v1199, 24
      %v1233 = vpop.permute.xlu0 %1232
      %1234 = vrot.lane.b32.xlu0 %v1200, 24
      %v1235 = vpop.permute.xlu0 %1234
      %1236 = vrot.lane.b32.xlu0 %v1201, 24
      %v1237 = vpop.permute.xlu0 %1236
      %1238 = vrot.lane.b32.xlu0 %v1202, 24
      %v1239 = vpop.permute.xlu0 %1238
      %1240 = vrot.lane.b32.xlu0 %v1203, 24
      %v1241 = vpop.permute.xlu0 %1240
      %1242 = vrot.lane.b32.xlu0 %v1204, 24
      %v1243 = vpop.permute.xlu0 %1242
      %1244 = vrot.lane.b32.xlu0 %v1205, 24
      %v1245 = vpop.permute.xlu0 %1244
      %1246 = vrot.lane.b32.xlu0 %v1206, 24
      %v1247 = vpop.permute.xlu0 %1246
      %1248 = vrot.lane.b32.xlu0 %v1207, 24
      %v1249 = vpop.permute.xlu0 %1248
      %1250 = vrot.lane.b32.xlu0 %v1208, 24
      %v1251 = vpop.permute.xlu0 %1250
      %1252 = vrot.lane.b32.xlu0 %v1209, 24
      %v1253 = vpop.permute.xlu0 %1252
      %1254 = vrot.lane.b32.xlu0 %v1210, 24
      %v1255 = vpop.permute.xlu0 %1254
      %1256 = vrot.lane.b32.xlu0 %v1211, 24
      %v1257 = vpop.permute.xlu0 %1256
      %1258 = vrot.lane.b32.xlu0 %v1212, 24
      %v1259 = vpop.permute.xlu0 %1258
      %1260 = vrot.lane.b32.xlu0 %v1213, 24
      %v1261 = vpop.permute.xlu0 %1260
      %vm1278 = vcmask 261312
      %1279 = vst.msk [vmem:[#allocation4] sm:$0xff] %vm1278, %v1231
      %1280 = vst.msk [vmem:[#allocation4 + $0x8] sm:$0xff] %vm1278, %v1233
      %1281 = vst.msk [vmem:[#allocation4 + $0x10] sm:$0xff] %vm1278, %v1235
      %1282 = vst.msk [vmem:[#allocation4 + $0x18] sm:$0xff] %vm1278, %v1237
      %1283 = vst.msk [vmem:[#allocation4 + $0x20] sm:$0xff] %vm1278, %v1239
      %1284 = vst.msk [vmem:[#allocation4 + $0x28] sm:$0xff] %vm1278, %v1241
      %1285 = vst.msk [vmem:[#allocation4 + $0x30] sm:$0xff] %vm1278, %v1243
      %1286 = vst.msk [vmem:[#allocation4 + $0x38] sm:$0xff] %vm1278, %v1245
      %1287 = vst.msk [vmem:[#allocation4 + $0x40] sm:$0xff] %vm1278, %v1247
      %1288 = vst.msk [vmem:[#allocation4 + $0x48] sm:$0xff] %vm1278, %v1249
      %1289 = vst.msk [vmem:[#allocation4 + $0x50] sm:$0xff] %vm1278, %v1251
      %1290 = vst.msk [vmem:[#allocation4 + $0x58] sm:$0xff] %vm1278, %v1253
      %1291 = vst.msk [vmem:[#allocation4 + $0x60] sm:$0xff] %vm1278, %v1255
      %1292 = vst.msk [vmem:[#allocation4 + $0x68] sm:$0xff] %vm1278, %v1257
      %1293 = vst.msk [vmem:[#allocation4 + $0x70] sm:$0xff] %vm1278, %v1259
      %1294 = vst.msk [vmem:[#allocation4 + $0x78] sm:$0xff] %vm1278, %v1261
      %v1295 = vld [vmem:[%s583 + $0x1] sm:$0xff]
      %v1296 = vld [vmem:[%s583 + $0x9] sm:$0xff]
      %v1297 = vld [vmem:[%s583 + $0x19] sm:$0xff]
      %v1298 = vld [vmem:[%s583 + $0x21] sm:$0xff]
      %v1299 = vld [vmem:[%s583 + $0x31] sm:$0xff]
      %v1300 = vld [vmem:[%s583 + $0x39] sm:$0xff]
      %v1301 = vld [vmem:[%s583 + $0x49] sm:$0xff]
      %v1302 = vld [vmem:[%s583 + $0x51] sm:$0xff]
      %v1303 = vld [vmem:[%s583 + $0x61] sm:$0xff]
      %v1304 = vld [vmem:[%s583 + $0x69] sm:$0xff]
      %v1305 = vld [vmem:[%s583 + $0x79] sm:$0xff]
      %v1306 = vld [vmem:[%s583 + $0x81] sm:$0xff]
      %v1307 = vld [vmem:[%s583 + $0x91] sm:$0xff]
      %v1308 = vld [vmem:[%s583 + $0x99] sm:$0xff]
      %v1309 = vld [vmem:[%s583 + $0xa9] sm:$0xff]
      %v1310 = vld [vmem:[%s583 + $0xb1] sm:$0xff]
      %v1311 = vld [vmem:[%s583 + $0xc1] sm:$0xff]
      %v1312 = vld [vmem:[%s583 + $0xc9] sm:$0xff]
      %v1313 = vld [vmem:[%s583 + $0xd9] sm:$0xff]
      %v1314 = vld [vmem:[%s583 + $0xe1] sm:$0xff]
      %v1315 = vld [vmem:[%s583 + $0xf1] sm:$0xff]
      %v1316 = vld [vmem:[%s583 + $0xf9] sm:$0xff]
      %v1317 = vld [vmem:[%s583 + $0x109] sm:$0xff]
      %v1318 = vld [vmem:[%s583 + $0x111] sm:$0xff]
      %v1319 = vld [vmem:[%s583 + $0x121] sm:$0xff]
      %v1320 = vld [vmem:[%s583 + $0x129] sm:$0xff]
      %v1321 = vld [vmem:[%s583 + $0x139] sm:$0xff]
      %v1322 = vld [vmem:[%s583 + $0x141] sm:$0xff]
      %v1323 = vld [vmem:[%s583 + $0x151] sm:$0xff]
      %v1324 = vld [vmem:[%s583 + $0x159] sm:$0xff]
      %v1325 = vld [vmem:[%s583 + $0x169] sm:$0xff]
      %v1326 = vld [vmem:[%s583 + $0x171] sm:$0xff]
      %v1327 = vpack.c.bf16 %v1296, %v1295
      %v1328 = vpack.c.bf16 %v1298, %v1297
      %v1329 = vpack.c.bf16 %v1300, %v1299
      %v1330 = vpack.c.bf16 %v1302, %v1301
      %v1331 = vpack.c.bf16 %v1304, %v1303
      %v1332 = vpack.c.bf16 %v1306, %v1305
      %v1333 = vpack.c.bf16 %v1308, %v1307
      %v1334 = vpack.c.bf16 %v1310, %v1309
      %v1335 = vpack.c.bf16 %v1312, %v1311
      %v1336 = vpack.c.bf16 %v1314, %v1313
      %v1337 = vpack.c.bf16 %v1316, %v1315
      %v1338 = vpack.c.bf16 %v1318, %v1317
      %v1339 = vpack.c.bf16 %v1320, %v1319
      %v1340 = vpack.c.bf16 %v1322, %v1321
      %v1341 = vpack.c.bf16 %v1324, %v1323
      %v1342 = vpack.c.bf16 %v1326, %v1325
      %1359 = vrot.lane.b32.xlu0 %v1327, 32
      %v1360 = vpop.permute.xlu0 %1359
      %1361 = vrot.lane.b32.xlu0 %v1328, 32
      %v1362 = vpop.permute.xlu0 %1361
      %1363 = vrot.lane.b32.xlu0 %v1329, 32
      %v1364 = vpop.permute.xlu0 %1363
      %1365 = vrot.lane.b32.xlu0 %v1330, 32
      %v1366 = vpop.permute.xlu0 %1365
      %1367 = vrot.lane.b32.xlu0 %v1331, 32
      %v1368 = vpop.permute.xlu0 %1367
      %1369 = vrot.lane.b32.xlu0 %v1332, 32
      %v1370 = vpop.permute.xlu0 %1369
      %1371 = vrot.lane.b32.xlu0 %v1333, 32
      %v1372 = vpop.permute.xlu0 %1371
      %1373 = vrot.lane.b32.xlu0 %v1334, 32
      %v1374 = vpop.permute.xlu0 %1373
      %1375 = vrot.lane.b32.xlu0 %v1335, 32
      %v1376 = vpop.permute.xlu0 %1375
      %1377 = vrot.lane.b32.xlu0 %v1336, 32
      %v1378 = vpop.permute.xlu0 %1377
      %1379 = vrot.lane.b32.xlu0 %v1337, 32
      %v1380 = vpop.permute.xlu0 %1379
      %1381 = vrot.lane.b32.xlu0 %v1338, 32
      %v1382 = vpop.permute.xlu0 %1381
      %1383 = vrot.lane.b32.xlu0 %v1339, 32
      %v1384 = vpop.permute.xlu0 %1383
      %1385 = vrot.lane.b32.xlu0 %v1340, 32
      %v1386 = vpop.permute.xlu0 %1385
      %1387 = vrot.lane.b32.xlu0 %v1341, 32
      %v1388 = vpop.permute.xlu0 %1387
      %1389 = vrot.lane.b32.xlu0 %v1342, 32
      %v1390 = vpop.permute.xlu0 %1389
      %vm1407 = vcmask 326912
      %1408 = vst.msk [vmem:[#allocation4] sm:$0xff] %vm1407, %v1360
      %1409 = vst.msk [vmem:[#allocation4 + $0x8] sm:$0xff] %vm1407, %v1362
      %1410 = vst.msk [vmem:[#allocation4 + $0x10] sm:$0xff] %vm1407, %v1364
      %1411 = vst.msk [vmem:[#allocation4 + $0x18] sm:$0xff] %vm1407, %v1366
      %1412 = vst.msk [vmem:[#allocation4 + $0x20] sm:$0xff] %vm1407, %v1368
      %1413 = vst.msk [vmem:[#allocation4 + $0x28] sm:$0xff] %vm1407, %v1370
      %1414 = vst.msk [vmem:[#allocation4 + $0x30] sm:$0xff] %vm1407, %v1372
      %1415 = vst.msk [vmem:[#allocation4 + $0x38] sm:$0xff] %vm1407, %v1374
      %1416 = vst.msk [vmem:[#allocation4 + $0x40] sm:$0xff] %vm1407, %v1376
      %1417 = vst.msk [vmem:[#allocation4 + $0x48] sm:$0xff] %vm1407, %v1378
      %1418 = vst.msk [vmem:[#allocation4 + $0x50] sm:$0xff] %vm1407, %v1380
      %1419 = vst.msk [vmem:[#allocation4 + $0x58] sm:$0xff] %vm1407, %v1382
      %1420 = vst.msk [vmem:[#allocation4 + $0x60] sm:$0xff] %vm1407, %v1384
      %1421 = vst.msk [vmem:[#allocation4 + $0x68] sm:$0xff] %vm1407, %v1386
      %1422 = vst.msk [vmem:[#allocation4 + $0x70] sm:$0xff] %vm1407, %v1388
      %1423 = vst.msk [vmem:[#allocation4 + $0x78] sm:$0xff] %vm1407, %v1390
      %v1424 = vld [vmem:[%s583 + $0x2] sm:$0xff]
      %v1425 = vld [vmem:[%s583 + $0xa] sm:$0xff]
      %v1426 = vld [vmem:[%s583 + $0x1a] sm:$0xff]
      %v1427 = vld [vmem:[%s583 + $0x22] sm:$0xff]
      %v1428 = vld [vmem:[%s583 + $0x32] sm:$0xff]
      %v1429 = vld [vmem:[%s583 + $0x3a] sm:$0xff]
      %v1430 = vld [vmem:[%s583 + $0x4a] sm:$0xff]
      %v1431 = vld [vmem:[%s583 + $0x52] sm:$0xff]
      %v1432 = vld [vmem:[%s583 + $0x62] sm:$0xff]
      %v1433 = vld [vmem:[%s583 + $0x6a] sm:$0xff]
      %v1434 = vld [vmem:[%s583 + $0x7a] sm:$0xff]
      %v1435 = vld [vmem:[%s583 + $0x82] sm:$0xff]
      %v1436 = vld [vmem:[%s583 + $0x92] sm:$0xff]
      %v1437 = vld [vmem:[%s583 + $0x9a] sm:$0xff]
      %v1438 = vld [vmem:[%s583 + $0xaa] sm:$0xff]
      %v1439 = vld [vmem:[%s583 + $0xb2] sm:$0xff]
      %v1440 = vld [vmem:[%s583 + $0xc2] sm:$0xff]
      %v1441 = vld [vmem:[%s583 + $0xca] sm:$0xff]
      %v1442 = vld [vmem:[%s583 + $0xda] sm:$0xff]
      %v1443 = vld [vmem:[%s583 + $0xe2] sm:$0xff]
      %v1444 = vld [vmem:[%s583 + $0xf2] sm:$0xff]
      %v1445 = vld [vmem:[%s583 + $0xfa] sm:$0xff]
      %v1446 = vld [vmem:[%s583 + $0x10a] sm:$0xff]
      %v1447 = vld [vmem:[%s583 + $0x112] sm:$0xff]
      %v1448 = vld [vmem:[%s583 + $0x122] sm:$0xff]
      %v1449 = vld [vmem:[%s583 + $0x12a] sm:$0xff]
      %v1450 = vld [vmem:[%s583 + $0x13a] sm:$0xff]
      %v1451 = vld [vmem:[%s583 + $0x142] sm:$0xff]
      %v1452 = vld [vmem:[%s583 + $0x152] sm:$0xff]
      %v1453 = vld [vmem:[%s583 + $0x15a] sm:$0xff]
      %v1454 = vld [vmem:[%s583 + $0x16a] sm:$0xff]
      %v1455 = vld [vmem:[%s583 + $0x172] sm:$0xff]
      %v1456 = vpack.c.bf16 %v1425, %v1424
      %v1457 = vpack.c.bf16 %v1427, %v1426
      %v1458 = vpack.c.bf16 %v1429, %v1428
      %v1459 = vpack.c.bf16 %v1431, %v1430
      %v1460 = vpack.c.bf16 %v1433, %v1432
      %v1461 = vpack.c.bf16 %v1435, %v1434
      %v1462 = vpack.c.bf16 %v1437, %v1436
      %v1463 = vpack.c.bf16 %v1439, %v1438
      %v1464 = vpack.c.bf16 %v1441, %v1440
      %v1465 = vpack.c.bf16 %v1443, %v1442
      %v1466 = vpack.c.bf16 %v1445, %v1444
      %v1467 = vpack.c.bf16 %v1447, %v1446
      %v1468 = vpack.c.bf16 %v1449, %v1448
      %v1469 = vpack.c.bf16 %v1451, %v1450
      %v1470 = vpack.c.bf16 %v1453, %v1452
      %v1471 = vpack.c.bf16 %v1455, %v1454
      %1488 = vrot.lane.b32.xlu0 %v1456, 40
      %v1489 = vpop.permute.xlu0 %1488
      %1490 = vrot.lane.b32.xlu0 %v1457, 40
      %v1491 = vpop.permute.xlu0 %1490
      %1492 = vrot.lane.b32.xlu0 %v1458, 40
      %v1493 = vpop.permute.xlu0 %1492
      %1494 = vrot.lane.b32.xlu0 %v1459, 40
      %v1495 = vpop.permute.xlu0 %1494
      %1496 = vrot.lane.b32.xlu0 %v1460, 40
      %v1497 = vpop.permute.xlu0 %1496
      %1498 = vrot.lane.b32.xlu0 %v1461, 40
      %v1499 = vpop.permute.xlu0 %1498
      %1500 = vrot.lane.b32.xlu0 %v1462, 40
      %v1501 = vpop.permute.xlu0 %1500
      %1502 = vrot.lane.b32.xlu0 %v1463, 40
      %v1503 = vpop.permute.xlu0 %1502
      %1504 = vrot.lane.b32.xlu0 %v1464, 40
      %v1505 = vpop.permute.xlu0 %1504
      %1506 = vrot.lane.b32.xlu0 %v1465, 40
      %v1507 = vpop.permute.xlu0 %1506
      %1508 = vrot.lane.b32.xlu0 %v1466, 40
      %v1509 = vpop.permute.xlu0 %1508
      %1510 = vrot.lane.b32.xlu0 %v1467, 40
      %v1511 = vpop.permute.xlu0 %1510
      %1512 = vrot.lane.b32.xlu0 %v1468, 40
      %v1513 = vpop.permute.xlu0 %1512
      %1514 = vrot.lane.b32.xlu0 %v1469, 40
      %v1515 = vpop.permute.xlu0 %1514
      %1516 = vrot.lane.b32.xlu0 %v1470, 40
      %v1517 = vpop.permute.xlu0 %1516
      %1518 = vrot.lane.b32.xlu0 %v1471, 40
      %v1519 = vpop.permute.xlu0 %1518
      %vm1536 = vcmask 392512
      %1537 = vst.msk [vmem:[#allocation4] sm:$0xff] %vm1536, %v1489
      %1538 = vst.msk [vmem:[#allocation4 + $0x8] sm:$0xff] %vm1536, %v1491
      %1539 = vst.msk [vmem:[#allocation4 + $0x10] sm:$0xff] %vm1536, %v1493
      %1540 = vst.msk [vmem:[#allocation4 + $0x18] sm:$0xff] %vm1536, %v1495
      %1541 = vst.msk [vmem:[#allocation4 + $0x20] sm:$0xff] %vm1536, %v1497
      %1542 = vst.msk [vmem:[#allocation4 + $0x28] sm:$0xff] %vm1536, %v1499
      %1543 = vst.msk [vmem:[#allocation4 + $0x30] sm:$0xff] %vm1536, %v1501
      %1544 = vst.msk [vmem:[#allocation4 + $0x38] sm:$0xff] %vm1536, %v1503
      %1545 = vst.msk [vmem:[#allocation4 + $0x40] sm:$0xff] %vm1536, %v1505
      %1546 = vst.msk [vmem:[#allocation4 + $0x48] sm:$0xff] %vm1536, %v1507
      %1547 = vst.msk [vmem:[#allocation4 + $0x50] sm:$0xff] %vm1536, %v1509
      %1548 = vst.msk [vmem:[#allocation4 + $0x58] sm:$0xff] %vm1536, %v1511
      %1549 = vst.msk [vmem:[#allocation4 + $0x60] sm:$0xff] %vm1536, %v1513
      %1550 = vst.msk [vmem:[#allocation4 + $0x68] sm:$0xff] %vm1536, %v1515
      %1551 = vst.msk [vmem:[#allocation4 + $0x70] sm:$0xff] %vm1536, %v1517
      %1552 = vst.msk [vmem:[#allocation4 + $0x78] sm:$0xff] %vm1536, %v1519
      %s1553 = scalar_lea.vmem [#allocation2], 48
      %v1554 = vld [vmem:[%s1553] sm:$0xff]
      %v1555 = vld [vmem:[%s1553 + $0x8] sm:$0xff]
      %v1556 = vld [vmem:[%s1553 + $0x18] sm:$0xff]
      %v1557 = vld [vmem:[%s1553 + $0x20] sm:$0xff]
      %v1558 = vld [vmem:[%s1553 + $0x30] sm:$0xff]
      %v1559 = vld [vmem:[%s1553 + $0x38] sm:$0xff]
      %v1560 = vld [vmem:[%s1553 + $0x48] sm:$0xff]
      %v1561 = vld [vmem:[%s1553 + $0x50] sm:$0xff]
      %v1562 = vld [vmem:[%s1553 + $0x60] sm:$0xff]
      %v1563 = vld [vmem:[%s1553 + $0x68] sm:$0xff]
      %v1564 = vld [vmem:[%s1553 + $0x78] sm:$0xff]
      %v1565 = vld [vmem:[%s1553 + $0x80] sm:$0xff]
      %v1566 = vld [vmem:[%s1553 + $0x90] sm:$0xff]
      %v1567 = vld [vmem:[%s1553 + $0x98] sm:$0xff]
      %v1568 = vld [vmem:[%s1553 + $0xa8] sm:$0xff]
      %v1569 = vld [vmem:[%s1553 + $0xb0] sm:$0xff]
      %v1570 = vld [vmem:[%s1553 + $0xc0] sm:$0xff]
      %v1571 = vld [vmem:[%s1553 + $0xc8] sm:$0xff]
      %v1572 = vld [vmem:[%s1553 + $0xd8] sm:$0xff]
      %v1573 = vld [vmem:[%s1553 + $0xe0] sm:$0xff]
      %v1574 = vld [vmem:[%s1553 + $0xf0] sm:$0xff]
      %v1575 = vld [vmem:[%s1553 + $0xf8] sm:$0xff]
      %v1576 = vld [vmem:[%s1553 + $0x108] sm:$0xff]
      %v1577 = vld [vmem:[%s1553 + $0x110] sm:$0xff]
      %v1578 = vld [vmem:[%s1553 + $0x120] sm:$0xff]
      %v1579 = vld [vmem:[%s1553 + $0x128] sm:$0xff]
      %v1580 = vld [vmem:[%s1553 + $0x138] sm:$0xff]
      %v1581 = vld [vmem:[%s1553 + $0x140] sm:$0xff]
      %v1582 = vld [vmem:[%s1553 + $0x150] sm:$0xff]
      %v1583 = vld [vmem:[%s1553 + $0x158] sm:$0xff]
      %v1584 = vld [vmem:[%s1553 + $0x168] sm:$0xff]
      %v1585 = vld [vmem:[%s1553 + $0x170] sm:$0xff]
      %v1586 = vpack.c.bf16 %v1555, %v1554
      %v1587 = vpack.c.bf16 %v1557, %v1556
      %v1588 = vpack.c.bf16 %v1559, %v1558
      %v1589 = vpack.c.bf16 %v1561, %v1560
      %v1590 = vpack.c.bf16 %v1563, %v1562
      %v1591 = vpack.c.bf16 %v1565, %v1564
      %v1592 = vpack.c.bf16 %v1567, %v1566
      %v1593 = vpack.c.bf16 %v1569, %v1568
      %v1594 = vpack.c.bf16 %v1571, %v1570
      %v1595 = vpack.c.bf16 %v1573, %v1572
      %v1596 = vpack.c.bf16 %v1575, %v1574
      %v1597 = vpack.c.bf16 %v1577, %v1576
      %v1598 = vpack.c.bf16 %v1579, %v1578
      %v1599 = vpack.c.bf16 %v1581, %v1580
      %v1600 = vpack.c.bf16 %v1583, %v1582
      %v1601 = vpack.c.bf16 %v1585, %v1584
      %1618 = vrot.lane.b32.xlu0 %v1586, 48
      %v1619 = vpop.permute.xlu0 %1618
      %1620 = vrot.lane.b32.xlu0 %v1587, 48
      %v1621 = vpop.permute.xlu0 %1620
      %1622 = vrot.lane.b32.xlu0 %v1588, 48
      %v1623 = vpop.permute.xlu0 %1622
      %1624 = vrot.lane.b32.xlu0 %v1589, 48
      %v1625 = vpop.permute.xlu0 %1624
      %1626 = vrot.lane.b32.xlu0 %v1590, 48
      %v1627 = vpop.permute.xlu0 %1626
      %1628 = vrot.lane.b32.xlu0 %v1591, 48
      %v1629 = vpop.permute.xlu0 %1628
      %1630 = vrot.lane.b32.xlu0 %v1592, 48
      %v1631 = vpop.permute.xlu0 %1630
      %1632 = vrot.lane.b32.xlu0 %v1593, 48
      %v1633 = vpop.permute.xlu0 %1632
      %1634 = vrot.lane.b32.xlu0 %v1594, 48
      %v1635 = vpop.permute.xlu0 %1634
      %1636 = vrot.lane.b32.xlu0 %v1595, 48
      %v1637 = vpop.permute.xlu0 %1636
      %1638 = vrot.lane.b32.xlu0 %v1596, 48
      %v1639 = vpop.permute.xlu0 %1638
      %1640 = vrot.lane.b32.xlu0 %v1597, 48
      %v1641 = vpop.permute.xlu0 %1640
      %1642 = vrot.lane.b32.xlu0 %v1598, 48
      %v1643 = vpop.permute.xlu0 %1642
      %1644 = vrot.lane.b32.xlu0 %v1599, 48
      %v1645 = vpop.permute.xlu0 %1644
      %1646 = vrot.lane.b32.xlu0 %v1600, 48
      %v1647 = vpop.permute.xlu0 %1646
      %1648 = vrot.lane.b32.xlu0 %v1601, 48
      %v1649 = vpop.permute.xlu0 %1648
      %vm1666 = vcmask 458112
      %1667 = vst.msk [vmem:[#allocation4] sm:$0xff] %vm1666, %v1619
      %1668 = vst.msk [vmem:[#allocation4 + $0x8] sm:$0xff] %vm1666, %v1621
      %1669 = vst.msk [vmem:[#allocation4 + $0x10] sm:$0xff] %vm1666, %v1623
      %1670 = vst.msk [vmem:[#allocation4 + $0x18] sm:$0xff] %vm1666, %v1625
      %1671 = vst.msk [vmem:[#allocation4 + $0x20] sm:$0xff] %vm1666, %v1627
      %1672 = vst.msk [vmem:[#allocation4 + $0x28] sm:$0xff] %vm1666, %v1629
      %1673 = vst.msk [vmem:[#allocation4 + $0x30] sm:$0xff] %vm1666, %v1631
      %1674 = vst.msk [vmem:[#allocation4 + $0x38] sm:$0xff] %vm1666, %v1633
      %1675 = vst.msk [vmem:[#allocation4 + $0x40] sm:$0xff] %vm1666, %v1635
      %1676 = vst.msk [vmem:[#allocation4 + $0x48] sm:$0xff] %vm1666, %v1637
      %1677 = vst.msk [vmem:[#allocation4 + $0x50] sm:$0xff] %vm1666, %v1639
      %1678 = vst.msk [vmem:[#allocation4 + $0x58] sm:$0xff] %vm1666, %v1641
      %1679 = vst.msk [vmem:[#allocation4 + $0x60] sm:$0xff] %vm1666, %v1643
      %1680 = vst.msk [vmem:[#allocation4 + $0x68] sm:$0xff] %vm1666, %v1645
      %1681 = vst.msk [vmem:[#allocation4 + $0x70] sm:$0xff] %vm1666, %v1647
      %1682 = vst.msk [vmem:[#allocation4 + $0x78] sm:$0xff] %vm1666, %v1649
      %v1683 = vld [vmem:[%s1553 + $0x1] sm:$0xff]
      %v1684 = vld [vmem:[%s1553 + $0x9] sm:$0xff]
      %v1685 = vld [vmem:[%s1553 + $0x19] sm:$0xff]
      %v1686 = vld [vmem:[%s1553 + $0x21] sm:$0xff]
      %v1687 = vld [vmem:[%s1553 + $0x31] sm:$0xff]
      %v1688 = vld [vmem:[%s1553 + $0x39] sm:$0xff]
      %v1689 = vld [vmem:[%s1553 + $0x49] sm:$0xff]
      %v1690 = vld [vmem:[%s1553 + $0x51] sm:$0xff]
      %v1691 = vld [vmem:[%s1553 + $0x61] sm:$0xff]
      %v1692 = vld [vmem:[%s1553 + $0x69] sm:$0xff]
      %v1693 = vld [vmem:[%s1553 + $0x79] sm:$0xff]
      %v1694 = vld [vmem:[%s1553 + $0x81] sm:$0xff]
      %v1695 = vld [vmem:[%s1553 + $0x91] sm:$0xff]
      %v1696 = vld [vmem:[%s1553 + $0x99] sm:$0xff]
      %v1697 = vld [vmem:[%s1553 + $0xa9] sm:$0xff]
      %v1698 = vld [vmem:[%s1553 + $0xb1] sm:$0xff]
      %v1699 = vld [vmem:[%s1553 + $0xc1] sm:$0xff]
      %v1700 = vld [vmem:[%s1553 + $0xc9] sm:$0xff]
      %v1701 = vld [vmem:[%s1553 + $0xd9] sm:$0xff]
      %v1702 = vld [vmem:[%s1553 + $0xe1] sm:$0xff]
      %v1703 = vld [vmem:[%s1553 + $0xf1] sm:$0xff]
      %v1704 = vld [vmem:[%s1553 + $0xf9] sm:$0xff]
      %v1705 = vld [vmem:[%s1553 + $0x109] sm:$0xff]
      %v1706 = vld [vmem:[%s1553 + $0x111] sm:$0xff]
      %v1707 = vld [vmem:[%s1553 + $0x121] sm:$0xff]
      %v1708 = vld [vmem:[%s1553 + $0x129] sm:$0xff]
      %v1709 = vld [vmem:[%s1553 + $0x139] sm:$0xff]
      %v1710 = vld [vmem:[%s1553 + $0x141] sm:$0xff]
      %v1711 = vld [vmem:[%s1553 + $0x151] sm:$0xff]
      %v1712 = vld [vmem:[%s1553 + $0x159] sm:$0xff]
      %v1713 = vld [vmem:[%s1553 + $0x169] sm:$0xff]
      %v1714 = vld [vmem:[%s1553 + $0x171] sm:$0xff]
      %v1715 = vpack.c.bf16 %v1684, %v1683
      %v1716 = vpack.c.bf16 %v1686, %v1685
      %v1717 = vpack.c.bf16 %v1688, %v1687
      %v1718 = vpack.c.bf16 %v1690, %v1689
      %v1719 = vpack.c.bf16 %v1692, %v1691
      %v1720 = vpack.c.bf16 %v1694, %v1693
      %v1721 = vpack.c.bf16 %v1696, %v1695
      %v1722 = vpack.c.bf16 %v1698, %v1697
      %v1723 = vpack.c.bf16 %v1700, %v1699
      %v1724 = vpack.c.bf16 %v1702, %v1701
      %v1725 = vpack.c.bf16 %v1704, %v1703
      %v1726 = vpack.c.bf16 %v1706, %v1705
      %v1727 = vpack.c.bf16 %v1708, %v1707
      %v1728 = vpack.c.bf16 %v1710, %v1709
      %v1729 = vpack.c.bf16 %v1712, %v1711
      %v1730 = vpack.c.bf16 %v1714, %v1713
      %1747 = vrot.lane.b32.xlu0 %v1715, 56
      %v1748 = vpop.permute.xlu0 %1747
      %1749 = vrot.lane.b32.xlu0 %v1716, 56
      %v1750 = vpop.permute.xlu0 %1749
      %1751 = vrot.lane.b32.xlu0 %v1717, 56
      %v1752 = vpop.permute.xlu0 %1751
      %1753 = vrot.lane.b32.xlu0 %v1718, 56
      %v1754 = vpop.permute.xlu0 %1753
      %1755 = vrot.lane.b32.xlu0 %v1719, 56
      %v1756 = vpop.permute.xlu0 %1755
      %1757 = vrot.lane.b32.xlu0 %v1720, 56
      %v1758 = vpop.permute.xlu0 %1757
      %1759 = vrot.lane.b32.xlu0 %v1721, 56
      %v1760 = vpop.permute.xlu0 %1759
      %1761 = vrot.lane.b32.xlu0 %v1722, 56
      %v1762 = vpop.permute.xlu0 %1761
      %1763 = vrot.lane.b32.xlu0 %v1723, 56
      %v1764 = vpop.permute.xlu0 %1763
      %1765 = vrot.lane.b32.xlu0 %v1724, 56
      %v1766 = vpop.permute.xlu0 %1765
      %1767 = vrot.lane.b32.xlu0 %v1725, 56
      %v1768 = vpop.permute.xlu0 %1767
      %1769 = vrot.lane.b32.xlu0 %v1726, 56
      %v1770 = vpop.permute.xlu0 %1769
      %1771 = vrot.lane.b32.xlu0 %v1727, 56
      %v1772 = vpop.permute.xlu0 %1771
      %1773 = vrot.lane.b32.xlu0 %v1728, 56
      %v1774 = vpop.permute.xlu0 %1773
      %1775 = vrot.lane.b32.xlu0 %v1729, 56
      %v1776 = vpop.permute.xlu0 %1775
      %1777 = vrot.lane.b32.xlu0 %v1730, 56
      %v1778 = vpop.permute.xlu0 %1777
      %vm1795 = vcmask 523712
      %1796 = vst.msk [vmem:[#allocation4] sm:$0xff] %vm1795, %v1748
      %1797 = vst.msk [vmem:[#allocation4 + $0x8] sm:$0xff] %vm1795, %v1750
      %1798 = vst.msk [vmem:[#allocation4 + $0x10] sm:$0xff] %vm1795, %v1752
      %1799 = vst.msk [vmem:[#allocation4 + $0x18] sm:$0xff] %vm1795, %v1754
      %1800 = vst.msk [vmem:[#allocation4 + $0x20] sm:$0xff] %vm1795, %v1756
      %1801 = vst.msk [vmem:[#allocation4 + $0x28] sm:$0xff] %vm1795, %v1758
      %1802 = vst.msk [vmem:[#allocation4 + $0x30] sm:$0xff] %vm1795, %v1760
      %1803 = vst.msk [vmem:[#allocation4 + $0x38] sm:$0xff] %vm1795, %v1762
      %1804 = vst.msk [vmem:[#allocation4 + $0x40] sm:$0xff] %vm1795, %v1764
      %1805 = vst.msk [vmem:[#allocation4 + $0x48] sm:$0xff] %vm1795, %v1766
      %1806 = vst.msk [vmem:[#allocation4 + $0x50] sm:$0xff] %vm1795, %v1768
      %1807 = vst.msk [vmem:[#allocation4 + $0x58] sm:$0xff] %vm1795, %v1770
      %1808 = vst.msk [vmem:[#allocation4 + $0x60] sm:$0xff] %vm1795, %v1772
      %1809 = vst.msk [vmem:[#allocation4 + $0x68] sm:$0xff] %vm1795, %v1774
      %1810 = vst.msk [vmem:[#allocation4 + $0x70] sm:$0xff] %vm1795, %v1776
      %1811 = vst.msk [vmem:[#allocation4 + $0x78] sm:$0xff] %vm1795, %v1778
      %v1812 = vld [vmem:[%s1553 + $0x2] sm:$0xff]
      %v1813 = vld [vmem:[%s1553 + $0xa] sm:$0xff]
      %v1814 = vld [vmem:[%s1553 + $0x1a] sm:$0xff]
      %v1815 = vld [vmem:[%s1553 + $0x22] sm:$0xff]
      %v1816 = vld [vmem:[%s1553 + $0x32] sm:$0xff]
      %v1817 = vld [vmem:[%s1553 + $0x3a] sm:$0xff]
      %v1818 = vld [vmem:[%s1553 + $0x4a] sm:$0xff]
      %v1819 = vld [vmem:[%s1553 + $0x52] sm:$0xff]
      %v1820 = vld [vmem:[%s1553 + $0x62] sm:$0xff]
      %v1821 = vld [vmem:[%s1553 + $0x6a] sm:$0xff]
      %v1822 = vld [vmem:[%s1553 + $0x7a] sm:$0xff]
      %v1823 = vld [vmem:[%s1553 + $0x82] sm:$0xff]
      %v1824 = vld [vmem:[%s1553 + $0x92] sm:$0xff]
      %v1825 = vld [vmem:[%s1553 + $0x9a] sm:$0xff]
      %v1826 = vld [vmem:[%s1553 + $0xaa] sm:$0xff]
      %v1827 = vld [vmem:[%s1553 + $0xb2] sm:$0xff]
      %v1828 = vld [vmem:[%s1553 + $0xc2] sm:$0xff]
      %v1829 = vld [vmem:[%s1553 + $0xca] sm:$0xff]
      %v1830 = vld [vmem:[%s1553 + $0xda] sm:$0xff]
      %v1831 = vld [vmem:[%s1553 + $0xe2] sm:$0xff]
      %v1832 = vld [vmem:[%s1553 + $0xf2] sm:$0xff]
      %v1833 = vld [vmem:[%s1553 + $0xfa] sm:$0xff]
      %v1834 = vld [vmem:[%s1553 + $0x10a] sm:$0xff]
      %v1835 = vld [vmem:[%s1553 + $0x112] sm:$0xff]
      %v1836 = vld [vmem:[%s1553 + $0x122] sm:$0xff]
      %v1837 = vld [vmem:[%s1553 + $0x12a] sm:$0xff]
      %v1838 = vld [vmem:[%s1553 + $0x13a] sm:$0xff]
      %v1839 = vld [vmem:[%s1553 + $0x142] sm:$0xff]
      %v1840 = vld [vmem:[%s1553 + $0x152] sm:$0xff]
      %v1841 = vld [vmem:[%s1553 + $0x15a] sm:$0xff]
      %v1842 = vld [vmem:[%s1553 + $0x16a] sm:$0xff]
      %v1843 = vld [vmem:[%s1553 + $0x172] sm:$0xff]
      %v1844 = vpack.c.bf16 %v1813, %v1812
      %v1845 = vpack.c.bf16 %v1815, %v1814
      %v1846 = vpack.c.bf16 %v1817, %v1816
      %v1847 = vpack.c.bf16 %v1819, %v1818
      %v1848 = vpack.c.bf16 %v1821, %v1820
      %v1849 = vpack.c.bf16 %v1823, %v1822
      %v1850 = vpack.c.bf16 %v1825, %v1824
      %v1851 = vpack.c.bf16 %v1827, %v1826
      %v1852 = vpack.c.bf16 %v1829, %v1828
      %v1853 = vpack.c.bf16 %v1831, %v1830
      %v1854 = vpack.c.bf16 %v1833, %v1832
      %v1855 = vpack.c.bf16 %v1835, %v1834
      %v1856 = vpack.c.bf16 %v1837, %v1836
      %v1857 = vpack.c.bf16 %v1839, %v1838
      %v1858 = vpack.c.bf16 %v1841, %v1840
      %v1859 = vpack.c.bf16 %v1843, %v1842
      %1876 = vrot.lane.b32.xlu0 %v1844, 64
      %v1877 = vpop.permute.xlu0 %1876
      %1878 = vrot.lane.b32.xlu0 %v1845, 64
      %v1879 = vpop.permute.xlu0 %1878
      %1880 = vrot.lane.b32.xlu0 %v1846, 64
      %v1881 = vpop.permute.xlu0 %1880
      %1882 = vrot.lane.b32.xlu0 %v1847, 64
      %v1883 = vpop.permute.xlu0 %1882
      %1884 = vrot.lane.b32.xlu0 %v1848, 64
      %v1885 = vpop.permute.xlu0 %1884
      %1886 = vrot.lane.b32.xlu0 %v1849, 64
      %v1887 = vpop.permute.xlu0 %1886
      %1888 = vrot.lane.b32.xlu0 %v1850, 64
      %v1889 = vpop.permute.xlu0 %1888
      %1890 = vrot.lane.b32.xlu0 %v1851, 64
      %v1891 = vpop.permute.xlu0 %1890
      %1892 = vrot.lane.b32.xlu0 %v1852, 64
      %v1893 = vpop.permute.xlu0 %1892
      %1894 = vrot.lane.b32.xlu0 %v1853, 64
      %v1895 = vpop.permute.xlu0 %1894
      %1896 = vrot.lane.b32.xlu0 %v1854, 64
      %v1897 = vpop.permute.xlu0 %1896
      %1898 = vrot.lane.b32.xlu0 %v1855, 64
      %v1899 = vpop.permute.xlu0 %1898
      %1900 = vrot.lane.b32.xlu0 %v1856, 64
      %v1901 = vpop.permute.xlu0 %1900
      %1902 = vrot.lane.b32.xlu0 %v1857, 64
      %v1903 = vpop.permute.xlu0 %1902
      %1904 = vrot.lane.b32.xlu0 %v1858, 64
      %v1905 = vpop.permute.xlu0 %1904
      %1906 = vrot.lane.b32.xlu0 %v1859, 64
      %v1907 = vpop.permute.xlu0 %1906
      %vm1924 = vcmask 589312
      %1925 = vst.msk [vmem:[#allocation4] sm:$0xff] %vm1924, %v1877
      %1926 = vst.msk [vmem:[#allocation4 + $0x8] sm:$0xff] %vm1924, %v1879
      %1927 = vst.msk [vmem:[#allocation4 + $0x10] sm:$0xff] %vm1924, %v1881
      %1928 = vst.msk [vmem:[#allocation4 + $0x18] sm:$0xff] %vm1924, %v1883
      %1929 = vst.msk [vmem:[#allocation4 + $0x20] sm:$0xff] %vm1924, %v1885
      %1930 = vst.msk [vmem:[#allocation4 + $0x28] sm:$0xff] %vm1924, %v1887
      %1931 = vst.msk [vmem:[#allocation4 + $0x30] sm:$0xff] %vm1924, %v1889
      %1932 = vst.msk [vmem:[#allocation4 + $0x38] sm:$0xff] %vm1924, %v1891
      %1933 = vst.msk [vmem:[#allocation4 + $0x40] sm:$0xff] %vm1924, %v1893
      %1934 = vst.msk [vmem:[#allocation4 + $0x48] sm:$0xff] %vm1924, %v1895
      %1935 = vst.msk [vmem:[#allocation4 + $0x50] sm:$0xff] %vm1924, %v1897
      %1936 = vst.msk [vmem:[#allocation4 + $0x58] sm:$0xff] %vm1924, %v1899
      %1937 = vst.msk [vmem:[#allocation4 + $0x60] sm:$0xff] %vm1924, %v1901
      %1938 = vst.msk [vmem:[#allocation4 + $0x68] sm:$0xff] %vm1924, %v1903
      %1939 = vst.msk [vmem:[#allocation4 + $0x70] sm:$0xff] %vm1924, %v1905
      %1940 = vst.msk [vmem:[#allocation4 + $0x78] sm:$0xff] %vm1924, %v1907
      %v1941 = vld [vmem:[#allocation4] sm:$0xff]
      %v1942 = vld [vmem:[#allocation4 + $0x8] sm:$0xff]
      %v1943 = vld [vmem:[#allocation4 + $0x10] sm:$0xff]
      %v1944 = vld [vmem:[#allocation4 + $0x18] sm:$0xff]
      %v1945 = vld [vmem:[#allocation4 + $0x20] sm:$0xff]
      %v1946 = vld [vmem:[#allocation4 + $0x28] sm:$0xff]
      %v1947 = vld [vmem:[#allocation4 + $0x30] sm:$0xff]
      %v1948 = vld [vmem:[#allocation4 + $0x38] sm:$0xff]
      %v1949 = vld [vmem:[#allocation4 + $0x40] sm:$0xff]
      %v1950 = vld [vmem:[#allocation4 + $0x48] sm:$0xff]
      %v1951 = vld [vmem:[#allocation4 + $0x50] sm:$0xff]
      %v1952 = vld [vmem:[#allocation4 + $0x58] sm:$0xff]
      %v1953 = vld [vmem:[#allocation4 + $0x60] sm:$0xff]
      %v1954 = vld [vmem:[#allocation4 + $0x68] sm:$0xff]
      %v1955 = vld [vmem:[#allocation4 + $0x70] sm:$0xff]
      %v1956 = vld [vmem:[#allocation4 + $0x78] sm:$0xff]
      %v1957 = vld [vmem:[%s2] sm:$0xf]
      %v1958 = vld [vmem:[%s2 + $0x4] sm:$0xf]
      %v1959 = vld [vmem:[%s2 + $0x8] sm:$0xf]
      %v1960 = vld [vmem:[%s2 + $0xc] sm:$0xf]
      %v1961 = vld [vmem:[%s2 + $0x10] sm:$0xf]
      %v1962 = vld [vmem:[%s2 + $0x14] sm:$0xf]
      %v1963 = vld [vmem:[%s2 + $0x18] sm:$0xf]
      %v1964 = vld [vmem:[%s2 + $0x1c] sm:$0xf]
      %v1965 = vld [vmem:[%s2 + $0x20] sm:$0xf]
      %v1967 = vlaneseq
      %v1968 = vshrl.u32 %v1967, 7
      %v1969 = vsub.s32 0, %v1968
      %v1970 = vrot.slane %v842, %v1969
      %v1981 = vunpack.c.l.b16 %v1957
      %v1982 = vunpack.c.l.b16 %v1958
      %v1983 = vunpack.c.l.b16 %v1959
      %v1984 = vunpack.c.l.b16 %v1960
      %v1985 = vunpack.c.l.b16 %v1961
      %v1986 = vunpack.c.l.b16 %v1962
      %v1987 = vunpack.c.l.b16 %v1963
      %v1988 = vunpack.c.l.b16 %v1964
      %v1989 = vunpack.c.l.b16 %v1965
      %v1990 = vpack.c.b16 %v1982, %v1981
      %v1991 = vpack.c.b16 %v1984, %v1983
      %v1992 = vpack.c.b16 %v1986, %v1985
      %v1993 = vpack.c.b16 %v1988, %v1987
      %v1994 = vpack.c.b16 %v1989, %v1989
      %vm1999 = vcmask 588800
      %v2001 = vsel %vm1999, %v1941, 0
      %v2004 = vsel %vm1999, %v1942, 0
      %v2007 = vsel %vm1999, %v1943, 0
      %v2010 = vsel %vm1999, %v1944, 0
      %v2013 = vsel %vm1999, %v1945, 0
      %v2016 = vsel %vm1999, %v1946, 0
      %v2019 = vsel %vm1999, %v1947, 0
      %v2022 = vsel %vm1999, %v1948, 0
      %v2025 = vsel %vm1999, %v1949, 0
      %v2028 = vsel %vm1999, %v1950, 0
      %v2031 = vsel %vm1999, %v1951, 0
      %v2034 = vsel %vm1999, %v1952, 0
      %v2037 = vsel %vm1999, %v1953, 0
      %v2040 = vsel %vm1999, %v1954, 0
      %v2043 = vsel %vm1999, %v1955, 0
      %v2046 = vsel %vm1999, %v1956, 0
      %vm2048 = vcmask 1043456
      %v2050 = vsel %vm2048, %v1994, 0
      %2052 = vmatprep.subr.bf16.mxu0 0
      %2053 = vmatpush1.bf16.msra.mxu0 %v1990
      %2054 = vmatprep.subr.bf16.mxu0 0
      %2055 = vmatpush1.bf16.msra.mxu0 %v1991
      %2056 = vmatprep.subr.bf16.mxu0 0
      %2057 = vmatpush1.bf16.msra.mxu0 %v1992
      %2058 = vmatprep.subr.bf16.mxu0 0
      %2059 = vmatpush1.bf16.msra.mxu0 %v1993
      %2060 = vmatprep.subr.bf16.mxu0 0
      %2061 = vmatpush1.bf16.msra.mxu0 %v2050
      %2062 = vmatprep.subr.bf16.mxu0 0
      %2063 = vmatpush1.bf16.msra.mxu0 0
      %2064 = vmatprep.subr.bf16.mxu0 0
      %2065 = vmatpush1.bf16.msra.mxu0 0
      %2066 = vmatprep.subr.bf16.mxu0 0
      %2067 = vmatpush1.bf16.msra.mxu0 0
      %2068 = vmatprep.subr.bf16.mxu0 0
      %2069 = vmatpush1.bf16.msra.mxu0 0
      %2070 = vmatprep.subr.bf16.mxu0 0
      %2071 = vmatpush1.bf16.msra.mxu0 0
      %2072 = vmatprep.subr.bf16.mxu0 0
      %2073 = vmatpush1.bf16.msra.mxu0 0
      %2074 = vmatprep.subr.bf16.mxu0 0
      %2075 = vmatpush1.bf16.msra.mxu0 0
      %2076 = vmatprep.subr.bf16.mxu0 0
      %2077 = vmatpush1.bf16.msra.mxu0 0
      %2078 = vmatprep.subr.bf16.mxu0 0
      %2079 = vmatpush1.bf16.msra.mxu0 0
      %2080 = vmatprep.subr.bf16.mxu0 0
      %2081 = vmatpush1.bf16.msra.mxu0 0
      %2082 = vmatprep.subr.bf16.mxu0 0
      %2083 = vmatpush1.bf16.msra.mxu0 0
      %2084 = vmatprep.mubr.bf16.mxu0 0
      %2085 = vmatmul.mubr.bf16.gmra.mrb[0].mxu0 %v2001
      %v2086 = vpop.f32.mrb[0].mxu0
      %v2087 = vadd.f32 %v1970, %v2086
      %v2088 = vpop.f32.mrb[0].mxu0
      %v2089 = vpop.f32.mrb[0].mxu0
      %v2090 = vadd.f32 %v1970, %v2089
      %v2091 = vpop.f32.mrb[0].mxu0
      %2092 = vmatprep.mubr.bf16.mxu0 0
      %2093 = vmatmul.mubr.bf16.gmra.mrb[0].mxu0 %v2004
      %v2094 = vpop.f32.mrb[0].mxu0
      %v2095 = vadd.f32 %v1970, %v2094
      %v2096 = vpop.f32.mrb[0].mxu0
      %v2097 = vpop.f32.mrb[0].mxu0
      %v2098 = vadd.f32 %v1970, %v2097
      %v2099 = vpop.f32.mrb[0].mxu0
      %2100 = vmatprep.mubr.bf16.mxu0 0
      %2101 = vmatmul.mubr.bf16.gmra.mrb[0].mxu0 %v2007
      %v2102 = vpop.f32.mrb[0].mxu0
      %v2103 = vadd.f32 %v1970, %v2102
      %v2104 = vpop.f32.mrb[0].mxu0
      %v2105 = vpop.f32.mrb[0].mxu0
      %v2106 = vadd.f32 %v1970, %v2105
      %v2107 = vpop.f32.mrb[0].mxu0
      %2108 = vmatprep.mubr.bf16.mxu0 0
      %2109 = vmatmul.mubr.bf16.gmra.mrb[0].mxu0 %v2010
      %v2110 = vpop.f32.mrb[0].mxu0
      %v2111 = vadd.f32 %v1970, %v2110
      %v2112 = vpop.f32.mrb[0].mxu0
      %v2113 = vpop.f32.mrb[0].mxu0
      %v2114 = vadd.f32 %v1970, %v2113
      %v2115 = vpop.f32.mrb[0].mxu0
      %2116 = vmatprep.mubr.bf16.mxu0 0
      %2117 = vmatmul.mubr.bf16.gmra.mrb[0].mxu0 %v2013
      %v2118 = vpop.f32.mrb[0].mxu0
      %v2119 = vadd.f32 %v1970, %v2118
      %v2120 = vpop.f32.mrb[0].mxu0
      %v2121 = vpop.f32.mrb[0].mxu0
      %v2122 = vadd.f32 %v1970, %v2121
      %v2123 = vpop.f32.mrb[0].mxu0
      %2124 = vmatprep.mubr.bf16.mxu0 0
      %2125 = vmatmul.mubr.bf16.gmra.mrb[0].mxu0 %v2016
      %v2126 = vpop.f32.mrb[0].mxu0
      %v2127 = vadd.f32 %v1970, %v2126
      %v2128 = vpop.f32.mrb[0].mxu0
      %v2129 = vpop.f32.mrb[0].mxu0
      %v2130 = vadd.f32 %v1970, %v2129
      %v2131 = vpop.f32.mrb[0].mxu0
      %2132 = vmatprep.mubr.bf16.mxu0 0
      %2133 = vmatmul.mubr.bf16.gmra.mrb[0].mxu0 %v2019
      %v2134 = vpop.f32.mrb[0].mxu0
      %v2135 = vadd.f32 %v1970, %v2134
      %v2136 = vpop.f32.mrb[0].mxu0
      %v2137 = vpop.f32.mrb[0].mxu0
      %v2138 = vadd.f32 %v1970, %v2137
      %v2139 = vpop.f32.mrb[0].mxu0
      %2140 = vmatprep.mubr.bf16.mxu0 0
      %2141 = vmatmul.mubr.bf16.gmra.mrb[0].mxu0 %v2022
      %v2142 = vpop.f32.mrb[0].mxu0
      %v2143 = vadd.f32 %v1970, %v2142
      %v2144 = vpop.f32.mrb[0].mxu0
      %v2145 = vpop.f32.mrb[0].mxu0
      %v2146 = vadd.f32 %v1970, %v2145
      %v2147 = vpop.f32.mrb[0].mxu0
      %2148 = vmatprep.mubr.bf16.mxu0 0
      %2149 = vmatmul.mubr.bf16.gmra.mrb[0].mxu0 %v2025
      %v2150 = vpop.f32.mrb[0].mxu0
      %v2151 = vadd.f32 %v1970, %v2150
      %v2152 = vpop.f32.mrb[0].mxu0
      %v2153 = vpop.f32.mrb[0].mxu0
      %v2154 = vadd.f32 %v1970, %v2153
      %v2155 = vpop.f32.mrb[0].mxu0
      %2156 = vmatprep.mubr.bf16.mxu0 0
      %2157 = vmatmul.mubr.bf16.gmra.mrb[0].mxu0 %v2028
      %v2158 = vpop.f32.mrb[0].mxu0
      %v2159 = vadd.f32 %v1970, %v2158
      %v2160 = vpop.f32.mrb[0].mxu0
      %v2161 = vpop.f32.mrb[0].mxu0
      %v2162 = vadd.f32 %v1970, %v2161
      %v2163 = vpop.f32.mrb[0].mxu0
      %2164 = vmatprep.mubr.bf16.mxu0 0
      %2165 = vmatmul.mubr.bf16.gmra.mrb[0].mxu0 %v2031
      %v2166 = vpop.f32.mrb[0].mxu0
      %v2167 = vadd.f32 %v1970, %v2166
      %v2168 = vpop.f32.mrb[0].mxu0
      %v2169 = vpop.f32.mrb[0].mxu0
      %v2170 = vadd.f32 %v1970, %v2169
      %v2171 = vpop.f32.mrb[0].mxu0
      %2172 = vmatprep.mubr.bf16.mxu0 0
      %2173 = vmatmul.mubr.bf16.gmra.mrb[0].mxu0 %v2034
      %v2174 = vpop.f32.mrb[0].mxu0
      %v2175 = vadd.f32 %v1970, %v2174
      %v2176 = vpop.f32.mrb[0].mxu0
      %v2177 = vpop.f32.mrb[0].mxu0
      %v2178 = vadd.f32 %v1970, %v2177
      %v2179 = vpop.f32.mrb[0].mxu0
      %2180 = vmatprep.mubr.bf16.mxu0 0
      %2181 = vmatmul.mubr.bf16.gmra.mrb[0].mxu0 %v2037
      %v2182 = vpop.f32.mrb[0].mxu0
      %v2183 = vadd.f32 %v1970, %v2182
      %v2184 = vpop.f32.mrb[0].mxu0
      %v2185 = vpop.f32.mrb[0].mxu0
      %v2186 = vadd.f32 %v1970, %v2185
      %v2187 = vpop.f32.mrb[0].mxu0
      %2188 = vmatprep.mubr.bf16.mxu0 0
      %2189 = vmatmul.mubr.bf16.gmra.mrb[0].mxu0 %v2040
      %v2190 = vpop.f32.mrb[0].mxu0
      %v2191 = vadd.f32 %v1970, %v2190
      %v2192 = vpop.f32.mrb[0].mxu0
      %v2193 = vpop.f32.mrb[0].mxu0
      %v2194 = vadd.f32 %v1970, %v2193
      %v2195 = vpop.f32.mrb[0].mxu0
      %2196 = vmatprep.mubr.bf16.mxu0 0
      %2197 = vmatmul.mubr.bf16.gmra.mrb[0].mxu0 %v2043
      %v2198 = vpop.f32.mrb[0].mxu0
      %v2199 = vadd.f32 %v1970, %v2198
      %v2200 = vpop.f32.mrb[0].mxu0
      %v2201 = vpop.f32.mrb[0].mxu0
      %v2202 = vadd.f32 %v1970, %v2201
      %v2203 = vpop.f32.mrb[0].mxu0
      %2204 = vmatprep.mubr.bf16.mxu0 0
      %2205 = vmatmul.mubr.bf16.gmra.mrb[0].mxu0 %v2046
      %v2206 = vpop.f32.mrb[0].mxu0
      %v2207 = vadd.f32 %v1970, %v2206
      %v2208 = vpop.f32.mrb[0].mxu0
      %v2209 = vpop.f32.mrb[0].mxu0
      %v2210 = vadd.f32 %v1970, %v2209
      %v2211 = vpop.f32.mrb[0].mxu0
      %2212 = vdwg.mxu0
      %v2213 = vld [vmem:[%s4] sm:$0x1]
      %v2214 = vld [vmem:[%s5] sm:$0x1]
      %v2215 = vsel %vm584, %v2087, 0.0
      %v2216 = vsel %vm584, %v2090, 0.0
      %v2217 = vadd.f32 %v2215, %v2216
      %v2218 = vsel %vm584, %v2095, 0.0
      %v2219 = vadd.f32 %v2217, %v2218
      %v2220 = vsel %vm584, %v2098, 0.0
      %v2221 = vadd.f32 %v2219, %v2220
      %v2222 = vsel %vm584, %v2103, 0.0
      %v2223 = vadd.f32 %v2221, %v2222
      %v2224 = vsel %vm584, %v2106, 0.0
      %v2225 = vadd.f32 %v2223, %v2224
      %v2226 = vsel %vm584, %v2111, 0.0
      %v2227 = vadd.f32 %v2225, %v2226
      %v2228 = vsel %vm584, %v2114, 0.0
      %v2229 = vadd.f32 %v2227, %v2228
      %v2230 = vsel %vm584, %v2119, 0.0
      %v2231 = vadd.f32 %v2229, %v2230
      %v2232 = vsel %vm584, %v2122, 0.0
      %v2233 = vadd.f32 %v2231, %v2232
      %v2234 = vsel %vm584, %v2127, 0.0
      %v2235 = vadd.f32 %v2233, %v2234
      %v2236 = vsel %vm584, %v2130, 0.0
      %v2237 = vadd.f32 %v2235, %v2236
      %v2238 = vsel %vm584, %v2135, 0.0
      %v2239 = vadd.f32 %v2237, %v2238
      %v2240 = vsel %vm584, %v2138, 0.0
      %v2241 = vadd.f32 %v2239, %v2240
      %v2242 = vsel %vm584, %v2143, 0.0
      %v2243 = vadd.f32 %v2241, %v2242
      %v2244 = vsel %vm584, %v2146, 0.0
      %v2245 = vadd.f32 %v2243, %v2244
      %v2246 = vsel %vm584, %v2151, 0.0
      %v2247 = vadd.f32 %v2245, %v2246
      %v2248 = vsel %vm584, %v2154, 0.0
      %v2249 = vadd.f32 %v2247, %v2248
      %v2250 = vsel %vm584, %v2159, 0.0
      %v2251 = vadd.f32 %v2249, %v2250
      %v2252 = vsel %vm584, %v2162, 0.0
      %v2253 = vadd.f32 %v2251, %v2252
      %v2254 = vsel %vm584, %v2167, 0.0
      %v2255 = vadd.f32 %v2253, %v2254
      %v2256 = vsel %vm584, %v2170, 0.0
      %v2257 = vadd.f32 %v2255, %v2256
      %v2258 = vsel %vm584, %v2175, 0.0
      %v2259 = vadd.f32 %v2257, %v2258
      %v2260 = vsel %vm584, %v2178, 0.0
      %v2261 = vadd.f32 %v2259, %v2260
      %v2262 = vsel %vm584, %v2183, 0.0
      %v2263 = vadd.f32 %v2261, %v2262
      %v2264 = vsel %vm584, %v2186, 0.0
      %v2265 = vadd.f32 %v2263, %v2264
      %v2266 = vsel %vm584, %v2191, 0.0
      %v2267 = vadd.f32 %v2265, %v2266
      %v2268 = vsel %vm584, %v2194, 0.0
      %v2269 = vadd.f32 %v2267, %v2268
      %v2270 = vsel %vm584, %v2199, 0.0
      %v2271 = vadd.f32 %v2269, %v2270
      %v2272 = vsel %vm584, %v2202, 0.0
      %v2273 = vadd.f32 %v2271, %v2272
      %v2274 = vsel %vm584, %v2207, 0.0
      %v2275 = vadd.f32 %v2273, %v2274
      %v2276 = vsel %vm584, %v2210, 0.0
      %v2277 = vadd.f32 %v2275, %v2276
      %v2278 = vrot.slane %v2277, 4
      %v2279 = vadd.f32 %v2277, %v2278
      %v2280 = vrot.slane %v2279, 2
      %v2281 = vadd.f32 %v2279, %v2280
      %v2282 = vrot.slane %v2281, 1
      %v2283 = vadd.f32 %v2281, %v2282
      %v2284 = vmul.f32 %v2087, %v2087
      %v2285 = vmul.f32 %v2090, %v2090
      %v2286 = vmul.f32 %v2095, %v2095
      %v2287 = vmul.f32 %v2098, %v2098
      %v2288 = vmul.f32 %v2103, %v2103
      %v2289 = vmul.f32 %v2106, %v2106
      %v2290 = vmul.f32 %v2111, %v2111
      %v2291 = vmul.f32 %v2114, %v2114
      %v2292 = vmul.f32 %v2119, %v2119
      %v2293 = vmul.f32 %v2122, %v2122
      %v2294 = vmul.f32 %v2127, %v2127
      %v2295 = vmul.f32 %v2130, %v2130
      %v2296 = vmul.f32 %v2135, %v2135
      %v2297 = vmul.f32 %v2138, %v2138
      %v2298 = vmul.f32 %v2143, %v2143
      %v2299 = vmul.f32 %v2146, %v2146
      %v2300 = vmul.f32 %v2151, %v2151
      %v2301 = vmul.f32 %v2154, %v2154
      %v2302 = vmul.f32 %v2159, %v2159
      %v2303 = vmul.f32 %v2162, %v2162
      %v2304 = vmul.f32 %v2167, %v2167
      %v2305 = vmul.f32 %v2170, %v2170
      %v2306 = vmul.f32 %v2175, %v2175
      %v2307 = vmul.f32 %v2178, %v2178
      %v2308 = vmul.f32 %v2183, %v2183
      %v2309 = vmul.f32 %v2186, %v2186
      %v2310 = vmul.f32 %v2191, %v2191
      %v2311 = vmul.f32 %v2194, %v2194
      %v2312 = vmul.f32 %v2199, %v2199
      %v2313 = vmul.f32 %v2202, %v2202
      %v2314 = vmul.f32 %v2207, %v2207
      %v2315 = vmul.f32 %v2210, %v2210
      %v2316 = vsel %vm584, %v2284, 0.0
      %v2317 = vsel %vm584, %v2285, 0.0
      %v2318 = vadd.f32 %v2316, %v2317
      %v2319 = vsel %vm584, %v2286, 0.0
      %v2320 = vadd.f32 %v2318, %v2319
      %v2321 = vsel %vm584, %v2287, 0.0
      %v2322 = vadd.f32 %v2320, %v2321
      %v2323 = vsel %vm584, %v2288, 0.0
      %v2324 = vadd.f32 %v2322, %v2323
      %v2325 = vsel %vm584, %v2289, 0.0
      %v2326 = vadd.f32 %v2324, %v2325
      %v2327 = vsel %vm584, %v2290, 0.0
      %v2328 = vadd.f32 %v2326, %v2327
      %v2329 = vsel %vm584, %v2291, 0.0
      %v2330 = vadd.f32 %v2328, %v2329
      %v2331 = vsel %vm584, %v2292, 0.0
      %v2332 = vadd.f32 %v2330, %v2331
      %v2333 = vsel %vm584, %v2293, 0.0
      %v2334 = vadd.f32 %v2332, %v2333
      %v2335 = vsel %vm584, %v2294, 0.0
      %v2336 = vadd.f32 %v2334, %v2335
      %v2337 = vsel %vm584, %v2295, 0.0
      %v2338 = vadd.f32 %v2336, %v2337
      %v2339 = vsel %vm584, %v2296, 0.0
      %v2340 = vadd.f32 %v2338, %v2339
      %v2341 = vsel %vm584, %v2297, 0.0
      %v2342 = vadd.f32 %v2340, %v2341
      %v2343 = vsel %vm584, %v2298, 0.0
      %v2344 = vadd.f32 %v2342, %v2343
      %v2345 = vsel %vm584, %v2299, 0.0
      %v2346 = vadd.f32 %v2344, %v2345
      %v2347 = vsel %vm584, %v2300, 0.0
      %v2348 = vadd.f32 %v2346, %v2347
      %v2349 = vsel %vm584, %v2301, 0.0
      %v2350 = vadd.f32 %v2348, %v2349
      %v2351 = vsel %vm584, %v2302, 0.0
      %v2352 = vadd.f32 %v2350, %v2351
      %v2353 = vsel %vm584, %v2303, 0.0
      %v2354 = vadd.f32 %v2352, %v2353
      %v2355 = vsel %vm584, %v2304, 0.0
      %v2356 = vadd.f32 %v2354, %v2355
      %v2357 = vsel %vm584, %v2305, 0.0
      %v2358 = vadd.f32 %v2356, %v2357
      %v2359 = vsel %vm584, %v2306, 0.0
      %v2360 = vadd.f32 %v2358, %v2359
      %v2361 = vsel %vm584, %v2307, 0.0
      %v2362 = vadd.f32 %v2360, %v2361
      %v2363 = vsel %vm584, %v2308, 0.0
      %v2364 = vadd.f32 %v2362, %v2363
      %v2365 = vsel %vm584, %v2309, 0.0
      %v2366 = vadd.f32 %v2364, %v2365
      %v2367 = vsel %vm584, %v2310, 0.0
      %v2368 = vadd.f32 %v2366, %v2367
      %v2369 = vsel %vm584, %v2311, 0.0
      %v2370 = vadd.f32 %v2368, %v2369
      %v2371 = vsel %vm584, %v2312, 0.0
      %v2372 = vadd.f32 %v2370, %v2371
      %v2373 = vsel %vm584, %v2313, 0.0
      %v2374 = vadd.f32 %v2372, %v2373
      %v2375 = vsel %vm584, %v2314, 0.0
      %v2376 = vadd.f32 %v2374, %v2375
      %v2377 = vsel %vm584, %v2315, 0.0
      %v2378 = vadd.f32 %v2376, %v2377
      %v2379 = vrot.slane %v2378, 4
      %v2380 = vadd.f32 %v2378, %v2379
      %v2381 = vrot.slane %v2380, 2
      %v2382 = vadd.f32 %v2380, %v2381
      %v2383 = vrot.slane %v2382, 1
      %v2384 = vadd.f32 %v2382, %v2383
      %v2385 = vld [vmem:[%s10] sm:$0xf]
      %v2387 = vsel %vm584, %v2283, 0
      %v2390 = vsel %vm2048, %v2385, 0
      %2392 = vmatprep.subr.mxu0 0.0
      %2393 = vmatpush1.msra.mxu0 %v2390
      %2394 = vmatprep.subr.mxu0 0.0
      %2395 = vmatpush1.msra.mxu0 0.0
      %2396 = vmatprep.subr.mxu0 0.0
      %2397 = vmatpush1.msra.mxu0 0.0
      %2398 = vmatprep.subr.mxu0 0.0
      %2399 = vmatpush1.msra.mxu0 0.0
      %2400 = vmatprep.subr.mxu0 0.0
      %2401 = vmatpush1.msra.mxu0 0.0
      %2402 = vmatprep.subr.mxu0 0.0
      %2403 = vmatpush1.msra.mxu0 0.0
      %2404 = vmatprep.subr.mxu0 0.0
      %2405 = vmatpush1.msra.mxu0 0.0
      %2406 = vmatprep.subr.mxu0 0.0
      %2407 = vmatpush1.msra.mxu0 0.0
      %2408 = vmatprep.subr.mxu0 0.0
      %2409 = vmatpush1.msra.mxu0 0.0
      %2410 = vmatprep.subr.mxu0 0.0
      %2411 = vmatpush1.msra.mxu0 0.0
      %2412 = vmatprep.subr.mxu0 0.0
      %2413 = vmatpush1.msra.mxu0 0.0
      %2414 = vmatprep.subr.mxu0 0.0
      %2415 = vmatpush1.msra.mxu0 0.0
      %2416 = vmatprep.subr.mxu0 0.0
      %2417 = vmatpush1.msra.mxu0 0.0
      %2418 = vmatprep.subr.mxu0 0.0
      %2419 = vmatpush1.msra.mxu0 0.0
      %2420 = vmatprep.subr.mxu0 0.0
      %2421 = vmatpush1.msra.mxu0 0.0
      %2422 = vmatprep.subr.mxu0 0.0
      %2423 = vmatpush1.msra.mxu0 0.0
      %2424 = vmatprep.subr.mxu0 0.0
      %2425 = vmatpush1.msra.mxu0 0.0
      %2426 = vmatprep.subr.mxu0 0.0
      %2427 = vmatpush1.msra.mxu0 0.0
      %2428 = vmatprep.subr.mxu0 0.0
      %2429 = vmatpush1.msra.mxu0 0.0
      %2430 = vmatprep.subr.mxu0 0.0
      %2431 = vmatpush1.msra.mxu0 0.0
      %2432 = vmatprep.subr.mxu0 0.0
      %2433 = vmatpush1.msra.mxu0 0.0
      %2434 = vmatprep.subr.mxu0 0.0
      %2435 = vmatpush1.msra.mxu0 0.0
      %2436 = vmatprep.subr.mxu0 0.0
      %2437 = vmatpush1.msra.mxu0 0.0
      %2438 = vmatprep.subr.mxu0 0.0
      %2439 = vmatpush1.msra.mxu0 0.0
      %2440 = vmatprep.subr.mxu0 0.0
      %2441 = vmatpush1.msra.mxu0 0.0
      %2442 = vmatprep.subr.mxu0 0.0
      %2443 = vmatpush1.msra.mxu0 0.0
      %2444 = vmatprep.subr.mxu0 0.0
      %2445 = vmatpush1.msra.mxu0 0.0
      %2446 = vmatprep.subr.mxu0 0.0
      %2447 = vmatpush1.msra.mxu0 0.0
      %2448 = vmatprep.subr.mxu0 0.0
      %2449 = vmatpush1.msra.mxu0 0.0
      %2450 = vmatprep.subr.mxu0 0.0
      %2451 = vmatpush1.msra.mxu0 0.0
      %2452 = vmatprep.subr.mxu0 0.0
      %2453 = vmatpush1.msra.mxu0 0.0
      %2454 = vmatprep.subr.mxu0 0.0
      %2455 = vmatpush1.msra.mxu0 0.0
      %2456 = vmatprep.mubr.f32.mxu0 0.0
      %2457 = vmatmul.mubr.f32.gmra.mrb[0].mxu0 %v2387
      %v2458 = vpop.f32.mrb[0].mxu0
      %v2459 = vadd.f32 0.0, %v2458
      %v2460 = vpop.f32.mrb[0].mxu0
      %2461 = vdwg.mxu0
      %v2462 = vrcp.pop 256.0
      %v2463 = vmul.f32 %v2459, %v2462
      %v2465 = vsel %vm584, %v2384, 0
      %2467 = vmatprep.subr.mxu0 0.0
      %2468 = vmatpush1.msra.mxu0 %v2390
      %2469 = vmatprep.subr.mxu0 0.0
      %2470 = vmatpush1.msra.mxu0 0.0
      %2471 = vmatprep.subr.mxu0 0.0
      %2472 = vmatpush1.msra.mxu0 0.0
      %2473 = vmatprep.subr.mxu0 0.0
      %2474 = vmatpush1.msra.mxu0 0.0
      %2475 = vmatprep.subr.mxu0 0.0
      %2476 = vmatpush1.msra.mxu0 0.0
      %2477 = vmatprep.subr.mxu0 0.0
      %2478 = vmatpush1.msra.mxu0 0.0
      %2479 = vmatprep.subr.mxu0 0.0
      %2480 = vmatpush1.msra.mxu0 0.0
      %2481 = vmatprep.subr.mxu0 0.0
      %2482 = vmatpush1.msra.mxu0 0.0
      %2483 = vmatprep.subr.mxu0 0.0
      %2484 = vmatpush1.msra.mxu0 0.0
      %2485 = vmatprep.subr.mxu0 0.0
      %2486 = vmatpush1.msra.mxu0 0.0
      %2487 = vmatprep.subr.mxu0 0.0
      %2488 = vmatpush1.msra.mxu0 0.0
      %2489 = vmatprep.subr.mxu0 0.0
      %2490 = vmatpush1.msra.mxu0 0.0
      %2491 = vmatprep.subr.mxu0 0.0
      %2492 = vmatpush1.msra.mxu0 0.0
      %2493 = vmatprep.subr.mxu0 0.0
      %2494 = vmatpush1.msra.mxu0 0.0
      %2495 = vmatprep.subr.mxu0 0.0
      %2496 = vmatpush1.msra.mxu0 0.0
      %2497 = vmatprep.subr.mxu0 0.0
      %2498 = vmatpush1.msra.mxu0 0.0
      %2499 = vmatprep.subr.mxu0 0.0
      %2500 = vmatpush1.msra.mxu0 0.0
      %2501 = vmatprep.subr.mxu0 0.0
      %2502 = vmatpush1.msra.mxu0 0.0
      %2503 = vmatprep.subr.mxu0 0.0
      %2504 = vmatpush1.msra.mxu0 0.0
      %2505 = vmatprep.subr.mxu0 0.0
      %2506 = vmatpush1.msra.mxu0 0.0
      %2507 = vmatprep.subr.mxu0 0.0
      %2508 = vmatpush1.msra.mxu0 0.0
      %2509 = vmatprep.subr.mxu0 0.0
      %2510 = vmatpush1.msra.mxu0 0.0
      %2511 = vmatprep.subr.mxu0 0.0
      %2512 = vmatpush1.msra.mxu0 0.0
      %2513 = vmatprep.subr.mxu0 0.0
      %2514 = vmatpush1.msra.mxu0 0.0
      %2515 = vmatprep.subr.mxu0 0.0
      %2516 = vmatpush1.msra.mxu0 0.0
      %2517 = vmatprep.subr.mxu0 0.0
      %2518 = vmatpush1.msra.mxu0 0.0
      %2519 = vmatprep.subr.mxu0 0.0
      %2520 = vmatpush1.msra.mxu0 0.0
      %2521 = vmatprep.subr.mxu0 0.0
      %2522 = vmatpush1.msra.mxu0 0.0
      %2523 = vmatprep.subr.mxu0 0.0
      %2524 = vmatpush1.msra.mxu0 0.0
      %2525 = vmatprep.subr.mxu0 0.0
      %2526 = vmatpush1.msra.mxu0 0.0
      %2527 = vmatprep.subr.mxu0 0.0
      %2528 = vmatpush1.msra.mxu0 0.0
      %2529 = vmatprep.subr.mxu0 0.0
      %2530 = vmatpush1.msra.mxu0 0.0
      %2531 = vmatprep.mubr.f32.mxu0 0.0
      %2532 = vmatmul.mubr.f32.gmra.mrb[0].mxu0 %v2465
      %v2533 = vpop.f32.mrb[0].mxu0
      %v2534 = vadd.f32 0.0, %v2533
      %v2535 = vpop.f32.mrb[0].mxu0
      %2536 = vdwg.mxu0
      %v2537 = vmul.f32 %v2534, %v2462
      %v2538 = vmul.f32 %v2463, %v2463
      %v2539 = vsub.f32 %v2537, %v2538
      %v2540 = vmax.f32 %v2539, 0.0
      %v2541 = vld [vmem:[%s11] sm:$0xf]
      %v2543 = vsel %vm584, %v2463, 0
      %v2546 = vsel %vm2048, %v2541, 0
      %2548 = vmatprep.subr.mxu0 0.0
      %2549 = vmatpush1.msra.mxu0 %v2546
      %2550 = vmatprep.subr.mxu0 0.0
      %2551 = vmatpush1.msra.mxu0 0.0
      %2552 = vmatprep.subr.mxu0 0.0
      %2553 = vmatpush1.msra.mxu0 0.0
      %2554 = vmatprep.subr.mxu0 0.0
      %2555 = vmatpush1.msra.mxu0 0.0
      %2556 = vmatprep.subr.mxu0 0.0
      %2557 = vmatpush1.msra.mxu0 0.0
      %2558 = vmatprep.subr.mxu0 0.0
      %2559 = vmatpush1.msra.mxu0 0.0
      %2560 = vmatprep.subr.mxu0 0.0
      %2561 = vmatpush1.msra.mxu0 0.0
      %2562 = vmatprep.subr.mxu0 0.0
      %2563 = vmatpush1.msra.mxu0 0.0
      %2564 = vmatprep.subr.mxu0 0.0
      %2565 = vmatpush1.msra.mxu0 0.0
      %2566 = vmatprep.subr.mxu0 0.0
      %2567 = vmatpush1.msra.mxu0 0.0
      %2568 = vmatprep.subr.mxu0 0.0
      %2569 = vmatpush1.msra.mxu0 0.0
      %2570 = vmatprep.subr.mxu0 0.0
      %2571 = vmatpush1.msra.mxu0 0.0
      %2572 = vmatprep.subr.mxu0 0.0
      %2573 = vmatpush1.msra.mxu0 0.0
      %2574 = vmatprep.subr.mxu0 0.0
      %2575 = vmatpush1.msra.mxu0 0.0
      %2576 = vmatprep.subr.mxu0 0.0
      %2577 = vmatpush1.msra.mxu0 0.0
      %2578 = vmatprep.subr.mxu0 0.0
      %2579 = vmatpush1.msra.mxu0 0.0
      %2580 = vmatprep.subr.mxu0 0.0
      %2581 = vmatpush1.msra.mxu0 0.0
      %2582 = vmatprep.subr.mxu0 0.0
      %2583 = vmatpush1.msra.mxu0 0.0
      %2584 = vmatprep.subr.mxu0 0.0
      %2585 = vmatpush1.msra.mxu0 0.0
      %2586 = vmatprep.subr.mxu0 0.0
      %2587 = vmatpush1.msra.mxu0 0.0
      %2588 = vmatprep.subr.mxu0 0.0
      %2589 = vmatpush1.msra.mxu0 0.0
      %2590 = vmatprep.subr.mxu0 0.0
      %2591 = vmatpush1.msra.mxu0 0.0
      %2592 = vmatprep.subr.mxu0 0.0
      %2593 = vmatpush1.msra.mxu0 0.0
      %2594 = vmatprep.subr.mxu0 0.0
      %2595 = vmatpush1.msra.mxu0 0.0
      %2596 = vmatprep.subr.mxu0 0.0
      %2597 = vmatpush1.msra.mxu0 0.0
      %2598 = vmatprep.subr.mxu0 0.0
      %2599 = vmatpush1.msra.mxu0 0.0
      %2600 = vmatprep.subr.mxu0 0.0
      %2601 = vmatpush1.msra.mxu0 0.0
      %2602 = vmatprep.subr.mxu0 0.0
      %2603 = vmatpush1.msra.mxu0 0.0
      %2604 = vmatprep.subr.mxu0 0.0
      %2605 = vmatpush1.msra.mxu0 0.0
      %2606 = vmatprep.subr.mxu0 0.0
      %2607 = vmatpush1.msra.mxu0 0.0
      %2608 = vmatprep.subr.mxu0 0.0
      %2609 = vmatpush1.msra.mxu0 0.0
      %2610 = vmatprep.subr.mxu0 0.0
      %2611 = vmatpush1.msra.mxu0 0.0
      %2612 = vmatprep.mubr.f32.mxu0 0.0
      %2613 = vmatmul.mubr.f32.gmra.mrb[0].mxu0 %v2543
      %v2614 = vpop.f32.mrb[0].mxu0
      %v2615 = vadd.f32 0.0, %v2614
      %v2616 = vpop.f32.mrb[0].mxu0
      %2617 = vdwg.mxu0
      %v2618 = vlaneseq
      %v2619 = vshrl.u32 %v2618, 7
      %v2620 = vsub.s32 0, %v2619
      %v2621 = vrot.slane %v2615, %v2620
      %v2622 = vsub.f32 %v2087, %v2621
      %v2623 = vsub.f32 %v2090, %v2621
      %v2624 = vsub.f32 %v2095, %v2621
      %v2625 = vsub.f32 %v2098, %v2621
      %v2626 = vsub.f32 %v2103, %v2621
      %v2627 = vsub.f32 %v2106, %v2621
      %v2628 = vsub.f32 %v2111, %v2621
      %v2629 = vsub.f32 %v2114, %v2621
      %v2630 = vsub.f32 %v2119, %v2621
      %v2631 = vsub.f32 %v2122, %v2621
      %v2632 = vsub.f32 %v2127, %v2621
      %v2633 = vsub.f32 %v2130, %v2621
      %v2634 = vsub.f32 %v2135, %v2621
      %v2635 = vsub.f32 %v2138, %v2621
      %v2636 = vsub.f32 %v2143, %v2621
      %v2637 = vsub.f32 %v2146, %v2621
      %v2638 = vsub.f32 %v2151, %v2621
      %v2639 = vsub.f32 %v2154, %v2621
      %v2640 = vsub.f32 %v2159, %v2621
      %v2641 = vsub.f32 %v2162, %v2621
      %v2642 = vsub.f32 %v2167, %v2621
      %v2643 = vsub.f32 %v2170, %v2621
      %v2644 = vsub.f32 %v2175, %v2621
      %v2645 = vsub.f32 %v2178, %v2621
      %v2646 = vsub.f32 %v2183, %v2621
      %v2647 = vsub.f32 %v2186, %v2621
      %v2648 = vsub.f32 %v2191, %v2621
      %v2649 = vsub.f32 %v2194, %v2621
      %v2650 = vsub.f32 %v2199, %v2621
      %v2651 = vsub.f32 %v2202, %v2621
      %v2652 = vsub.f32 %v2207, %v2621
      %v2653 = vsub.f32 %v2210, %v2621
      %v2655 = vsel %vm584, %v2540, 0
      %2657 = vmatprep.subr.mxu0 0.0
      %2658 = vmatpush1.msra.mxu0 %v2546
      %2659 = vmatprep.subr.mxu0 0.0
      %2660 = vmatpush1.msra.mxu0 0.0
      %2661 = vmatprep.subr.mxu0 0.0
      %2662 = vmatpush1.msra.mxu0 0.0
      %2663 = vmatprep.subr.mxu0 0.0
      %2664 = vmatpush1.msra.mxu0 0.0
      %2665 = vmatprep.subr.mxu0 0.0
      %2666 = vmatpush1.msra.mxu0 0.0
      %2667 = vmatprep.subr.mxu0 0.0
      %2668 = vmatpush1.msra.mxu0 0.0
      %2669 = vmatprep.subr.mxu0 0.0
      %2670 = vmatpush1.msra.mxu0 0.0
      %2671 = vmatprep.subr.mxu0 0.0
      %2672 = vmatpush1.msra.mxu0 0.0
      %2673 = vmatprep.subr.mxu0 0.0
      %2674 = vmatpush1.msra.mxu0 0.0
      %2675 = vmatprep.subr.mxu0 0.0
      %2676 = vmatpush1.msra.mxu0 0.0
      %2677 = vmatprep.subr.mxu0 0.0
      %2678 = vmatpush1.msra.mxu0 0.0
      %2679 = vmatprep.subr.mxu0 0.0
      %2680 = vmatpush1.msra.mxu0 0.0
      %2681 = vmatprep.subr.mxu0 0.0
      %2682 = vmatpush1.msra.mxu0 0.0
      %2683 = vmatprep.subr.mxu0 0.0
      %2684 = vmatpush1.msra.mxu0 0.0
      %2685 = vmatprep.subr.mxu0 0.0
      %2686 = vmatpush1.msra.mxu0 0.0
      %2687 = vmatprep.subr.mxu0 0.0
      %2688 = vmatpush1.msra.mxu0 0.0
      %2689 = vmatprep.subr.mxu0 0.0
      %2690 = vmatpush1.msra.mxu0 0.0
      %2691 = vmatprep.subr.mxu0 0.0
      %2692 = vmatpush1.msra.mxu0 0.0
      %2693 = vmatprep.subr.mxu0 0.0
      %2694 = vmatpush1.msra.mxu0 0.0
      %2695 = vmatprep.subr.mxu0 0.0
      %2696 = vmatpush1.msra.mxu0 0.0
      %2697 = vmatprep.subr.mxu0 0.0
      %2698 = vmatpush1.msra.mxu0 0.0
      %2699 = vmatprep.subr.mxu0 0.0
      %2700 = vmatpush1.msra.mxu0 0.0
      %2701 = vmatprep.subr.mxu0 0.0
      %2702 = vmatpush1.msra.mxu0 0.0
      %2703 = vmatprep.subr.mxu0 0.0
      %2704 = vmatpush1.msra.mxu0 0.0
      %2705 = vmatprep.subr.mxu0 0.0
      %2706 = vmatpush1.msra.mxu0 0.0
      %2707 = vmatprep.subr.mxu0 0.0
      %2708 = vmatpush1.msra.mxu0 0.0
      %2709 = vmatprep.subr.mxu0 0.0
      %2710 = vmatpush1.msra.mxu0 0.0
      %2711 = vmatprep.subr.mxu0 0.0
      %2712 = vmatpush1.msra.mxu0 0.0
      %2713 = vmatprep.subr.mxu0 0.0
      %2714 = vmatpush1.msra.mxu0 0.0
      %2715 = vmatprep.subr.mxu0 0.0
      %2716 = vmatpush1.msra.mxu0 0.0
      %2717 = vmatprep.subr.mxu0 0.0
      %2718 = vmatpush1.msra.mxu0 0.0
      %2719 = vmatprep.subr.mxu0 0.0
      %2720 = vmatpush1.msra.mxu0 0.0
      %2721 = vmatprep.mubr.f32.mxu0 0.0
      %2722 = vmatmul.mubr.f32.gmra.mrb[0].mxu0 %v2655
      %v2723 = vpop.f32.mrb[0].mxu0
      %v2724 = vadd.f32 1e-05, %v2723
      %v2725 = vpop.f32.mrb[0].mxu0
      %2726 = vdwg.mxu0
      %v2727 = vrsqrt.pop %v2724
      %v2728 = vlaneseq
      %v2729 = vshrl.u32 %v2728, 7
      %v2730 = vsub.s32 0, %v2729
      %v2731 = vrot.slane %v2727, %v2730
      %v2732 = vmul.f32 %v2622, %v2731
      %v2733 = vmul.f32 %v2623, %v2731
      %v2734 = vmul.f32 %v2624, %v2731
      %v2735 = vmul.f32 %v2625, %v2731
      %v2736 = vmul.f32 %v2626, %v2731
      %v2737 = vmul.f32 %v2627, %v2731
      %v2738 = vmul.f32 %v2628, %v2731
      %v2739 = vmul.f32 %v2629, %v2731
      %v2740 = vmul.f32 %v2630, %v2731
      %v2741 = vmul.f32 %v2631, %v2731
      %v2742 = vmul.f32 %v2632, %v2731
      %v2743 = vmul.f32 %v2633, %v2731
      %v2744 = vmul.f32 %v2634, %v2731
      %v2745 = vmul.f32 %v2635, %v2731
      %v2746 = vmul.f32 %v2636, %v2731
      %v2747 = vmul.f32 %v2637, %v2731
      %v2748 = vmul.f32 %v2638, %v2731
      %v2749 = vmul.f32 %v2639, %v2731
      %v2750 = vmul.f32 %v2640, %v2731
      %v2751 = vmul.f32 %v2641, %v2731
      %v2752 = vmul.f32 %v2642, %v2731
      %v2753 = vmul.f32 %v2643, %v2731
      %v2754 = vmul.f32 %v2644, %v2731
      %v2755 = vmul.f32 %v2645, %v2731
      %v2756 = vmul.f32 %v2646, %v2731
      %v2757 = vmul.f32 %v2647, %v2731
      %v2758 = vmul.f32 %v2648, %v2731
      %v2759 = vmul.f32 %v2649, %v2731
      %v2760 = vmul.f32 %v2650, %v2731
      %v2761 = vmul.f32 %v2651, %v2731
      %v2762 = vmul.f32 %v2652, %v2731
      %v2763 = vmul.f32 %v2653, %v2731
      %v2765 = vlaneseq
      %v2766 = vshrl.u32 %v2765, 7
      %v2767 = vsub.s32 0, %v2766
      %v2768 = vrot.slane %v2213, %v2767
      %v2770 = vmul.f32 %v2732, %v2768
      %v2771 = vmul.f32 %v2733, %v2768
      %v2772 = vmul.f32 %v2734, %v2768
      %v2773 = vmul.f32 %v2735, %v2768
      %v2774 = vmul.f32 %v2736, %v2768
      %v2775 = vmul.f32 %v2737, %v2768
      %v2776 = vmul.f32 %v2738, %v2768
      %v2777 = vmul.f32 %v2739, %v2768
      %v2778 = vmul.f32 %v2740, %v2768
      %v2779 = vmul.f32 %v2741, %v2768
      %v2780 = vmul.f32 %v2742, %v2768
      %v2781 = vmul.f32 %v2743, %v2768
      %v2782 = vmul.f32 %v2744, %v2768
      %v2783 = vmul.f32 %v2745, %v2768
      %v2784 = vmul.f32 %v2746, %v2768
      %v2785 = vmul.f32 %v2747, %v2768
      %v2786 = vmul.f32 %v2748, %v2768
      %v2787 = vmul.f32 %v2749, %v2768
      %v2788 = vmul.f32 %v2750, %v2768
      %v2789 = vmul.f32 %v2751, %v2768
      %v2790 = vmul.f32 %v2752, %v2768
      %v2791 = vmul.f32 %v2753, %v2768
      %v2792 = vmul.f32 %v2754, %v2768
      %v2793 = vmul.f32 %v2755, %v2768
      %v2794 = vmul.f32 %v2756, %v2768
      %v2795 = vmul.f32 %v2757, %v2768
      %v2796 = vmul.f32 %v2758, %v2768
      %v2797 = vmul.f32 %v2759, %v2768
      %v2798 = vmul.f32 %v2760, %v2768
      %v2799 = vmul.f32 %v2761, %v2768
      %v2800 = vmul.f32 %v2762, %v2768
      %v2801 = vmul.f32 %v2763, %v2768
      %v2803 = vlaneseq
      %v2804 = vshrl.u32 %v2803, 7
      %v2805 = vsub.s32 0, %v2804
      %v2806 = vrot.slane %v2214, %v2805
      %v2808 = vadd.f32 %v2770, %v2806
      %v2809 = vadd.f32 %v2771, %v2806
      %v2810 = vadd.f32 %v2772, %v2806
      %v2811 = vadd.f32 %v2773, %v2806
      %v2812 = vadd.f32 %v2774, %v2806
      %v2813 = vadd.f32 %v2775, %v2806
      %v2814 = vadd.f32 %v2776, %v2806
      %v2815 = vadd.f32 %v2777, %v2806
      %v2816 = vadd.f32 %v2778, %v2806
      %v2817 = vadd.f32 %v2779, %v2806
      %v2818 = vadd.f32 %v2780, %v2806
      %v2819 = vadd.f32 %v2781, %v2806
      %v2820 = vadd.f32 %v2782, %v2806
      %v2821 = vadd.f32 %v2783, %v2806
      %v2822 = vadd.f32 %v2784, %v2806
      %v2823 = vadd.f32 %v2785, %v2806
      %v2824 = vadd.f32 %v2786, %v2806
      %v2825 = vadd.f32 %v2787, %v2806
      %v2826 = vadd.f32 %v2788, %v2806
      %v2827 = vadd.f32 %v2789, %v2806
      %v2828 = vadd.f32 %v2790, %v2806
      %v2829 = vadd.f32 %v2791, %v2806
      %v2830 = vadd.f32 %v2792, %v2806
      %v2831 = vadd.f32 %v2793, %v2806
      %v2832 = vadd.f32 %v2794, %v2806
      %v2833 = vadd.f32 %v2795, %v2806
      %v2834 = vadd.f32 %v2796, %v2806
      %v2835 = vadd.f32 %v2797, %v2806
      %v2836 = vadd.f32 %v2798, %v2806
      %v2837 = vadd.f32 %v2799, %v2806
      %v2838 = vadd.f32 %v2800, %v2806
      %v2839 = vadd.f32 %v2801, %v2806
      %v2840 = vmax.f32 %v2808, 0.0
      %v2841 = vmax.f32 %v2809, 0.0
      %v2842 = vmax.f32 %v2810, 0.0
      %v2843 = vmax.f32 %v2811, 0.0
      %v2844 = vmax.f32 %v2812, 0.0
      %v2845 = vmax.f32 %v2813, 0.0
      %v2846 = vmax.f32 %v2814, 0.0
      %v2847 = vmax.f32 %v2815, 0.0
      %v2848 = vmax.f32 %v2816, 0.0
      %v2849 = vmax.f32 %v2817, 0.0
      %v2850 = vmax.f32 %v2818, 0.0
      %v2851 = vmax.f32 %v2819, 0.0
      %v2852 = vmax.f32 %v2820, 0.0
      %v2853 = vmax.f32 %v2821, 0.0
      %v2854 = vmax.f32 %v2822, 0.0
      %v2855 = vmax.f32 %v2823, 0.0
      %v2856 = vmax.f32 %v2824, 0.0
      %v2857 = vmax.f32 %v2825, 0.0
      %v2858 = vmax.f32 %v2826, 0.0
      %v2859 = vmax.f32 %v2827, 0.0
      %v2860 = vmax.f32 %v2828, 0.0
      %v2861 = vmax.f32 %v2829, 0.0
      %v2862 = vmax.f32 %v2830, 0.0
      %v2863 = vmax.f32 %v2831, 0.0
      %v2864 = vmax.f32 %v2832, 0.0
      %v2865 = vmax.f32 %v2833, 0.0
      %v2866 = vmax.f32 %v2834, 0.0
      %v2867 = vmax.f32 %v2835, 0.0
      %v2868 = vmax.f32 %v2836, 0.0
      %v2869 = vmax.f32 %v2837, 0.0
      %v2870 = vmax.f32 %v2838, 0.0
      %v2871 = vmax.f32 %v2839, 0.0
      %s2872 = scalar_lea.vmem [#allocation3], 24
      %2873 = vst.msk [vmem:[%s2872 + $0x1] sm:$0xff] %vm584, %v2840
      %2874 = vst.msk [vmem:[%s2872 + $0x9] sm:$0xff] %vm584, %v2841
      %2875 = vst.msk [vmem:[%s2872 + $0x19] sm:$0xff] %vm584, %v2842
      %2876 = vst.msk [vmem:[%s2872 + $0x21] sm:$0xff] %vm584, %v2843
      %2877 = vst.msk [vmem:[%s2872 + $0x31] sm:$0xff] %vm584, %v2844
      %2878 = vst.msk [vmem:[%s2872 + $0x39] sm:$0xff] %vm584, %v2845
      %2879 = vst.msk [vmem:[%s2872 + $0x49] sm:$0xff] %vm584, %v2846
      %2880 = vst.msk [vmem:[%s2872 + $0x51] sm:$0xff] %vm584, %v2847
      %2881 = vst.msk [vmem:[%s2872 + $0x61] sm:$0xff] %vm584, %v2848
      %2882 = vst.msk [vmem:[%s2872 + $0x69] sm:$0xff] %vm584, %v2849
      %2883 = vst.msk [vmem:[%s2872 + $0x79] sm:$0xff] %vm584, %v2850
      %2884 = vst.msk [vmem:[%s2872 + $0x81] sm:$0xff] %vm584, %v2851
      %2885 = vst.msk [vmem:[%s2872 + $0x91] sm:$0xff] %vm584, %v2852
      %2886 = vst.msk [vmem:[%s2872 + $0x99] sm:$0xff] %vm584, %v2853
      %2887 = vst.msk [vmem:[%s2872 + $0xa9] sm:$0xff] %vm584, %v2854
      %2888 = vst.msk [vmem:[%s2872 + $0xb1] sm:$0xff] %vm584, %v2855
      %2889 = vst.msk [vmem:[%s2872 + $0xc1] sm:$0xff] %vm584, %v2856
      %2890 = vst.msk [vmem:[%s2872 + $0xc9] sm:$0xff] %vm584, %v2857
      %2891 = vst.msk [vmem:[%s2872 + $0xd9] sm:$0xff] %vm584, %v2858
      %2892 = vst.msk [vmem:[%s2872 + $0xe1] sm:$0xff] %vm584, %v2859
      %2893 = vst.msk [vmem:[%s2872 + $0xf1] sm:$0xff] %vm584, %v2860
      %2894 = vst.msk [vmem:[%s2872 + $0xf9] sm:$0xff] %vm584, %v2861
      %2895 = vst.msk [vmem:[%s2872 + $0x109] sm:$0xff] %vm584, %v2862
      %2896 = vst.msk [vmem:[%s2872 + $0x111] sm:$0xff] %vm584, %v2863
      %2897 = vst.msk [vmem:[%s2872 + $0x121] sm:$0xff] %vm584, %v2864
      %2898 = vst.msk [vmem:[%s2872 + $0x129] sm:$0xff] %vm584, %v2865
      %2899 = vst.msk [vmem:[%s2872 + $0x139] sm:$0xff] %vm584, %v2866
      %2900 = vst.msk [vmem:[%s2872 + $0x141] sm:$0xff] %vm584, %v2867
      %2901 = vst.msk [vmem:[%s2872 + $0x151] sm:$0xff] %vm584, %v2868
      %2902 = vst.msk [vmem:[%s2872 + $0x159] sm:$0xff] %vm584, %v2869
      %2903 = vst.msk [vmem:[%s2872 + $0x169] sm:$0xff] %vm584, %v2870
      %2904 = vst.msk [vmem:[%s2872 + $0x171] sm:$0xff] %vm584, %v2871
      %v2905 = vld [vmem:[%s7] sm:$0x1]
      %v2906 = vld [vmem:[#allocation3] sm:$0xff]
      %v2907 = vld [vmem:[#allocation3 + $0x8] sm:$0xff]
      %v2908 = vld [vmem:[#allocation3 + $0x18] sm:$0xff]
      %v2909 = vld [vmem:[#allocation3 + $0x20] sm:$0xff]
      %v2910 = vld [vmem:[#allocation3 + $0x30] sm:$0xff]
      %v2911 = vld [vmem:[#allocation3 + $0x38] sm:$0xff]
      %v2912 = vld [vmem:[#allocation3 + $0x48] sm:$0xff]
      %v2913 = vld [vmem:[#allocation3 + $0x50] sm:$0xff]
      %v2914 = vld [vmem:[#allocation3 + $0x60] sm:$0xff]
      %v2915 = vld [vmem:[#allocation3 + $0x68] sm:$0xff]
      %v2916 = vld [vmem:[#allocation3 + $0x78] sm:$0xff]
      %v2917 = vld [vmem:[#allocation3 + $0x80] sm:$0xff]
      %v2918 = vld [vmem:[#allocation3 + $0x90] sm:$0xff]
      %v2919 = vld [vmem:[#allocation3 + $0x98] sm:$0xff]
      %v2920 = vld [vmem:[#allocation3 + $0xa8] sm:$0xff]
      %v2921 = vld [vmem:[#allocation3 + $0xb0] sm:$0xff]
      %v2922 = vld [vmem:[#allocation3 + $0xc0] sm:$0xff]
      %v2923 = vld [vmem:[#allocation3 + $0xc8] sm:$0xff]
      %v2924 = vld [vmem:[#allocation3 + $0xd8] sm:$0xff]
      %v2925 = vld [vmem:[#allocation3 + $0xe0] sm:$0xff]
      %v2926 = vld [vmem:[#allocation3 + $0xf0] sm:$0xff]
      %v2927 = vld [vmem:[#allocation3 + $0xf8] sm:$0xff]
      %v2928 = vld [vmem:[#allocation3 + $0x108] sm:$0xff]
      %v2929 = vld [vmem:[#allocation3 + $0x110] sm:$0xff]
      %v2930 = vld [vmem:[#allocation3 + $0x120] sm:$0xff]
      %v2931 = vld [vmem:[#allocation3 + $0x128] sm:$0xff]
      %v2932 = vld [vmem:[#allocation3 + $0x138] sm:$0xff]
      %v2933 = vld [vmem:[#allocation3 + $0x140] sm:$0xff]
      %v2934 = vld [vmem:[#allocation3 + $0x150] sm:$0xff]
      %v2935 = vld [vmem:[#allocation3 + $0x158] sm:$0xff]
      %v2936 = vld [vmem:[#allocation3 + $0x168] sm:$0xff]
      %v2937 = vld [vmem:[#allocation3 + $0x170] sm:$0xff]
      %v2938 = vpack.c.bf16 %v2907, %v2906
      %v2939 = vpack.c.bf16 %v2909, %v2908
      %v2940 = vpack.c.bf16 %v2911, %v2910
      %v2941 = vpack.c.bf16 %v2913, %v2912
      %v2942 = vpack.c.bf16 %v2915, %v2914
      %v2943 = vpack.c.bf16 %v2917, %v2916
      %v2944 = vpack.c.bf16 %v2919, %v2918
      %v2945 = vpack.c.bf16 %v2921, %v2920
      %v2946 = vpack.c.bf16 %v2923, %v2922
      %v2947 = vpack.c.bf16 %v2925, %v2924
      %v2948 = vpack.c.bf16 %v2927, %v2926
      %v2949 = vpack.c.bf16 %v2929, %v2928
      %v2950 = vpack.c.bf16 %v2931, %v2930
      %v2951 = vpack.c.bf16 %v2933, %v2932
      %v2952 = vpack.c.bf16 %v2935, %v2934
      %v2953 = vpack.c.bf16 %v2937, %v2936
      %2954 = vst.msk [vmem:[#allocation5] sm:$0xff] %vm584, %v2938
      %2955 = vst.msk [vmem:[#allocation5 + $0x8] sm:$0xff] %vm584, %v2939
      %2956 = vst.msk [vmem:[#allocation5 + $0x10] sm:$0xff] %vm584, %v2940
      %2957 = vst.msk [vmem:[#allocation5 + $0x18] sm:$0xff] %vm584, %v2941
      %2958 = vst.msk [vmem:[#allocation5 + $0x20] sm:$0xff] %vm584, %v2942
      %2959 = vst.msk [vmem:[#allocation5 + $0x28] sm:$0xff] %vm584, %v2943
      %2960 = vst.msk [vmem:[#allocation5 + $0x30] sm:$0xff] %vm584, %v2944
      %2961 = vst.msk [vmem:[#allocation5 + $0x38] sm:$0xff] %vm584, %v2945
      %2962 = vst.msk [vmem:[#allocation5 + $0x40] sm:$0xff] %vm584, %v2946
      %2963 = vst.msk [vmem:[#allocation5 + $0x48] sm:$0xff] %vm584, %v2947
      %2964 = vst.msk [vmem:[#allocation5 + $0x50] sm:$0xff] %vm584, %v2948
      %2965 = vst.msk [vmem:[#allocation5 + $0x58] sm:$0xff] %vm584, %v2949
      %2966 = vst.msk [vmem:[#allocation5 + $0x60] sm:$0xff] %vm584, %v2950
      %2967 = vst.msk [vmem:[#allocation5 + $0x68] sm:$0xff] %vm584, %v2951
      %2968 = vst.msk [vmem:[#allocation5 + $0x70] sm:$0xff] %vm584, %v2952
      %2969 = vst.msk [vmem:[#allocation5 + $0x78] sm:$0xff] %vm584, %v2953
      %v2970 = vld [vmem:[#allocation3 + $0x1] sm:$0xff]
      %v2971 = vld [vmem:[#allocation3 + $0x9] sm:$0xff]
      %v2972 = vld [vmem:[#allocation3 + $0x19] sm:$0xff]
      %v2973 = vld [vmem:[#allocation3 + $0x21] sm:$0xff]
      %v2974 = vld [vmem:[#allocation3 + $0x31] sm:$0xff]
      %v2975 = vld [vmem:[#allocation3 + $0x39] sm:$0xff]
      %v2976 = vld [vmem:[#allocation3 + $0x49] sm:$0xff]
      %v2977 = vld [vmem:[#allocation3 + $0x51] sm:$0xff]
      %v2978 = vld [vmem:[#allocation3 + $0x61] sm:$0xff]
      %v2979 = vld [vmem:[#allocation3 + $0x69] sm:$0xff]
      %v2980 = vld [vmem:[#allocation3 + $0x79] sm:$0xff]
      %v2981 = vld [vmem:[#allocation3 + $0x81] sm:$0xff]
      %v2982 = vld [vmem:[#allocation3 + $0x91] sm:$0xff]
      %v2983 = vld [vmem:[#allocation3 + $0x99] sm:$0xff]
      %v2984 = vld [vmem:[#allocation3 + $0xa9] sm:$0xff]
      %v2985 = vld [vmem:[#allocation3 + $0xb1] sm:$0xff]
      %v2986 = vld [vmem:[#allocation3 + $0xc1] sm:$0xff]
      %v2987 = vld [vmem:[#allocation3 + $0xc9] sm:$0xff]
      %v2988 = vld [vmem:[#allocation3 + $0xd9] sm:$0xff]
      %v2989 = vld [vmem:[#allocation3 + $0xe1] sm:$0xff]
      %v2990 = vld [vmem:[#allocation3 + $0xf1] sm:$0xff]
      %v2991 = vld [vmem:[#allocation3 + $0xf9] sm:$0xff]
      %v2992 = vld [vmem:[#allocation3 + $0x109] sm:$0xff]
      %v2993 = vld [vmem:[#allocation3 + $0x111] sm:$0xff]
      %v2994 = vld [vmem:[#allocation3 + $0x121] sm:$0xff]
      %v2995 = vld [vmem:[#allocation3 + $0x129] sm:$0xff]
      %v2996 = vld [vmem:[#allocation3 + $0x139] sm:$0xff]
      %v2997 = vld [vmem:[#allocation3 + $0x141] sm:$0xff]
      %v2998 = vld [vmem:[#allocation3 + $0x151] sm:$0xff]
      %v2999 = vld [vmem:[#allocation3 + $0x159] sm:$0xff]
      %v3000 = vld [vmem:[#allocation3 + $0x169] sm:$0xff]
      %v3001 = vld [vmem:[#allocation3 + $0x171] sm:$0xff]
      %v3002 = vpack.c.bf16 %v2971, %v2970
      %v3003 = vpack.c.bf16 %v2973, %v2972
      %v3004 = vpack.c.bf16 %v2975, %v2974
      %v3005 = vpack.c.bf16 %v2977, %v2976
      %v3006 = vpack.c.bf16 %v2979, %v2978
      %v3007 = vpack.c.bf16 %v2981, %v2980
      %v3008 = vpack.c.bf16 %v2983, %v2982
      %v3009 = vpack.c.bf16 %v2985, %v2984
      %v3010 = vpack.c.bf16 %v2987, %v2986
      %v3011 = vpack.c.bf16 %v2989, %v2988
      %v3012 = vpack.c.bf16 %v2991, %v2990
      %v3013 = vpack.c.bf16 %v2993, %v2992
      %v3014 = vpack.c.bf16 %v2995, %v2994
      %v3015 = vpack.c.bf16 %v2997, %v2996
      %v3016 = vpack.c.bf16 %v2999, %v2998
      %v3017 = vpack.c.bf16 %v3001, %v3000
      %3034 = vrot.lane.b32.xlu0 %v3002, 4
      %v3035 = vpop.permute.xlu0 %3034
      %3036 = vrot.lane.b32.xlu0 %v3003, 4
      %v3037 = vpop.permute.xlu0 %3036
      %3038 = vrot.lane.b32.xlu0 %v3004, 4
      %v3039 = vpop.permute.xlu0 %3038
      %3040 = vrot.lane.b32.xlu0 %v3005, 4
      %v3041 = vpop.permute.xlu0 %3040
      %3042 = vrot.lane.b32.xlu0 %v3006, 4
      %v3043 = vpop.permute.xlu0 %3042
      %3044 = vrot.lane.b32.xlu0 %v3007, 4
      %v3045 = vpop.permute.xlu0 %3044
      %3046 = vrot.lane.b32.xlu0 %v3008, 4
      %v3047 = vpop.permute.xlu0 %3046
      %3048 = vrot.lane.b32.xlu0 %v3009, 4
      %v3049 = vpop.permute.xlu0 %3048
      %3050 = vrot.lane.b32.xlu0 %v3010, 4
      %v3051 = vpop.permute.xlu0 %3050
      %3052 = vrot.lane.b32.xlu0 %v3011, 4
      %v3053 = vpop.permute.xlu0 %3052
      %3054 = vrot.lane.b32.xlu0 %v3012, 4
      %v3055 = vpop.permute.xlu0 %3054
      %3056 = vrot.lane.b32.xlu0 %v3013, 4
      %v3057 = vpop.permute.xlu0 %3056
      %3058 = vrot.lane.b32.xlu0 %v3014, 4
      %v3059 = vpop.permute.xlu0 %3058
      %3060 = vrot.lane.b32.xlu0 %v3015, 4
      %v3061 = vpop.permute.xlu0 %3060
      %3062 = vrot.lane.b32.xlu0 %v3016, 4
      %v3063 = vpop.permute.xlu0 %3062
      %3064 = vrot.lane.b32.xlu0 %v3017, 4
      %v3065 = vpop.permute.xlu0 %3064
      %3082 = vst.msk [vmem:[#allocation5] sm:$0xff] %vm809, %v3035
      %3083 = vst.msk [vmem:[#allocation5 + $0x8] sm:$0xff] %vm809, %v3037
      %3084 = vst.msk [vmem:[#allocation5 + $0x10] sm:$0xff] %vm809, %v3039
      %3085 = vst.msk [vmem:[#allocation5 + $0x18] sm:$0xff] %vm809, %v3041
      %3086 = vst.msk [vmem:[#allocation5 + $0x20] sm:$0xff] %vm809, %v3043
      %3087 = vst.msk [vmem:[#allocation5 + $0x28] sm:$0xff] %vm809, %v3045
      %3088 = vst.msk [vmem:[#allocation5 + $0x30] sm:$0xff] %vm809, %v3047
      %3089 = vst.msk [vmem:[#allocation5 + $0x38] sm:$0xff] %vm809, %v3049
      %3090 = vst.msk [vmem:[#allocation5 + $0x40] sm:$0xff] %vm809, %v3051
      %3091 = vst.msk [vmem:[#allocation5 + $0x48] sm:$0xff] %vm809, %v3053
      %3092 = vst.msk [vmem:[#allocation5 + $0x50] sm:$0xff] %vm809, %v3055
      %3093 = vst.msk [vmem:[#allocation5 + $0x58] sm:$0xff] %vm809, %v3057
      %3094 = vst.msk [vmem:[#allocation5 + $0x60] sm:$0xff] %vm809, %v3059
      %3095 = vst.msk [vmem:[#allocation5 + $0x68] sm:$0xff] %vm809, %v3061
      %3096 = vst.msk [vmem:[#allocation5 + $0x70] sm:$0xff] %vm809, %v3063
      %3097 = vst.msk [vmem:[#allocation5 + $0x78] sm:$0xff] %vm809, %v3065
      %v3098 = vld [vmem:[#allocation3 + $0x2] sm:$0xff]
      %v3099 = vld [vmem:[#allocation3 + $0xa] sm:$0xff]
      %v3100 = vld [vmem:[#allocation3 + $0x1a] sm:$0xff]
      %v3101 = vld [vmem:[#allocation3 + $0x22] sm:$0xff]
      %v3102 = vld [vmem:[#allocation3 + $0x32] sm:$0xff]
      %v3103 = vld [vmem:[#allocation3 + $0x3a] sm:$0xff]
      %v3104 = vld [vmem:[#allocation3 + $0x4a] sm:$0xff]
      %v3105 = vld [vmem:[#allocation3 + $0x52] sm:$0xff]
      %v3106 = vld [vmem:[#allocation3 + $0x62] sm:$0xff]
      %v3107 = vld [vmem:[#allocation3 + $0x6a] sm:$0xff]
      %v3108 = vld [vmem:[#allocation3 + $0x7a] sm:$0xff]
      %v3109 = vld [vmem:[#allocation3 + $0x82] sm:$0xff]
      %v3110 = vld [vmem:[#allocation3 + $0x92] sm:$0xff]
      %v3111 = vld [vmem:[#allocation3 + $0x9a] sm:$0xff]
      %v3112 = vld [vmem:[#allocation3 + $0xaa] sm:$0xff]
      %v3113 = vld [vmem:[#allocation3 + $0xb2] sm:$0xff]
      %v3114 = vld [vmem:[#allocation3 + $0xc2] sm:$0xff]
      %v3115 = vld [vmem:[#allocation3 + $0xca] sm:$0xff]
      %v3116 = vld [vmem:[#allocation3 + $0xda] sm:$0xff]
      %v3117 = vld [vmem:[#allocation3 + $0xe2] sm:$0xff]
      %v3118 = vld [vmem:[#allocation3 + $0xf2] sm:$0xff]
      %v3119 = vld [vmem:[#allocation3 + $0xfa] sm:$0xff]
      %v3120 = vld [vmem:[#allocation3 + $0x10a] sm:$0xff]
      %v3121 = vld [vmem:[#allocation3 + $0x112] sm:$0xff]
      %v3122 = vld [vmem:[#allocation3 + $0x122] sm:$0xff]
      %v3123 = vld [vmem:[#allocation3 + $0x12a] sm:$0xff]
      %v3124 = vld [vmem:[#allocation3 + $0x13a] sm:$0xff]
      %v3125 = vld [vmem:[#allocation3 + $0x142] sm:$0xff]
      %v3126 = vld [vmem:[#allocation3 + $0x152] sm:$0xff]
      %v3127 = vld [vmem:[#allocation3 + $0x15a] sm:$0xff]
      %v3128 = vld [vmem:[#allocation3 + $0x16a] sm:$0xff]
      %v3129 = vld [vmem:[#allocation3 + $0x172] sm:$0xff]
      %v3130 = vpack.c.bf16 %v3099, %v3098
      %v3131 = vpack.c.bf16 %v3101, %v3100
      %v3132 = vpack.c.bf16 %v3103, %v3102
      %v3133 = vpack.c.bf16 %v3105, %v3104
      %v3134 = vpack.c.bf16 %v3107, %v3106
      %v3135 = vpack.c.bf16 %v3109, %v3108
      %v3136 = vpack.c.bf16 %v3111, %v3110
      %v3137 = vpack.c.bf16 %v3113, %v3112
      %v3138 = vpack.c.bf16 %v3115, %v3114
      %v3139 = vpack.c.bf16 %v3117, %v3116
      %v3140 = vpack.c.bf16 %v3119, %v3118
      %v3141 = vpack.c.bf16 %v3121, %v3120
      %v3142 = vpack.c.bf16 %v3123, %v3122
      %v3143 = vpack.c.bf16 %v3125, %v3124
      %v3144 = vpack.c.bf16 %v3127, %v3126
      %v3145 = vpack.c.bf16 %v3129, %v3128
      %3162 = vrot.lane.b32.xlu0 %v3130, 8
      %v3163 = vpop.permute.xlu0 %3162
      %3164 = vrot.lane.b32.xlu0 %v3131, 8
      %v3165 = vpop.permute.xlu0 %3164
      %3166 = vrot.lane.b32.xlu0 %v3132, 8
      %v3167 = vpop.permute.xlu0 %3166
      %3168 = vrot.lane.b32.xlu0 %v3133, 8
      %v3169 = vpop.permute.xlu0 %3168
      %3170 = vrot.lane.b32.xlu0 %v3134, 8
      %v3171 = vpop.permute.xlu0 %3170
      %3172 = vrot.lane.b32.xlu0 %v3135, 8
      %v3173 = vpop.permute.xlu0 %3172
      %3174 = vrot.lane.b32.xlu0 %v3136, 8
      %v3175 = vpop.permute.xlu0 %3174
      %3176 = vrot.lane.b32.xlu0 %v3137, 8
      %v3177 = vpop.permute.xlu0 %3176
      %3178 = vrot.lane.b32.xlu0 %v3138, 8
      %v3179 = vpop.permute.xlu0 %3178
      %3180 = vrot.lane.b32.xlu0 %v3139, 8
      %v3181 = vpop.permute.xlu0 %3180
      %3182 = vrot.lane.b32.xlu0 %v3140, 8
      %v3183 = vpop.permute.xlu0 %3182
      %3184 = vrot.lane.b32.xlu0 %v3141, 8
      %v3185 = vpop.permute.xlu0 %3184
      %3186 = vrot.lane.b32.xlu0 %v3142, 8
      %v3187 = vpop.permute.xlu0 %3186
      %3188 = vrot.lane.b32.xlu0 %v3143, 8
      %v3189 = vpop.permute.xlu0 %3188
      %3190 = vrot.lane.b32.xlu0 %v3144, 8
      %v3191 = vpop.permute.xlu0 %3190
      %3192 = vrot.lane.b32.xlu0 %v3145, 8
      %v3193 = vpop.permute.xlu0 %3192
      %vm3210 = vcmask 97344
      %3211 = vst.msk [vmem:[#allocation5] sm:$0xff] %vm3210, %v3163
      %3212 = vst.msk [vmem:[#allocation5 + $0x8] sm:$0xff] %vm3210, %v3165
      %3213 = vst.msk [vmem:[#allocation5 + $0x10] sm:$0xff] %vm3210, %v3167
      %3214 = vst.msk [vmem:[#allocation5 + $0x18] sm:$0xff] %vm3210, %v3169
      %3215 = vst.msk [vmem:[#allocation5 + $0x20] sm:$0xff] %vm3210, %v3171
      %3216 = vst.msk [vmem:[#allocation5 + $0x28] sm:$0xff] %vm3210, %v3173
      %3217 = vst.msk [vmem:[#allocation5 + $0x30] sm:$0xff] %vm3210, %v3175
      %3218 = vst.msk [vmem:[#allocation5 + $0x38] sm:$0xff] %vm3210, %v3177
      %3219 = vst.msk [vmem:[#allocation5 + $0x40] sm:$0xff] %vm3210, %v3179
      %3220 = vst.msk [vmem:[#allocation5 + $0x48] sm:$0xff] %vm3210, %v3181
      %3221 = vst.msk [vmem:[#allocation5 + $0x50] sm:$0xff] %vm3210, %v3183
      %3222 = vst.msk [vmem:[#allocation5 + $0x58] sm:$0xff] %vm3210, %v3185
      %3223 = vst.msk [vmem:[#allocation5 + $0x60] sm:$0xff] %vm3210, %v3187
      %3224 = vst.msk [vmem:[#allocation5 + $0x68] sm:$0xff] %vm3210, %v3189
      %3225 = vst.msk [vmem:[#allocation5 + $0x70] sm:$0xff] %vm3210, %v3191
      %3226 = vst.msk [vmem:[#allocation5 + $0x78] sm:$0xff] %vm3210, %v3193
      %v3227 = vld [vmem:[%s2872] sm:$0xff]
      %v3228 = vld [vmem:[%s2872 + $0x8] sm:$0xff]
      %v3229 = vld [vmem:[%s2872 + $0x18] sm:$0xff]
      %v3230 = vld [vmem:[%s2872 + $0x20] sm:$0xff]
      %v3231 = vld [vmem:[%s2872 + $0x30] sm:$0xff]
      %v3232 = vld [vmem:[%s2872 + $0x38] sm:$0xff]
      %v3233 = vld [vmem:[%s2872 + $0x48] sm:$0xff]
      %v3234 = vld [vmem:[%s2872 + $0x50] sm:$0xff]
      %v3235 = vld [vmem:[%s2872 + $0x60] sm:$0xff]
      %v3236 = vld [vmem:[%s2872 + $0x68] sm:$0xff]
      %v3237 = vld [vmem:[%s2872 + $0x78] sm:$0xff]
      %v3238 = vld [vmem:[%s2872 + $0x80] sm:$0xff]
      %v3239 = vld [vmem:[%s2872 + $0x90] sm:$0xff]
      %v3240 = vld [vmem:[%s2872 + $0x98] sm:$0xff]
      %v3241 = vld [vmem:[%s2872 + $0xa8] sm:$0xff]
      %v3242 = vld [vmem:[%s2872 + $0xb0] sm:$0xff]
      %v3243 = vld [vmem:[%s2872 + $0xc0] sm:$0xff]
      %v3244 = vld [vmem:[%s2872 + $0xc8] sm:$0xff]
      %v3245 = vld [vmem:[%s2872 + $0xd8] sm:$0xff]
      %v3246 = vld [vmem:[%s2872 + $0xe0] sm:$0xff]
      %v3247 = vld [vmem:[%s2872 + $0xf0] sm:$0xff]
      %v3248 = vld [vmem:[%s2872 + $0xf8] sm:$0xff]
      %v3249 = vld [vmem:[%s2872 + $0x108] sm:$0xff]
      %v3250 = vld [vmem:[%s2872 + $0x110] sm:$0xff]
      %v3251 = vld [vmem:[%s2872 + $0x120] sm:$0xff]
      %v3252 = vld [vmem:[%s2872 + $0x128] sm:$0xff]
      %v3253 = vld [vmem:[%s2872 + $0x138] sm:$0xff]
      %v3254 = vld [vmem:[%s2872 + $0x140] sm:$0xff]
      %v3255 = vld [vmem:[%s2872 + $0x150] sm:$0xff]
      %v3256 = vld [vmem:[%s2872 + $0x158] sm:$0xff]
      %v3257 = vld [vmem:[%s2872 + $0x168] sm:$0xff]
      %v3258 = vld [vmem:[%s2872 + $0x170] sm:$0xff]
      %v3259 = vpack.c.bf16 %v3228, %v3227
      %v3260 = vpack.c.bf16 %v3230, %v3229
      %v3261 = vpack.c.bf16 %v3232, %v3231
      %v3262 = vpack.c.bf16 %v3234, %v3233
      %v3263 = vpack.c.bf16 %v3236, %v3235
      %v3264 = vpack.c.bf16 %v3238, %v3237
      %v3265 = vpack.c.bf16 %v3240, %v3239
      %v3266 = vpack.c.bf16 %v3242, %v3241
      %v3267 = vpack.c.bf16 %v3244, %v3243
      %v3268 = vpack.c.bf16 %v3246, %v3245
      %v3269 = vpack.c.bf16 %v3248, %v3247
      %v3270 = vpack.c.bf16 %v3250, %v3249
      %v3271 = vpack.c.bf16 %v3252, %v3251
      %v3272 = vpack.c.bf16 %v3254, %v3253
      %v3273 = vpack.c.bf16 %v3256, %v3255
      %v3274 = vpack.c.bf16 %v3258, %v3257
      %3291 = vrot.lane.b32.xlu0 %v3259, 12
      %v3292 = vpop.permute.xlu0 %3291
      %3293 = vrot.lane.b32.xlu0 %v3260, 12
      %v3294 = vpop.permute.xlu0 %3293
      %3295 = vrot.lane.b32.xlu0 %v3261, 12
      %v3296 = vpop.permute.xlu0 %3295
      %3297 = vrot.lane.b32.xlu0 %v3262, 12
      %v3298 = vpop.permute.xlu0 %3297
      %3299 = vrot.lane.b32.xlu0 %v3263, 12
      %v3300 = vpop.permute.xlu0 %3299
      %3301 = vrot.lane.b32.xlu0 %v3264, 12
      %v3302 = vpop.permute.xlu0 %3301
      %3303 = vrot.lane.b32.xlu0 %v3265, 12
      %v3304 = vpop.permute.xlu0 %3303
      %3305 = vrot.lane.b32.xlu0 %v3266, 12
      %v3306 = vpop.permute.xlu0 %3305
      %3307 = vrot.lane.b32.xlu0 %v3267, 12
      %v3308 = vpop.permute.xlu0 %3307
      %3309 = vrot.lane.b32.xlu0 %v3268, 12
      %v3310 = vpop.permute.xlu0 %3309
      %3311 = vrot.lane.b32.xlu0 %v3269, 12
      %v3312 = vpop.permute.xlu0 %3311
      %3313 = vrot.lane.b32.xlu0 %v3270, 12
      %v3314 = vpop.permute.xlu0 %3313
      %3315 = vrot.lane.b32.xlu0 %v3271, 12
      %v3316 = vpop.permute.xlu0 %3315
      %3317 = vrot.lane.b32.xlu0 %v3272, 12
      %v3318 = vpop.permute.xlu0 %3317
      %3319 = vrot.lane.b32.xlu0 %v3273, 12
      %v3320 = vpop.permute.xlu0 %3319
      %3321 = vrot.lane.b32.xlu0 %v3274, 12
      %v3322 = vpop.permute.xlu0 %3321
      %vm3339 = vcmask 130144
      %3340 = vst.msk [vmem:[#allocation5] sm:$0xff] %vm3339, %v3292
      %3341 = vst.msk [vmem:[#allocation5 + $0x8] sm:$0xff] %vm3339, %v3294
      %3342 = vst.msk [vmem:[#allocation5 + $0x10] sm:$0xff] %vm3339, %v3296
      %3343 = vst.msk [vmem:[#allocation5 + $0x18] sm:$0xff] %vm3339, %v3298
      %3344 = vst.msk [vmem:[#allocation5 + $0x20] sm:$0xff] %vm3339, %v3300
      %3345 = vst.msk [vmem:[#allocation5 + $0x28] sm:$0xff] %vm3339, %v3302
      %3346 = vst.msk [vmem:[#allocation5 + $0x30] sm:$0xff] %vm3339, %v3304
      %3347 = vst.msk [vmem:[#allocation5 + $0x38] sm:$0xff] %vm3339, %v3306
      %3348 = vst.msk [vmem:[#allocation5 + $0x40] sm:$0xff] %vm3339, %v3308
      %3349 = vst.msk [vmem:[#allocation5 + $0x48] sm:$0xff] %vm3339, %v3310
      %3350 = vst.msk [vmem:[#allocation5 + $0x50] sm:$0xff] %vm3339, %v3312
      %3351 = vst.msk [vmem:[#allocation5 + $0x58] sm:$0xff] %vm3339, %v3314
      %3352 = vst.msk [vmem:[#allocation5 + $0x60] sm:$0xff] %vm3339, %v3316
      %3353 = vst.msk [vmem:[#allocation5 + $0x68] sm:$0xff] %vm3339, %v3318
      %3354 = vst.msk [vmem:[#allocation5 + $0x70] sm:$0xff] %vm3339, %v3320
      %3355 = vst.msk [vmem:[#allocation5 + $0x78] sm:$0xff] %vm3339, %v3322
      %v3356 = vld [vmem:[%s2872 + $0x1] sm:$0xff]
      %v3357 = vld [vmem:[%s2872 + $0x9] sm:$0xff]
      %v3358 = vld [vmem:[%s2872 + $0x19] sm:$0xff]
      %v3359 = vld [vmem:[%s2872 + $0x21] sm:$0xff]
      %v3360 = vld [vmem:[%s2872 + $0x31] sm:$0xff]
      %v3361 = vld [vmem:[%s2872 + $0x39] sm:$0xff]
      %v3362 = vld [vmem:[%s2872 + $0x49] sm:$0xff]
      %v3363 = vld [vmem:[%s2872 + $0x51] sm:$0xff]
      %v3364 = vld [vmem:[%s2872 + $0x61] sm:$0xff]
      %v3365 = vld [vmem:[%s2872 + $0x69] sm:$0xff]
      %v3366 = vld [vmem:[%s2872 + $0x79] sm:$0xff]
      %v3367 = vld [vmem:[%s2872 + $0x81] sm:$0xff]
      %v3368 = vld [vmem:[%s2872 + $0x91] sm:$0xff]
      %v3369 = vld [vmem:[%s2872 + $0x99] sm:$0xff]
      %v3370 = vld [vmem:[%s2872 + $0xa9] sm:$0xff]
      %v3371 = vld [vmem:[%s2872 + $0xb1] sm:$0xff]
      %v3372 = vld [vmem:[%s2872 + $0xc1] sm:$0xff]
      %v3373 = vld [vmem:[%s2872 + $0xc9] sm:$0xff]
      %v3374 = vld [vmem:[%s2872 + $0xd9] sm:$0xff]
      %v3375 = vld [vmem:[%s2872 + $0xe1] sm:$0xff]
      %v3376 = vld [vmem:[%s2872 + $0xf1] sm:$0xff]
      %v3377 = vld [vmem:[%s2872 + $0xf9] sm:$0xff]
      %v3378 = vld [vmem:[%s2872 + $0x109] sm:$0xff]
      %v3379 = vld [vmem:[%s2872 + $0x111] sm:$0xff]
      %v3380 = vld [vmem:[%s2872 + $0x121] sm:$0xff]
      %v3381 = vld [vmem:[%s2872 + $0x129] sm:$0xff]
      %v3382 = vld [vmem:[%s2872 + $0x139] sm:$0xff]
      %v3383 = vld [vmem:[%s2872 + $0x141] sm:$0xff]
      %v3384 = vld [vmem:[%s2872 + $0x151] sm:$0xff]
      %v3385 = vld [vmem:[%s2872 + $0x159] sm:$0xff]
      %v3386 = vld [vmem:[%s2872 + $0x169] sm:$0xff]
      %v3387 = vld [vmem:[%s2872 + $0x171] sm:$0xff]
      %v3388 = vpack.c.bf16 %v3357, %v3356
      %v3389 = vpack.c.bf16 %v3359, %v3358
      %v3390 = vpack.c.bf16 %v3361, %v3360
      %v3391 = vpack.c.bf16 %v3363, %v3362
      %v3392 = vpack.c.bf16 %v3365, %v3364
      %v3393 = vpack.c.bf16 %v3367, %v3366
      %v3394 = vpack.c.bf16 %v3369, %v3368
      %v3395 = vpack.c.bf16 %v3371, %v3370
      %v3396 = vpack.c.bf16 %v3373, %v3372
      %v3397 = vpack.c.bf16 %v3375, %v3374
      %v3398 = vpack.c.bf16 %v3377, %v3376
      %v3399 = vpack.c.bf16 %v3379, %v3378
      %v3400 = vpack.c.bf16 %v3381, %v3380
      %v3401 = vpack.c.bf16 %v3383, %v3382
      %v3402 = vpack.c.bf16 %v3385, %v3384
      %v3403 = vpack.c.bf16 %v3387, %v3386
      %3420 = vrot.lane.b32.xlu0 %v3388, 16
      %v3421 = vpop.permute.xlu0 %3420
      %3422 = vrot.lane.b32.xlu0 %v3389, 16
      %v3423 = vpop.permute.xlu0 %3422
      %3424 = vrot.lane.b32.xlu0 %v3390, 16
      %v3425 = vpop.permute.xlu0 %3424
      %3426 = vrot.lane.b32.xlu0 %v3391, 16
      %v3427 = vpop.permute.xlu0 %3426
      %3428 = vrot.lane.b32.xlu0 %v3392, 16
      %v3429 = vpop.permute.xlu0 %3428
      %3430 = vrot.lane.b32.xlu0 %v3393, 16
      %v3431 = vpop.permute.xlu0 %3430
      %3432 = vrot.lane.b32.xlu0 %v3394, 16
      %v3433 = vpop.permute.xlu0 %3432
      %3434 = vrot.lane.b32.xlu0 %v3395, 16
      %v3435 = vpop.permute.xlu0 %3434
      %3436 = vrot.lane.b32.xlu0 %v3396, 16
      %v3437 = vpop.permute.xlu0 %3436
      %3438 = vrot.lane.b32.xlu0 %v3397, 16
      %v3439 = vpop.permute.xlu0 %3438
      %3440 = vrot.lane.b32.xlu0 %v3398, 16
      %v3441 = vpop.permute.xlu0 %3440
      %3442 = vrot.lane.b32.xlu0 %v3399, 16
      %v3443 = vpop.permute.xlu0 %3442
      %3444 = vrot.lane.b32.xlu0 %v3400, 16
      %v3445 = vpop.permute.xlu0 %3444
      %3446 = vrot.lane.b32.xlu0 %v3401, 16
      %v3447 = vpop.permute.xlu0 %3446
      %3448 = vrot.lane.b32.xlu0 %v3402, 16
      %v3449 = vpop.permute.xlu0 %3448
      %3450 = vrot.lane.b32.xlu0 %v3403, 16
      %v3451 = vpop.permute.xlu0 %3450
      %vm3468 = vcmask 162944
      %3469 = vst.msk [vmem:[#allocation5] sm:$0xff] %vm3468, %v3421
      %3470 = vst.msk [vmem:[#allocation5 + $0x8] sm:$0xff] %vm3468, %v3423
      %3471 = vst.msk [vmem:[#allocation5 + $0x10] sm:$0xff] %vm3468, %v3425
      %3472 = vst.msk [vmem:[#allocation5 + $0x18] sm:$0xff] %vm3468, %v3427
      %3473 = vst.msk [vmem:[#allocation5 + $0x20] sm:$0xff] %vm3468, %v3429
      %3474 = vst.msk [vmem:[#allocation5 + $0x28] sm:$0xff] %vm3468, %v3431
      %3475 = vst.msk [vmem:[#allocation5 + $0x30] sm:$0xff] %vm3468, %v3433
      %3476 = vst.msk [vmem:[#allocation5 + $0x38] sm:$0xff] %vm3468, %v3435
      %3477 = vst.msk [vmem:[#allocation5 + $0x40] sm:$0xff] %vm3468, %v3437
      %3478 = vst.msk [vmem:[#allocation5 + $0x48] sm:$0xff] %vm3468, %v3439
      %3479 = vst.msk [vmem:[#allocation5 + $0x50] sm:$0xff] %vm3468, %v3441
      %3480 = vst.msk [vmem:[#allocation5 + $0x58] sm:$0xff] %vm3468, %v3443
      %3481 = vst.msk [vmem:[#allocation5 + $0x60] sm:$0xff] %vm3468, %v3445
      %3482 = vst.msk [vmem:[#allocation5 + $0x68] sm:$0xff] %vm3468, %v3447
      %3483 = vst.msk [vmem:[#allocation5 + $0x70] sm:$0xff] %vm3468, %v3449
      %3484 = vst.msk [vmem:[#allocation5 + $0x78] sm:$0xff] %vm3468, %v3451
      %v3485 = vld [vmem:[%s2872 + $0x2] sm:$0xff]
      %v3486 = vld [vmem:[%s2872 + $0xa] sm:$0xff]
      %v3487 = vld [vmem:[%s2872 + $0x1a] sm:$0xff]
      %v3488 = vld [vmem:[%s2872 + $0x22] sm:$0xff]
      %v3489 = vld [vmem:[%s2872 + $0x32] sm:$0xff]
      %v3490 = vld [vmem:[%s2872 + $0x3a] sm:$0xff]
      %v3491 = vld [vmem:[%s2872 + $0x4a] sm:$0xff]
      %v3492 = vld [vmem:[%s2872 + $0x52] sm:$0xff]
      %v3493 = vld [vmem:[%s2872 + $0x62] sm:$0xff]
      %v3494 = vld [vmem:[%s2872 + $0x6a] sm:$0xff]
      %v3495 = vld [vmem:[%s2872 + $0x7a] sm:$0xff]
      %v3496 = vld [vmem:[%s2872 + $0x82] sm:$0xff]
      %v3497 = vld [vmem:[%s2872 + $0x92] sm:$0xff]
      %v3498 = vld [vmem:[%s2872 + $0x9a] sm:$0xff]
      %v3499 = vld [vmem:[%s2872 + $0xaa] sm:$0xff]
      %v3500 = vld [vmem:[%s2872 + $0xb2] sm:$0xff]
      %v3501 = vld [vmem:[%s2872 + $0xc2] sm:$0xff]
      %v3502 = vld [vmem:[%s2872 + $0xca] sm:$0xff]
      %v3503 = vld [vmem:[%s2872 + $0xda] sm:$0xff]
      %v3504 = vld [vmem:[%s2872 + $0xe2] sm:$0xff]
      %v3505 = vld [vmem:[%s2872 + $0xf2] sm:$0xff]
      %v3506 = vld [vmem:[%s2872 + $0xfa] sm:$0xff]
      %v3507 = vld [vmem:[%s2872 + $0x10a] sm:$0xff]
      %v3508 = vld [vmem:[%s2872 + $0x112] sm:$0xff]
      %v3509 = vld [vmem:[%s2872 + $0x122] sm:$0xff]
      %v3510 = vld [vmem:[%s2872 + $0x12a] sm:$0xff]
      %v3511 = vld [vmem:[%s2872 + $0x13a] sm:$0xff]
      %v3512 = vld [vmem:[%s2872 + $0x142] sm:$0xff]
      %v3513 = vld [vmem:[%s2872 + $0x152] sm:$0xff]
      %v3514 = vld [vmem:[%s2872 + $0x15a] sm:$0xff]
      %v3515 = vld [vmem:[%s2872 + $0x16a] sm:$0xff]
      %v3516 = vld [vmem:[%s2872 + $0x172] sm:$0xff]
      %v3517 = vpack.c.bf16 %v3486, %v3485
      %v3518 = vpack.c.bf16 %v3488, %v3487
      %v3519 = vpack.c.bf16 %v3490, %v3489
      %v3520 = vpack.c.bf16 %v3492, %v3491
      %v3521 = vpack.c.bf16 %v3494, %v3493
      %v3522 = vpack.c.bf16 %v3496, %v3495
      %v3523 = vpack.c.bf16 %v3498, %v3497
      %v3524 = vpack.c.bf16 %v3500, %v3499
      %v3525 = vpack.c.bf16 %v3502, %v3501
      %v3526 = vpack.c.bf16 %v3504, %v3503
      %v3527 = vpack.c.bf16 %v3506, %v3505
      %v3528 = vpack.c.bf16 %v3508, %v3507
      %v3529 = vpack.c.bf16 %v3510, %v3509
      %v3530 = vpack.c.bf16 %v3512, %v3511
      %v3531 = vpack.c.bf16 %v3514, %v3513
      %v3532 = vpack.c.bf16 %v3516, %v3515
      %3549 = vrot.lane.b32.xlu0 %v3517, 20
      %v3550 = vpop.permute.xlu0 %3549
      %3551 = vrot.lane.b32.xlu0 %v3518, 20
      %v3552 = vpop.permute.xlu0 %3551
      %3553 = vrot.lane.b32.xlu0 %v3519, 20
      %v3554 = vpop.permute.xlu0 %3553
      %3555 = vrot.lane.b32.xlu0 %v3520, 20
      %v3556 = vpop.permute.xlu0 %3555
      %3557 = vrot.lane.b32.xlu0 %v3521, 20
      %v3558 = vpop.permute.xlu0 %3557
      %3559 = vrot.lane.b32.xlu0 %v3522, 20
      %v3560 = vpop.permute.xlu0 %3559
      %3561 = vrot.lane.b32.xlu0 %v3523, 20
      %v3562 = vpop.permute.xlu0 %3561
      %3563 = vrot.lane.b32.xlu0 %v3524, 20
      %v3564 = vpop.permute.xlu0 %3563
      %3565 = vrot.lane.b32.xlu0 %v3525, 20
      %v3566 = vpop.permute.xlu0 %3565
      %3567 = vrot.lane.b32.xlu0 %v3526, 20
      %v3568 = vpop.permute.xlu0 %3567
      %3569 = vrot.lane.b32.xlu0 %v3527, 20
      %v3570 = vpop.permute.xlu0 %3569
      %3571 = vrot.lane.b32.xlu0 %v3528, 20
      %v3572 = vpop.permute.xlu0 %3571
      %3573 = vrot.lane.b32.xlu0 %v3529, 20
      %v3574 = vpop.permute.xlu0 %3573
      %3575 = vrot.lane.b32.xlu0 %v3530, 20
      %v3576 = vpop.permute.xlu0 %3575
      %3577 = vrot.lane.b32.xlu0 %v3531, 20
      %v3578 = vpop.permute.xlu0 %3577
      %3579 = vrot.lane.b32.xlu0 %v3532, 20
      %v3580 = vpop.permute.xlu0 %3579
      %vm3597 = vcmask 195744
      %3598 = vst.msk [vmem:[#allocation5] sm:$0xff] %vm3597, %v3550
      %3599 = vst.msk [vmem:[#allocation5 + $0x8] sm:$0xff] %vm3597, %v3552
      %3600 = vst.msk [vmem:[#allocation5 + $0x10] sm:$0xff] %vm3597, %v3554
      %3601 = vst.msk [vmem:[#allocation5 + $0x18] sm:$0xff] %vm3597, %v3556
      %3602 = vst.msk [vmem:[#allocation5 + $0x20] sm:$0xff] %vm3597, %v3558
      %3603 = vst.msk [vmem:[#allocation5 + $0x28] sm:$0xff] %vm3597, %v3560
      %3604 = vst.msk [vmem:[#allocation5 + $0x30] sm:$0xff] %vm3597, %v3562
      %3605 = vst.msk [vmem:[#allocation5 + $0x38] sm:$0xff] %vm3597, %v3564
      %3606 = vst.msk [vmem:[#allocation5 + $0x40] sm:$0xff] %vm3597, %v3566
      %3607 = vst.msk [vmem:[#allocation5 + $0x48] sm:$0xff] %vm3597, %v3568
      %3608 = vst.msk [vmem:[#allocation5 + $0x50] sm:$0xff] %vm3597, %v3570
      %3609 = vst.msk [vmem:[#allocation5 + $0x58] sm:$0xff] %vm3597, %v3572
      %3610 = vst.msk [vmem:[#allocation5 + $0x60] sm:$0xff] %vm3597, %v3574
      %3611 = vst.msk [vmem:[#allocation5 + $0x68] sm:$0xff] %vm3597, %v3576
      %3612 = vst.msk [vmem:[#allocation5 + $0x70] sm:$0xff] %vm3597, %v3578
      %3613 = vst.msk [vmem:[#allocation5 + $0x78] sm:$0xff] %vm3597, %v3580
      %s3614 = scalar_lea.vmem [#allocation3], 48
      %v3615 = vld [vmem:[%s3614] sm:$0xff]
      %v3616 = vld [vmem:[%s3614 + $0x8] sm:$0xff]
      %v3617 = vld [vmem:[%s3614 + $0x18] sm:$0xff]
      %v3618 = vld [vmem:[%s3614 + $0x20] sm:$0xff]
      %v3619 = vld [vmem:[%s3614 + $0x30] sm:$0xff]
      %v3620 = vld [vmem:[%s3614 + $0x38] sm:$0xff]
      %v3621 = vld [vmem:[%s3614 + $0x48] sm:$0xff]
      %v3622 = vld [vmem:[%s3614 + $0x50] sm:$0xff]
      %v3623 = vld [vmem:[%s3614 + $0x60] sm:$0xff]
      %v3624 = vld [vmem:[%s3614 + $0x68] sm:$0xff]
      %v3625 = vld [vmem:[%s3614 + $0x78] sm:$0xff]
      %v3626 = vld [vmem:[%s3614 + $0x80] sm:$0xff]
      %v3627 = vld [vmem:[%s3614 + $0x90] sm:$0xff]
      %v3628 = vld [vmem:[%s3614 + $0x98] sm:$0xff]
      %v3629 = vld [vmem:[%s3614 + $0xa8] sm:$0xff]
      %v3630 = vld [vmem:[%s3614 + $0xb0] sm:$0xff]
      %v3631 = vld [vmem:[%s3614 + $0xc0] sm:$0xff]
      %v3632 = vld [vmem:[%s3614 + $0xc8] sm:$0xff]
      %v3633 = vld [vmem:[%s3614 + $0xd8] sm:$0xff]
      %v3634 = vld [vmem:[%s3614 + $0xe0] sm:$0xff]
      %v3635 = vld [vmem:[%s3614 + $0xf0] sm:$0xff]
      %v3636 = vld [vmem:[%s3614 + $0xf8] sm:$0xff]
      %v3637 = vld [vmem:[%s3614 + $0x108] sm:$0xff]
      %v3638 = vld [vmem:[%s3614 + $0x110] sm:$0xff]
      %v3639 = vld [vmem:[%s3614 + $0x120] sm:$0xff]
      %v3640 = vld [vmem:[%s3614 + $0x128] sm:$0xff]
      %v3641 = vld [vmem:[%s3614 + $0x138] sm:$0xff]
      %v3642 = vld [vmem:[%s3614 + $0x140] sm:$0xff]
      %v3643 = vld [vmem:[%s3614 + $0x150] sm:$0xff]
      %v3644 = vld [vmem:[%s3614 + $0x158] sm:$0xff]
      %v3645 = vld [vmem:[%s3614 + $0x168] sm:$0xff]
      %v3646 = vld [vmem:[%s3614 + $0x170] sm:$0xff]
      %v3647 = vpack.c.bf16 %v3616, %v3615
      %v3648 = vpack.c.bf16 %v3618, %v3617
      %v3649 = vpack.c.bf16 %v3620, %v3619
      %v3650 = vpack.c.bf16 %v3622, %v3621
      %v3651 = vpack.c.bf16 %v3624, %v3623
      %v3652 = vpack.c.bf16 %v3626, %v3625
      %v3653 = vpack.c.bf16 %v3628, %v3627
      %v3654 = vpack.c.bf16 %v3630, %v3629
      %v3655 = vpack.c.bf16 %v3632, %v3631
      %v3656 = vpack.c.bf16 %v3634, %v3633
      %v3657 = vpack.c.bf16 %v3636, %v3635
      %v3658 = vpack.c.bf16 %v3638, %v3637
      %v3659 = vpack.c.bf16 %v3640, %v3639
      %v3660 = vpack.c.bf16 %v3642, %v3641
      %v3661 = vpack.c.bf16 %v3644, %v3643
      %v3662 = vpack.c.bf16 %v3646, %v3645
      %3679 = vrot.lane.b32.xlu0 %v3647, 24
      %v3680 = vpop.permute.xlu0 %3679
      %3681 = vrot.lane.b32.xlu0 %v3648, 24
      %v3682 = vpop.permute.xlu0 %3681
      %3683 = vrot.lane.b32.xlu0 %v3649, 24
      %v3684 = vpop.permute.xlu0 %3683
      %3685 = vrot.lane.b32.xlu0 %v3650, 24
      %v3686 = vpop.permute.xlu0 %3685
      %3687 = vrot.lane.b32.xlu0 %v3651, 24
      %v3688 = vpop.permute.xlu0 %3687
      %3689 = vrot.lane.b32.xlu0 %v3652, 24
      %v3690 = vpop.permute.xlu0 %3689
      %3691 = vrot.lane.b32.xlu0 %v3653, 24
      %v3692 = vpop.permute.xlu0 %3691
      %3693 = vrot.lane.b32.xlu0 %v3654, 24
      %v3694 = vpop.permute.xlu0 %3693
      %3695 = vrot.lane.b32.xlu0 %v3655, 24
      %v3696 = vpop.permute.xlu0 %3695
      %3697 = vrot.lane.b32.xlu0 %v3656, 24
      %v3698 = vpop.permute.xlu0 %3697
      %3699 = vrot.lane.b32.xlu0 %v3657, 24
      %v3700 = vpop.permute.xlu0 %3699
      %3701 = vrot.lane.b32.xlu0 %v3658, 24
      %v3702 = vpop.permute.xlu0 %3701
      %3703 = vrot.lane.b32.xlu0 %v3659, 24
      %v3704 = vpop.permute.xlu0 %3703
      %3705 = vrot.lane.b32.xlu0 %v3660, 24
      %v3706 = vpop.permute.xlu0 %3705
      %3707 = vrot.lane.b32.xlu0 %v3661, 24
      %v3708 = vpop.permute.xlu0 %3707
      %3709 = vrot.lane.b32.xlu0 %v3662, 24
      %v3710 = vpop.permute.xlu0 %3709
      %vm3727 = vcmask 228544
      %3728 = vst.msk [vmem:[#allocation5] sm:$0xff] %vm3727, %v3680
      %3729 = vst.msk [vmem:[#allocation5 + $0x8] sm:$0xff] %vm3727, %v3682
      %3730 = vst.msk [vmem:[#allocation5 + $0x10] sm:$0xff] %vm3727, %v3684
      %3731 = vst.msk [vmem:[#allocation5 + $0x18] sm:$0xff] %vm3727, %v3686
      %3732 = vst.msk [vmem:[#allocation5 + $0x20] sm:$0xff] %vm3727, %v3688
      %3733 = vst.msk [vmem:[#allocation5 + $0x28] sm:$0xff] %vm3727, %v3690
      %3734 = vst.msk [vmem:[#allocation5 + $0x30] sm:$0xff] %vm3727, %v3692
      %3735 = vst.msk [vmem:[#allocation5 + $0x38] sm:$0xff] %vm3727, %v3694
      %3736 = vst.msk [vmem:[#allocation5 + $0x40] sm:$0xff] %vm3727, %v3696
      %3737 = vst.msk [vmem:[#allocation5 + $0x48] sm:$0xff] %vm3727, %v3698
      %3738 = vst.msk [vmem:[#allocation5 + $0x50] sm:$0xff] %vm3727, %v3700
      %3739 = vst.msk [vmem:[#allocation5 + $0x58] sm:$0xff] %vm3727, %v3702
      %3740 = vst.msk [vmem:[#allocation5 + $0x60] sm:$0xff] %vm3727, %v3704
      %3741 = vst.msk [vmem:[#allocation5 + $0x68] sm:$0xff] %vm3727, %v3706
      %3742 = vst.msk [vmem:[#allocation5 + $0x70] sm:$0xff] %vm3727, %v3708
      %3743 = vst.msk [vmem:[#allocation5 + $0x78] sm:$0xff] %vm3727, %v3710
      %v3744 = vld [vmem:[%s3614 + $0x1] sm:$0xff]
      %v3745 = vld [vmem:[%s3614 + $0x9] sm:$0xff]
      %v3746 = vld [vmem:[%s3614 + $0x19] sm:$0xff]
      %v3747 = vld [vmem:[%s3614 + $0x21] sm:$0xff]
      %v3748 = vld [vmem:[%s3614 + $0x31] sm:$0xff]
      %v3749 = vld [vmem:[%s3614 + $0x39] sm:$0xff]
      %v3750 = vld [vmem:[%s3614 + $0x49] sm:$0xff]
      %v3751 = vld [vmem:[%s3614 + $0x51] sm:$0xff]
      %v3752 = vld [vmem:[%s3614 + $0x61] sm:$0xff]
      %v3753 = vld [vmem:[%s3614 + $0x69] sm:$0xff]
      %v3754 = vld [vmem:[%s3614 + $0x79] sm:$0xff]
      %v3755 = vld [vmem:[%s3614 + $0x81] sm:$0xff]
      %v3756 = vld [vmem:[%s3614 + $0x91] sm:$0xff]
      %v3757 = vld [vmem:[%s3614 + $0x99] sm:$0xff]
      %v3758 = vld [vmem:[%s3614 + $0xa9] sm:$0xff]
      %v3759 = vld [vmem:[%s3614 + $0xb1] sm:$0xff]
      %v3760 = vld [vmem:[%s3614 + $0xc1] sm:$0xff]
      %v3761 = vld [vmem:[%s3614 + $0xc9] sm:$0xff]
      %v3762 = vld [vmem:[%s3614 + $0xd9] sm:$0xff]
      %v3763 = vld [vmem:[%s3614 + $0xe1] sm:$0xff]
      %v3764 = vld [vmem:[%s3614 + $0xf1] sm:$0xff]
      %v3765 = vld [vmem:[%s3614 + $0xf9] sm:$0xff]
      %v3766 = vld [vmem:[%s3614 + $0x109] sm:$0xff]
      %v3767 = vld [vmem:[%s3614 + $0x111] sm:$0xff]
      %v3768 = vld [vmem:[%s3614 + $0x121] sm:$0xff]
      %v3769 = vld [vmem:[%s3614 + $0x129] sm:$0xff]
      %v3770 = vld [vmem:[%s3614 + $0x139] sm:$0xff]
      %v3771 = vld [vmem:[%s3614 + $0x141] sm:$0xff]
      %v3772 = vld [vmem:[%s3614 + $0x151] sm:$0xff]
      %v3773 = vld [vmem:[%s3614 + $0x159] sm:$0xff]
      %v3774 = vld [vmem:[%s3614 + $0x169] sm:$0xff]
      %v3775 = vld [vmem:[%s3614 + $0x171] sm:$0xff]
      %v3776 = vpack.c.bf16 %v3745, %v3744
      %v3777 = vpack.c.bf16 %v3747, %v3746
      %v3778 = vpack.c.bf16 %v3749, %v3748
      %v3779 = vpack.c.bf16 %v3751, %v3750
      %v3780 = vpack.c.bf16 %v3753, %v3752
      %v3781 = vpack.c.bf16 %v3755, %v3754
      %v3782 = vpack.c.bf16 %v3757, %v3756
      %v3783 = vpack.c.bf16 %v3759, %v3758
      %v3784 = vpack.c.bf16 %v3761, %v3760
      %v3785 = vpack.c.bf16 %v3763, %v3762
      %v3786 = vpack.c.bf16 %v3765, %v3764
      %v3787 = vpack.c.bf16 %v3767, %v3766
      %v3788 = vpack.c.bf16 %v3769, %v3768
      %v3789 = vpack.c.bf16 %v3771, %v3770
      %v3790 = vpack.c.bf16 %v3773, %v3772
      %v3791 = vpack.c.bf16 %v3775, %v3774
      %3808 = vrot.lane.b32.xlu0 %v3776, 28
      %v3809 = vpop.permute.xlu0 %3808
      %3810 = vrot.lane.b32.xlu0 %v3777, 28
      %v3811 = vpop.permute.xlu0 %3810
      %3812 = vrot.lane.b32.xlu0 %v3778, 28
      %v3813 = vpop.permute.xlu0 %3812
      %3814 = vrot.lane.b32.xlu0 %v3779, 28
      %v3815 = vpop.permute.xlu0 %3814
      %3816 = vrot.lane.b32.xlu0 %v3780, 28
      %v3817 = vpop.permute.xlu0 %3816
      %3818 = vrot.lane.b32.xlu0 %v3781, 28
      %v3819 = vpop.permute.xlu0 %3818
      %3820 = vrot.lane.b32.xlu0 %v3782, 28
      %v3821 = vpop.permute.xlu0 %3820
      %3822 = vrot.lane.b32.xlu0 %v3783, 28
      %v3823 = vpop.permute.xlu0 %3822
      %3824 = vrot.lane.b32.xlu0 %v3784, 28
      %v3825 = vpop.permute.xlu0 %3824
      %3826 = vrot.lane.b32.xlu0 %v3785, 28
      %v3827 = vpop.permute.xlu0 %3826
      %3828 = vrot.lane.b32.xlu0 %v3786, 28
      %v3829 = vpop.permute.xlu0 %3828
      %3830 = vrot.lane.b32.xlu0 %v3787, 28
      %v3831 = vpop.permute.xlu0 %3830
      %3832 = vrot.lane.b32.xlu0 %v3788, 28
      %v3833 = vpop.permute.xlu0 %3832
      %3834 = vrot.lane.b32.xlu0 %v3789, 28
      %v3835 = vpop.permute.xlu0 %3834
      %3836 = vrot.lane.b32.xlu0 %v3790, 28
      %v3837 = vpop.permute.xlu0 %3836
      %3838 = vrot.lane.b32.xlu0 %v3791, 28
      %v3839 = vpop.permute.xlu0 %3838
      %vm3856 = vcmask 261344
      %3857 = vst.msk [vmem:[#allocation5] sm:$0xff] %vm3856, %v3809
      %3858 = vst.msk [vmem:[#allocation5 + $0x8] sm:$0xff] %vm3856, %v3811
      %3859 = vst.msk [vmem:[#allocation5 + $0x10] sm:$0xff] %vm3856, %v3813
      %3860 = vst.msk [vmem:[#allocation5 + $0x18] sm:$0xff] %vm3856, %v3815
      %3861 = vst.msk [vmem:[#allocation5 + $0x20] sm:$0xff] %vm3856, %v3817
      %3862 = vst.msk [vmem:[#allocation5 + $0x28] sm:$0xff] %vm3856, %v3819
      %3863 = vst.msk [vmem:[#allocation5 + $0x30] sm:$0xff] %vm3856, %v3821
      %3864 = vst.msk [vmem:[#allocation5 + $0x38] sm:$0xff] %vm3856, %v3823
      %3865 = vst.msk [vmem:[#allocation5 + $0x40] sm:$0xff] %vm3856, %v3825
      %3866 = vst.msk [vmem:[#allocation5 + $0x48] sm:$0xff] %vm3856, %v3827
      %3867 = vst.msk [vmem:[#allocation5 + $0x50] sm:$0xff] %vm3856, %v3829
      %3868 = vst.msk [vmem:[#allocation5 + $0x58] sm:$0xff] %vm3856, %v3831
      %3869 = vst.msk [vmem:[#allocation5 + $0x60] sm:$0xff] %vm3856, %v3833
      %3870 = vst.msk [vmem:[#allocation5 + $0x68] sm:$0xff] %vm3856, %v3835
      %3871 = vst.msk [vmem:[#allocation5 + $0x70] sm:$0xff] %vm3856, %v3837
      %3872 = vst.msk [vmem:[#allocation5 + $0x78] sm:$0xff] %vm3856, %v3839
      %v3873 = vld [vmem:[%s3614 + $0x2] sm:$0xff]
      %v3874 = vld [vmem:[%s3614 + $0xa] sm:$0xff]
      %v3875 = vld [vmem:[%s3614 + $0x1a] sm:$0xff]
      %v3876 = vld [vmem:[%s3614 + $0x22] sm:$0xff]
      %v3877 = vld [vmem:[%s3614 + $0x32] sm:$0xff]
      %v3878 = vld [vmem:[%s3614 + $0x3a] sm:$0xff]
      %v3879 = vld [vmem:[%s3614 + $0x4a] sm:$0xff]
      %v3880 = vld [vmem:[%s3614 + $0x52] sm:$0xff]
      %v3881 = vld [vmem:[%s3614 + $0x62] sm:$0xff]
      %v3882 = vld [vmem:[%s3614 + $0x6a] sm:$0xff]
      %v3883 = vld [vmem:[%s3614 + $0x7a] sm:$0xff]
      %v3884 = vld [vmem:[%s3614 + $0x82] sm:$0xff]
      %v3885 = vld [vmem:[%s3614 + $0x92] sm:$0xff]
      %v3886 = vld [vmem:[%s3614 + $0x9a] sm:$0xff]
      %v3887 = vld [vmem:[%s3614 + $0xaa] sm:$0xff]
      %v3888 = vld [vmem:[%s3614 + $0xb2] sm:$0xff]
      %v3889 = vld [vmem:[%s3614 + $0xc2] sm:$0xff]
      %v3890 = vld [vmem:[%s3614 + $0xca] sm:$0xff]
      %v3891 = vld [vmem:[%s3614 + $0xda] sm:$0xff]
      %v3892 = vld [vmem:[%s3614 + $0xe2] sm:$0xff]
      %v3893 = vld [vmem:[%s3614 + $0xf2] sm:$0xff]
      %v3894 = vld [vmem:[%s3614 + $0xfa] sm:$0xff]
      %v3895 = vld [vmem:[%s3614 + $0x10a] sm:$0xff]
      %v3896 = vld [vmem:[%s3614 + $0x112] sm:$0xff]
      %v3897 = vld [vmem:[%s3614 + $0x122] sm:$0xff]
      %v3898 = vld [vmem:[%s3614 + $0x12a] sm:$0xff]
      %v3899 = vld [vmem:[%s3614 + $0x13a] sm:$0xff]
      %v3900 = vld [vmem:[%s3614 + $0x142] sm:$0xff]
      %v3901 = vld [vmem:[%s3614 + $0x152] sm:$0xff]
      %v3902 = vld [vmem:[%s3614 + $0x15a] sm:$0xff]
      %v3903 = vld [vmem:[%s3614 + $0x16a] sm:$0xff]
      %v3904 = vld [vmem:[%s3614 + $0x172] sm:$0xff]
      %v3905 = vpack.c.bf16 %v3874, %v3873
      %v3906 = vpack.c.bf16 %v3876, %v3875
      %v3907 = vpack.c.bf16 %v3878, %v3877
      %v3908 = vpack.c.bf16 %v3880, %v3879
      %v3909 = vpack.c.bf16 %v3882, %v3881
      %v3910 = vpack.c.bf16 %v3884, %v3883
      %v3911 = vpack.c.bf16 %v3886, %v3885
      %v3912 = vpack.c.bf16 %v3888, %v3887
      %v3913 = vpack.c.bf16 %v3890, %v3889
      %v3914 = vpack.c.bf16 %v3892, %v3891
      %v3915 = vpack.c.bf16 %v3894, %v3893
      %v3916 = vpack.c.bf16 %v3896, %v3895
      %v3917 = vpack.c.bf16 %v3898, %v3897
      %v3918 = vpack.c.bf16 %v3900, %v3899
      %v3919 = vpack.c.bf16 %v3902, %v3901
      %v3920 = vpack.c.bf16 %v3904, %v3903
      %3937 = vrot.lane.b32.xlu0 %v3905, 32
      %v3938 = vpop.permute.xlu0 %3937
      %3939 = vrot.lane.b32.xlu0 %v3906, 32
      %v3940 = vpop.permute.xlu0 %3939
      %3941 = vrot.lane.b32.xlu0 %v3907, 32
      %v3942 = vpop.permute.xlu0 %3941
      %3943 = vrot.lane.b32.xlu0 %v3908, 32
      %v3944 = vpop.permute.xlu0 %3943
      %3945 = vrot.lane.b32.xlu0 %v3909, 32
      %v3946 = vpop.permute.xlu0 %3945
      %3947 = vrot.lane.b32.xlu0 %v3910, 32
      %v3948 = vpop.permute.xlu0 %3947
      %3949 = vrot.lane.b32.xlu0 %v3911, 32
      %v3950 = vpop.permute.xlu0 %3949
      %3951 = vrot.lane.b32.xlu0 %v3912, 32
      %v3952 = vpop.permute.xlu0 %3951
      %3953 = vrot.lane.b32.xlu0 %v3913, 32
      %v3954 = vpop.permute.xlu0 %3953
      %3955 = vrot.lane.b32.xlu0 %v3914, 32
      %v3956 = vpop.permute.xlu0 %3955
      %3957 = vrot.lane.b32.xlu0 %v3915, 32
      %v3958 = vpop.permute.xlu0 %3957
      %3959 = vrot.lane.b32.xlu0 %v3916, 32
      %v3960 = vpop.permute.xlu0 %3959
      %3961 = vrot.lane.b32.xlu0 %v3917, 32
      %v3962 = vpop.permute.xlu0 %3961
      %3963 = vrot.lane.b32.xlu0 %v3918, 32
      %v3964 = vpop.permute.xlu0 %3963
      %3965 = vrot.lane.b32.xlu0 %v3919, 32
      %v3966 = vpop.permute.xlu0 %3965
      %3967 = vrot.lane.b32.xlu0 %v3920, 32
      %v3968 = vpop.permute.xlu0 %3967
      %vm3985 = vcmask 294144
      %3986 = vst.msk [vmem:[#allocation5] sm:$0xff] %vm3985, %v3938
      %3987 = vst.msk [vmem:[#allocation5 + $0x8] sm:$0xff] %vm3985, %v3940
      %3988 = vst.msk [vmem:[#allocation5 + $0x10] sm:$0xff] %vm3985, %v3942
      %3989 = vst.msk [vmem:[#allocation5 + $0x18] sm:$0xff] %vm3985, %v3944
      %3990 = vst.msk [vmem:[#allocation5 + $0x20] sm:$0xff] %vm3985, %v3946
      %3991 = vst.msk [vmem:[#allocation5 + $0x28] sm:$0xff] %vm3985, %v3948
      %3992 = vst.msk [vmem:[#allocation5 + $0x30] sm:$0xff] %vm3985, %v3950
      %3993 = vst.msk [vmem:[#allocation5 + $0x38] sm:$0xff] %vm3985, %v3952
      %3994 = vst.msk [vmem:[#allocation5 + $0x40] sm:$0xff] %vm3985, %v3954
      %3995 = vst.msk [vmem:[#allocation5 + $0x48] sm:$0xff] %vm3985, %v3956
      %3996 = vst.msk [vmem:[#allocation5 + $0x50] sm:$0xff] %vm3985, %v3958
      %3997 = vst.msk [vmem:[#allocation5 + $0x58] sm:$0xff] %vm3985, %v3960
      %3998 = vst.msk [vmem:[#allocation5 + $0x60] sm:$0xff] %vm3985, %v3962
      %3999 = vst.msk [vmem:[#allocation5 + $0x68] sm:$0xff] %vm3985, %v3964
      %4000 = vst.msk [vmem:[#allocation5 + $0x70] sm:$0xff] %vm3985, %v3966
      %4001 = vst.msk [vmem:[#allocation5 + $0x78] sm:$0xff] %vm3985, %v3968
      %v4002 = vld [vmem:[#allocation5] sm:$0xff]
      %v4003 = vld [vmem:[#allocation5 + $0x8] sm:$0xff]
      %v4004 = vld [vmem:[#allocation5 + $0x10] sm:$0xff]
      %v4005 = vld [vmem:[#allocation5 + $0x18] sm:$0xff]
      %v4006 = vld [vmem:[#allocation5 + $0x20] sm:$0xff]
      %v4007 = vld [vmem:[#allocation5 + $0x28] sm:$0xff]
      %v4008 = vld [vmem:[#allocation5 + $0x30] sm:$0xff]
      %v4009 = vld [vmem:[#allocation5 + $0x38] sm:$0xff]
      %v4010 = vld [vmem:[#allocation5 + $0x40] sm:$0xff]
      %v4011 = vld [vmem:[#allocation5 + $0x48] sm:$0xff]
      %v4012 = vld [vmem:[#allocation5 + $0x50] sm:$0xff]
      %v4013 = vld [vmem:[#allocation5 + $0x58] sm:$0xff]
      %v4014 = vld [vmem:[#allocation5 + $0x60] sm:$0xff]
      %v4015 = vld [vmem:[#allocation5 + $0x68] sm:$0xff]
      %v4016 = vld [vmem:[#allocation5 + $0x70] sm:$0xff]
      %v4017 = vld [vmem:[#allocation5 + $0x78] sm:$0xff]
      %v4018 = vld [vmem:[%s6] sm:$0xf]
      %v4019 = vld [vmem:[%s6 + $0x4] sm:$0xf]
      %v4020 = vld [vmem:[%s6 + $0x8] sm:$0xf]
      %v4021 = vld [vmem:[%s6 + $0xc] sm:$0xf]
      %v4022 = vld [vmem:[%s6 + $0x10] sm:$0x3]
      %v4024 = vlaneseq
      %v4025 = vshrl.u32 %v4024, 7
      %v4026 = vsub.s32 0, %v4025
      %v4027 = vrot.slane %v2905, %v4026
      %v4034 = vunpack.c.l.b16 %v4018
      %v4035 = vunpack.c.l.b16 %v4019
      %v4036 = vunpack.c.l.b16 %v4020
      %v4037 = vunpack.c.l.b16 %v4021
      %v4038 = vunpack.c.l.b16 %v4022
      %v4039 = vpack.c.b16 %v4035, %v4034
      %v4040 = vpack.c.b16 %v4037, %v4036
      %v4041 = vpack.c.b16 %v4038, %v4038
      %vm4044 = vcmask 293888
      %v4046 = vsel %vm4044, %v4002, 0
      %v4049 = vsel %vm4044, %v4003, 0
      %v4052 = vsel %vm4044, %v4004, 0
      %v4055 = vsel %vm4044, %v4005, 0
      %v4058 = vsel %vm4044, %v4006, 0
      %v4061 = vsel %vm4044, %v4007, 0
      %v4064 = vsel %vm4044, %v4008, 0
      %v4067 = vsel %vm4044, %v4009, 0
      %v4070 = vsel %vm4044, %v4010, 0
      %v4073 = vsel %vm4044, %v4011, 0
      %v4076 = vsel %vm4044, %v4012, 0
      %v4079 = vsel %vm4044, %v4013, 0
      %v4082 = vsel %vm4044, %v4014, 0
      %v4085 = vsel %vm4044, %v4015, 0
      %v4088 = vsel %vm4044, %v4016, 0
      %v4091 = vsel %vm4044, %v4017, 0
      %vm4093 = vcmask 1041408
      %v4095 = vsel %vm4093, %v4041, 0
      %4097 = vmatprep.subr.bf16.mxu0 0
      %4098 = vmatpush1.bf16.msra.mxu0 %v4039
      %4099 = vmatprep.subr.bf16.mxu0 0
      %4100 = vmatpush1.bf16.msra.mxu0 %v4040
      %4101 = vmatprep.subr.bf16.mxu0 0
      %4102 = vmatpush1.bf16.msra.mxu0 %v4095
      %4103 = vmatprep.subr.bf16.mxu0 0
      %4104 = vmatpush1.bf16.msra.mxu0 0
      %4105 = vmatprep.subr.bf16.mxu0 0
      %4106 = vmatpush1.bf16.msra.mxu0 0
      %4107 = vmatprep.subr.bf16.mxu0 0
      %4108 = vmatpush1.bf16.msra.mxu0 0
      %4109 = vmatprep.subr.bf16.mxu0 0
      %4110 = vmatpush1.bf16.msra.mxu0 0
      %4111 = vmatprep.subr.bf16.mxu0 0
      %4112 = vmatpush1.bf16.msra.mxu0 0
      %4113 = vmatprep.subr.bf16.mxu0 0
      %4114 = vmatpush1.bf16.msra.mxu0 0
      %4115 = vmatprep.subr.bf16.mxu0 0
      %4116 = vmatpush1.bf16.msra.mxu0 0
      %4117 = vmatprep.subr.bf16.mxu0 0
      %4118 = vmatpush1.bf16.msra.mxu0 0
      %4119 = vmatprep.subr.bf16.mxu0 0
      %4120 = vmatpush1.bf16.msra.mxu0 0
      %4121 = vmatprep.subr.bf16.mxu0 0
      %4122 = vmatpush1.bf16.msra.mxu0 0
      %4123 = vmatprep.subr.bf16.mxu0 0
      %4124 = vmatpush1.bf16.msra.mxu0 0
      %4125 = vmatprep.subr.bf16.mxu0 0
      %4126 = vmatpush1.bf16.msra.mxu0 0
      %4127 = vmatprep.subr.bf16.mxu0 0
      %4128 = vmatpush1.bf16.msra.mxu0 0
      %4129 = vmatprep.mubr.bf16.mxu0 0
      %4130 = vmatmul.mubr.bf16.gmra.mrb[0].mxu0 %v4046
      %v4131 = vpop.f32.mrb[0].mxu0
      %v4132 = vadd.f32 %v4027, %v4131
      %v4133 = vpop.f32.mrb[0].mxu0
      %v4134 = vpop.f32.mrb[0].mxu0
      %v4135 = vadd.f32 %v4027, %v4134
      %v4136 = vpop.f32.mrb[0].mxu0
      %4137 = vmatprep.mubr.bf16.mxu0 0
      %4138 = vmatmul.mubr.bf16.gmra.mrb[0].mxu0 %v4049
      %v4139 = vpop.f32.mrb[0].mxu0
      %v4140 = vadd.f32 %v4027, %v4139
      %v4141 = vpop.f32.mrb[0].mxu0
      %v4142 = vpop.f32.mrb[0].mxu0
      %v4143 = vadd.f32 %v4027, %v4142
      %v4144 = vpop.f32.mrb[0].mxu0
      %4145 = vmatprep.mubr.bf16.mxu0 0
      %4146 = vmatmul.mubr.bf16.gmra.mrb[0].mxu0 %v4052
      %v4147 = vpop.f32.mrb[0].mxu0
      %v4148 = vadd.f32 %v4027, %v4147
      %v4149 = vpop.f32.mrb[0].mxu0
      %v4150 = vpop.f32.mrb[0].mxu0
      %v4151 = vadd.f32 %v4027, %v4150
      %v4152 = vpop.f32.mrb[0].mxu0
      %4153 = vmatprep.mubr.bf16.mxu0 0
      %4154 = vmatmul.mubr.bf16.gmra.mrb[0].mxu0 %v4055
      %v4155 = vpop.f32.mrb[0].mxu0
      %v4156 = vadd.f32 %v4027, %v4155
      %v4157 = vpop.f32.mrb[0].mxu0
      %v4158 = vpop.f32.mrb[0].mxu0
      %v4159 = vadd.f32 %v4027, %v4158
      %v4160 = vpop.f32.mrb[0].mxu0
      %4161 = vmatprep.mubr.bf16.mxu0 0
      %4162 = vmatmul.mubr.bf16.gmra.mrb[0].mxu0 %v4058
      %v4163 = vpop.f32.mrb[0].mxu0
      %v4164 = vadd.f32 %v4027, %v4163
      %v4165 = vpop.f32.mrb[0].mxu0
      %v4166 = vpop.f32.mrb[0].mxu0
      %v4167 = vadd.f32 %v4027, %v4166
      %v4168 = vpop.f32.mrb[0].mxu0
      %4169 = vmatprep.mubr.bf16.mxu0 0
      %4170 = vmatmul.mubr.bf16.gmra.mrb[0].mxu0 %v4061
      %v4171 = vpop.f32.mrb[0].mxu0
      %v4172 = vadd.f32 %v4027, %v4171
      %v4173 = vpop.f32.mrb[0].mxu0
      %v4174 = vpop.f32.mrb[0].mxu0
      %v4175 = vadd.f32 %v4027, %v4174
      %v4176 = vpop.f32.mrb[0].mxu0
      %4177 = vmatprep.mubr.bf16.mxu0 0
      %4178 = vmatmul.mubr.bf16.gmra.mrb[0].mxu0 %v4064
      %v4179 = vpop.f32.mrb[0].mxu0
      %v4180 = vadd.f32 %v4027, %v4179
      %v4181 = vpop.f32.mrb[0].mxu0
      %v4182 = vpop.f32.mrb[0].mxu0
      %v4183 = vadd.f32 %v4027, %v4182
      %v4184 = vpop.f32.mrb[0].mxu0
      %4185 = vmatprep.mubr.bf16.mxu0 0
      %4186 = vmatmul.mubr.bf16.gmra.mrb[0].mxu0 %v4067
      %v4187 = vpop.f32.mrb[0].mxu0
      %v4188 = vadd.f32 %v4027, %v4187
      %v4189 = vpop.f32.mrb[0].mxu0
      %v4190 = vpop.f32.mrb[0].mxu0
      %v4191 = vadd.f32 %v4027, %v4190
      %v4192 = vpop.f32.mrb[0].mxu0
      %4193 = vmatprep.mubr.bf16.mxu0 0
      %4194 = vmatmul.mubr.bf16.gmra.mrb[0].mxu0 %v4070
      %v4195 = vpop.f32.mrb[0].mxu0
      %v4196 = vadd.f32 %v4027, %v4195
      %v4197 = vpop.f32.mrb[0].mxu0
      %v4198 = vpop.f32.mrb[0].mxu0
      %v4199 = vadd.f32 %v4027, %v4198
      %v4200 = vpop.f32.mrb[0].mxu0
      %4201 = vmatprep.mubr.bf16.mxu0 0
      %4202 = vmatmul.mubr.bf16.gmra.mrb[0].mxu0 %v4073
      %v4203 = vpop.f32.mrb[0].mxu0
      %v4204 = vadd.f32 %v4027, %v4203
      %v4205 = vpop.f32.mrb[0].mxu0
      %v4206 = vpop.f32.mrb[0].mxu0
      %v4207 = vadd.f32 %v4027, %v4206
      %v4208 = vpop.f32.mrb[0].mxu0
      %4209 = vmatprep.mubr.bf16.mxu0 0
      %4210 = vmatmul.mubr.bf16.gmra.mrb[0].mxu0 %v4076
      %v4211 = vpop.f32.mrb[0].mxu0
      %v4212 = vadd.f32 %v4027, %v4211
      %v4213 = vpop.f32.mrb[0].mxu0
      %v4214 = vpop.f32.mrb[0].mxu0
      %v4215 = vadd.f32 %v4027, %v4214
      %v4216 = vpop.f32.mrb[0].mxu0
      %4217 = vmatprep.mubr.bf16.mxu0 0
      %4218 = vmatmul.mubr.bf16.gmra.mrb[0].mxu0 %v4079
      %v4219 = vpop.f32.mrb[0].mxu0
      %v4220 = vadd.f32 %v4027, %v4219
      %v4221 = vpop.f32.mrb[0].mxu0
      %v4222 = vpop.f32.mrb[0].mxu0
      %v4223 = vadd.f32 %v4027, %v4222
      %v4224 = vpop.f32.mrb[0].mxu0
      %4225 = vmatprep.mubr.bf16.mxu0 0
      %4226 = vmatmul.mubr.bf16.gmra.mrb[0].mxu0 %v4082
      %v4227 = vpop.f32.mrb[0].mxu0
      %v4228 = vadd.f32 %v4027, %v4227
      %v4229 = vpop.f32.mrb[0].mxu0
      %v4230 = vpop.f32.mrb[0].mxu0
      %v4231 = vadd.f32 %v4027, %v4230
      %v4232 = vpop.f32.mrb[0].mxu0
      %4233 = vmatprep.mubr.bf16.mxu0 0
      %4234 = vmatmul.mubr.bf16.gmra.mrb[0].mxu0 %v4085
      %v4235 = vpop.f32.mrb[0].mxu0
      %v4236 = vadd.f32 %v4027, %v4235
      %v4237 = vpop.f32.mrb[0].mxu0
      %v4238 = vpop.f32.mrb[0].mxu0
      %v4239 = vadd.f32 %v4027, %v4238
      %v4240 = vpop.f32.mrb[0].mxu0
      %4241 = vmatprep.mubr.bf16.mxu0 0
      %4242 = vmatmul.mubr.bf16.gmra.mrb[0].mxu0 %v4088
      %v4243 = vpop.f32.mrb[0].mxu0
      %v4244 = vadd.f32 %v4027, %v4243
      %v4245 = vpop.f32.mrb[0].mxu0
      %v4246 = vpop.f32.mrb[0].mxu0
      %v4247 = vadd.f32 %v4027, %v4246
      %v4248 = vpop.f32.mrb[0].mxu0
      %4249 = vmatprep.mubr.bf16.mxu0 0
      %4250 = vmatmul.mubr.bf16.gmra.mrb[0].mxu0 %v4091
      %v4251 = vpop.f32.mrb[0].mxu0
      %v4252 = vadd.f32 %v4027, %v4251
      %v4253 = vpop.f32.mrb[0].mxu0
      %v4254 = vpop.f32.mrb[0].mxu0
      %v4255 = vadd.f32 %v4027, %v4254
      %v4256 = vpop.f32.mrb[0].mxu0
      %4257 = vdwg.mxu0
      %v4258 = vld [vmem:[%s8] sm:$0x1]
      %v4259 = vld [vmem:[%s9] sm:$0x1]
      %v4260 = vsel %vm584, %v4132, 0.0
      %v4261 = vsel %vm584, %v4135, 0.0
      %v4262 = vadd.f32 %v4260, %v4261
      %v4263 = vsel %vm584, %v4140, 0.0
      %v4264 = vadd.f32 %v4262, %v4263
      %v4265 = vsel %vm584, %v4143, 0.0
      %v4266 = vadd.f32 %v4264, %v4265
      %v4267 = vsel %vm584, %v4148, 0.0
      %v4268 = vadd.f32 %v4266, %v4267
      %v4269 = vsel %vm584, %v4151, 0.0
      %v4270 = vadd.f32 %v4268, %v4269
      %v4271 = vsel %vm584, %v4156, 0.0
      %v4272 = vadd.f32 %v4270, %v4271
      %v4273 = vsel %vm584, %v4159, 0.0
      %v4274 = vadd.f32 %v4272, %v4273
      %v4275 = vsel %vm584, %v4164, 0.0
      %v4276 = vadd.f32 %v4274, %v4275
      %v4277 = vsel %vm584, %v4167, 0.0
      %v4278 = vadd.f32 %v4276, %v4277
      %v4279 = vsel %vm584, %v4172, 0.0
      %v4280 = vadd.f32 %v4278, %v4279
      %v4281 = vsel %vm584, %v4175, 0.0
      %v4282 = vadd.f32 %v4280, %v4281
      %v4283 = vsel %vm584, %v4180, 0.0
      %v4284 = vadd.f32 %v4282, %v4283
      %v4285 = vsel %vm584, %v4183, 0.0
      %v4286 = vadd.f32 %v4284, %v4285
      %v4287 = vsel %vm584, %v4188, 0.0
      %v4288 = vadd.f32 %v4286, %v4287
      %v4289 = vsel %vm584, %v4191, 0.0
      %v4290 = vadd.f32 %v4288, %v4289
      %v4291 = vsel %vm584, %v4196, 0.0
      %v4292 = vadd.f32 %v4290, %v4291
      %v4293 = vsel %vm584, %v4199, 0.0
      %v4294 = vadd.f32 %v4292, %v4293
      %v4295 = vsel %vm584, %v4204, 0.0
      %v4296 = vadd.f32 %v4294, %v4295
      %v4297 = vsel %vm584, %v4207, 0.0
      %v4298 = vadd.f32 %v4296, %v4297
      %v4299 = vsel %vm584, %v4212, 0.0
      %v4300 = vadd.f32 %v4298, %v4299
      %v4301 = vsel %vm584, %v4215, 0.0
      %v4302 = vadd.f32 %v4300, %v4301
      %v4303 = vsel %vm584, %v4220, 0.0
      %v4304 = vadd.f32 %v4302, %v4303
      %v4305 = vsel %vm584, %v4223, 0.0
      %v4306 = vadd.f32 %v4304, %v4305
      %v4307 = vsel %vm584, %v4228, 0.0
      %v4308 = vadd.f32 %v4306, %v4307
      %v4309 = vsel %vm584, %v4231, 0.0
      %v4310 = vadd.f32 %v4308, %v4309
      %v4311 = vsel %vm584, %v4236, 0.0
      %v4312 = vadd.f32 %v4310, %v4311
      %v4313 = vsel %vm584, %v4239, 0.0
      %v4314 = vadd.f32 %v4312, %v4313
      %v4315 = vsel %vm584, %v4244, 0.0
      %v4316 = vadd.f32 %v4314, %v4315
      %v4317 = vsel %vm584, %v4247, 0.0
      %v4318 = vadd.f32 %v4316, %v4317
      %v4319 = vsel %vm584, %v4252, 0.0
      %v4320 = vadd.f32 %v4318, %v4319
      %v4321 = vsel %vm584, %v4255, 0.0
      %v4322 = vadd.f32 %v4320, %v4321
      %v4323 = vrot.slane %v4322, 4
      %v4324 = vadd.f32 %v4322, %v4323
      %v4325 = vrot.slane %v4324, 2
      %v4326 = vadd.f32 %v4324, %v4325
      %v4327 = vrot.slane %v4326, 1
      %v4328 = vadd.f32 %v4326, %v4327
      %v4329 = vmul.f32 %v4132, %v4132
      %v4330 = vmul.f32 %v4135, %v4135
      %v4331 = vmul.f32 %v4140, %v4140
      %v4332 = vmul.f32 %v4143, %v4143
      %v4333 = vmul.f32 %v4148, %v4148
      %v4334 = vmul.f32 %v4151, %v4151
      %v4335 = vmul.f32 %v4156, %v4156
      %v4336 = vmul.f32 %v4159, %v4159
      %v4337 = vmul.f32 %v4164, %v4164
      %v4338 = vmul.f32 %v4167, %v4167
      %v4339 = vmul.f32 %v4172, %v4172
      %v4340 = vmul.f32 %v4175, %v4175
      %v4341 = vmul.f32 %v4180, %v4180
      %v4342 = vmul.f32 %v4183, %v4183
      %v4343 = vmul.f32 %v4188, %v4188
      %v4344 = vmul.f32 %v4191, %v4191
      %v4345 = vmul.f32 %v4196, %v4196
      %v4346 = vmul.f32 %v4199, %v4199
      %v4347 = vmul.f32 %v4204, %v4204
      %v4348 = vmul.f32 %v4207, %v4207
      %v4349 = vmul.f32 %v4212, %v4212
      %v4350 = vmul.f32 %v4215, %v4215
      %v4351 = vmul.f32 %v4220, %v4220
      %v4352 = vmul.f32 %v4223, %v4223
      %v4353 = vmul.f32 %v4228, %v4228
      %v4354 = vmul.f32 %v4231, %v4231
      %v4355 = vmul.f32 %v4236, %v4236
      %v4356 = vmul.f32 %v4239, %v4239
      %v4357 = vmul.f32 %v4244, %v4244
      %v4358 = vmul.f32 %v4247, %v4247
      %v4359 = vmul.f32 %v4252, %v4252
      %v4360 = vmul.f32 %v4255, %v4255
      %v4361 = vsel %vm584, %v4329, 0.0
      %v4362 = vsel %vm584, %v4330, 0.0
      %v4363 = vadd.f32 %v4361, %v4362
      %v4364 = vsel %vm584, %v4331, 0.0
      %v4365 = vadd.f32 %v4363, %v4364
      %v4366 = vsel %vm584, %v4332, 0.0
      %v4367 = vadd.f32 %v4365, %v4366
      %v4368 = vsel %vm584, %v4333, 0.0
      %v4369 = vadd.f32 %v4367, %v4368
      %v4370 = vsel %vm584, %v4334, 0.0
      %v4371 = vadd.f32 %v4369, %v4370
      %v4372 = vsel %vm584, %v4335, 0.0
      %v4373 = vadd.f32 %v4371, %v4372
      %v4374 = vsel %vm584, %v4336, 0.0
      %v4375 = vadd.f32 %v4373, %v4374
      %v4376 = vsel %vm584, %v4337, 0.0
      %v4377 = vadd.f32 %v4375, %v4376
      %v4378 = vsel %vm584, %v4338, 0.0
      %v4379 = vadd.f32 %v4377, %v4378
      %v4380 = vsel %vm584, %v4339, 0.0
      %v4381 = vadd.f32 %v4379, %v4380
      %v4382 = vsel %vm584, %v4340, 0.0
      %v4383 = vadd.f32 %v4381, %v4382
      %v4384 = vsel %vm584, %v4341, 0.0
      %v4385 = vadd.f32 %v4383, %v4384
      %v4386 = vsel %vm584, %v4342, 0.0
      %v4387 = vadd.f32 %v4385, %v4386
      %v4388 = vsel %vm584, %v4343, 0.0
      %v4389 = vadd.f32 %v4387, %v4388
      %v4390 = vsel %vm584, %v4344, 0.0
      %v4391 = vadd.f32 %v4389, %v4390
      %v4392 = vsel %vm584, %v4345, 0.0
      %v4393 = vadd.f32 %v4391, %v4392
      %v4394 = vsel %vm584, %v4346, 0.0
      %v4395 = vadd.f32 %v4393, %v4394
      %v4396 = vsel %vm584, %v4347, 0.0
      %v4397 = vadd.f32 %v4395, %v4396
      %v4398 = vsel %vm584, %v4348, 0.0
      %v4399 = vadd.f32 %v4397, %v4398
      %v4400 = vsel %vm584, %v4349, 0.0
      %v4401 = vadd.f32 %v4399, %v4400
      %v4402 = vsel %vm584, %v4350, 0.0
      %v4403 = vadd.f32 %v4401, %v4402
      %v4404 = vsel %vm584, %v4351, 0.0
      %v4405 = vadd.f32 %v4403, %v4404
      %v4406 = vsel %vm584, %v4352, 0.0
      %v4407 = vadd.f32 %v4405, %v4406
      %v4408 = vsel %vm584, %v4353, 0.0
      %v4409 = vadd.f32 %v4407, %v4408
      %v4410 = vsel %vm584, %v4354, 0.0
      %v4411 = vadd.f32 %v4409, %v4410
      %v4412 = vsel %vm584, %v4355, 0.0
      %v4413 = vadd.f32 %v4411, %v4412
      %v4414 = vsel %vm584, %v4356, 0.0
      %v4415 = vadd.f32 %v4413, %v4414
      %v4416 = vsel %vm584, %v4357, 0.0
      %v4417 = vadd.f32 %v4415, %v4416
      %v4418 = vsel %vm584, %v4358, 0.0
      %v4419 = vadd.f32 %v4417, %v4418
      %v4420 = vsel %vm584, %v4359, 0.0
      %v4421 = vadd.f32 %v4419, %v4420
      %v4422 = vsel %vm584, %v4360, 0.0
      %v4423 = vadd.f32 %v4421, %v4422
      %v4424 = vrot.slane %v4423, 4
      %v4425 = vadd.f32 %v4423, %v4424
      %v4426 = vrot.slane %v4425, 2
      %v4427 = vadd.f32 %v4425, %v4426
      %v4428 = vrot.slane %v4427, 1
      %v4429 = vadd.f32 %v4427, %v4428
      %v4430 = vld [vmem:[%s10] sm:$0xf]
      %v4432 = vsel %vm584, %v4328, 0
      %v4435 = vsel %vm2048, %v4430, 0
      %4437 = vmatprep.subr.mxu0 0.0
      %4438 = vmatpush1.msra.mxu0 %v4435
      %4439 = vmatprep.subr.mxu0 0.0
      %4440 = vmatpush1.msra.mxu0 0.0
      %4441 = vmatprep.subr.mxu0 0.0
      %4442 = vmatpush1.msra.mxu0 0.0
      %4443 = vmatprep.subr.mxu0 0.0
      %4444 = vmatpush1.msra.mxu0 0.0
      %4445 = vmatprep.subr.mxu0 0.0
      %4446 = vmatpush1.msra.mxu0 0.0
      %4447 = vmatprep.subr.mxu0 0.0
      %4448 = vmatpush1.msra.mxu0 0.0
      %4449 = vmatprep.subr.mxu0 0.0
      %4450 = vmatpush1.msra.mxu0 0.0
      %4451 = vmatprep.subr.mxu0 0.0
      %4452 = vmatpush1.msra.mxu0 0.0
      %4453 = vmatprep.subr.mxu0 0.0
      %4454 = vmatpush1.msra.mxu0 0.0
      %4455 = vmatprep.subr.mxu0 0.0
      %4456 = vmatpush1.msra.mxu0 0.0
      %4457 = vmatprep.subr.mxu0 0.0
      %4458 = vmatpush1.msra.mxu0 0.0
      %4459 = vmatprep.subr.mxu0 0.0
      %4460 = vmatpush1.msra.mxu0 0.0
      %4461 = vmatprep.subr.mxu0 0.0
      %4462 = vmatpush1.msra.mxu0 0.0
      %4463 = vmatprep.subr.mxu0 0.0
      %4464 = vmatpush1.msra.mxu0 0.0
      %4465 = vmatprep.subr.mxu0 0.0
      %4466 = vmatpush1.msra.mxu0 0.0
      %4467 = vmatprep.subr.mxu0 0.0
      %4468 = vmatpush1.msra.mxu0 0.0
      %4469 = vmatprep.subr.mxu0 0.0
      %4470 = vmatpush1.msra.mxu0 0.0
      %4471 = vmatprep.subr.mxu0 0.0
      %4472 = vmatpush1.msra.mxu0 0.0
      %4473 = vmatprep.subr.mxu0 0.0
      %4474 = vmatpush1.msra.mxu0 0.0
      %4475 = vmatprep.subr.mxu0 0.0
      %4476 = vmatpush1.msra.mxu0 0.0
      %4477 = vmatprep.subr.mxu0 0.0
      %4478 = vmatpush1.msra.mxu0 0.0
      %4479 = vmatprep.subr.mxu0 0.0
      %4480 = vmatpush1.msra.mxu0 0.0
      %4481 = vmatprep.subr.mxu0 0.0
      %4482 = vmatpush1.msra.mxu0 0.0
      %4483 = vmatprep.subr.mxu0 0.0
      %4484 = vmatpush1.msra.mxu0 0.0
      %4485 = vmatprep.subr.mxu0 0.0
      %4486 = vmatpush1.msra.mxu0 0.0
      %4487 = vmatprep.subr.mxu0 0.0
      %4488 = vmatpush1.msra.mxu0 0.0
      %4489 = vmatprep.subr.mxu0 0.0
      %4490 = vmatpush1.msra.mxu0 0.0
      %4491 = vmatprep.subr.mxu0 0.0
      %4492 = vmatpush1.msra.mxu0 0.0
      %4493 = vmatprep.subr.mxu0 0.0
      %4494 = vmatpush1.msra.mxu0 0.0
      %4495 = vmatprep.subr.mxu0 0.0
      %4496 = vmatpush1.msra.mxu0 0.0
      %4497 = vmatprep.subr.mxu0 0.0
      %4498 = vmatpush1.msra.mxu0 0.0
      %4499 = vmatprep.subr.mxu0 0.0
      %4500 = vmatpush1.msra.mxu0 0.0
      %4501 = vmatprep.mubr.f32.mxu0 0.0
      %4502 = vmatmul.mubr.f32.gmra.mrb[0].mxu0 %v4432
      %v4503 = vpop.f32.mrb[0].mxu0
      %v4504 = vadd.f32 0.0, %v4503
      %v4505 = vpop.f32.mrb[0].mxu0
      %4506 = vdwg.mxu0
      %v4507 = vmul.f32 %v4504, %v2462
      %v4509 = vsel %vm584, %v4429, 0
      %4511 = vmatprep.subr.mxu0 0.0
      %4512 = vmatpush1.msra.mxu0 %v4435
      %4513 = vmatprep.subr.mxu0 0.0
      %4514 = vmatpush1.msra.mxu0 0.0
      %4515 = vmatprep.subr.mxu0 0.0
      %4516 = vmatpush1.msra.mxu0 0.0
      %4517 = vmatprep.subr.mxu0 0.0
      %4518 = vmatpush1.msra.mxu0 0.0
      %4519 = vmatprep.subr.mxu0 0.0
      %4520 = vmatpush1.msra.mxu0 0.0
      %4521 = vmatprep.subr.mxu0 0.0
      %4522 = vmatpush1.msra.mxu0 0.0
      %4523 = vmatprep.subr.mxu0 0.0
      %4524 = vmatpush1.msra.mxu0 0.0
      %4525 = vmatprep.subr.mxu0 0.0
      %4526 = vmatpush1.msra.mxu0 0.0
      %4527 = vmatprep.subr.mxu0 0.0
      %4528 = vmatpush1.msra.mxu0 0.0
      %4529 = vmatprep.subr.mxu0 0.0
      %4530 = vmatpush1.msra.mxu0 0.0
      %4531 = vmatprep.subr.mxu0 0.0
      %4532 = vmatpush1.msra.mxu0 0.0
      %4533 = vmatprep.subr.mxu0 0.0
      %4534 = vmatpush1.msra.mxu0 0.0
      %4535 = vmatprep.subr.mxu0 0.0
      %4536 = vmatpush1.msra.mxu0 0.0
      %4537 = vmatprep.subr.mxu0 0.0
      %4538 = vmatpush1.msra.mxu0 0.0
      %4539 = vmatprep.subr.mxu0 0.0
      %4540 = vmatpush1.msra.mxu0 0.0
      %4541 = vmatprep.subr.mxu0 0.0
      %4542 = vmatpush1.msra.mxu0 0.0
      %4543 = vmatprep.subr.mxu0 0.0
      %4544 = vmatpush1.msra.mxu0 0.0
      %4545 = vmatprep.subr.mxu0 0.0
      %4546 = vmatpush1.msra.mxu0 0.0
      %4547 = vmatprep.subr.mxu0 0.0
      %4548 = vmatpush1.msra.mxu0 0.0
      %4549 = vmatprep.subr.mxu0 0.0
      %4550 = vmatpush1.msra.mxu0 0.0
      %4551 = vmatprep.subr.mxu0 0.0
      %4552 = vmatpush1.msra.mxu0 0.0
      %4553 = vmatprep.subr.mxu0 0.0
      %4554 = vmatpush1.msra.mxu0 0.0
      %4555 = vmatprep.subr.mxu0 0.0
      %4556 = vmatpush1.msra.mxu0 0.0
      %4557 = vmatprep.subr.mxu0 0.0
      %4558 = vmatpush1.msra.mxu0 0.0
      %4559 = vmatprep.subr.mxu0 0.0
      %4560 = vmatpush1.msra.mxu0 0.0
      %4561 = vmatprep.subr.mxu0 0.0
      %4562 = vmatpush1.msra.mxu0 0.0
      %4563 = vmatprep.subr.mxu0 0.0
      %4564 = vmatpush1.msra.mxu0 0.0
      %4565 = vmatprep.subr.mxu0 0.0
      %4566 = vmatpush1.msra.mxu0 0.0
      %4567 = vmatprep.subr.mxu0 0.0
      %4568 = vmatpush1.msra.mxu0 0.0
      %4569 = vmatprep.subr.mxu0 0.0
      %4570 = vmatpush1.msra.mxu0 0.0
      %4571 = vmatprep.subr.mxu0 0.0
      %4572 = vmatpush1.msra.mxu0 0.0
      %4573 = vmatprep.subr.mxu0 0.0
      %4574 = vmatpush1.msra.mxu0 0.0
      %4575 = vmatprep.mubr.f32.mxu0 0.0
      %4576 = vmatmul.mubr.f32.gmra.mrb[0].mxu0 %v4509
      %v4577 = vpop.f32.mrb[0].mxu0
      %v4578 = vadd.f32 0.0, %v4577
      %v4579 = vpop.f32.mrb[0].mxu0
      %4580 = vdwg.mxu0
      %v4581 = vmul.f32 %v4578, %v2462
      %v4582 = vmul.f32 %v4507, %v4507
      %v4583 = vsub.f32 %v4581, %v4582
      %v4584 = vmax.f32 %v4583, 0.0
      %v4585 = vld [vmem:[%s11] sm:$0xf]
      %v4587 = vsel %vm584, %v4507, 0
      %v4590 = vsel %vm2048, %v4585, 0
      %4592 = vmatprep.subr.mxu0 0.0
      %4593 = vmatpush1.msra.mxu0 %v4590
      %4594 = vmatprep.subr.mxu0 0.0
      %4595 = vmatpush1.msra.mxu0 0.0
      %4596 = vmatprep.subr.mxu0 0.0
      %4597 = vmatpush1.msra.mxu0 0.0
      %4598 = vmatprep.subr.mxu0 0.0
      %4599 = vmatpush1.msra.mxu0 0.0
      %4600 = vmatprep.subr.mxu0 0.0
      %4601 = vmatpush1.msra.mxu0 0.0
      %4602 = vmatprep.subr.mxu0 0.0
      %4603 = vmatpush1.msra.mxu0 0.0
      %4604 = vmatprep.subr.mxu0 0.0
      %4605 = vmatpush1.msra.mxu0 0.0
      %4606 = vmatprep.subr.mxu0 0.0
      %4607 = vmatpush1.msra.mxu0 0.0
      %4608 = vmatprep.subr.mxu0 0.0
      %4609 = vmatpush1.msra.mxu0 0.0
      %4610 = vmatprep.subr.mxu0 0.0
      %4611 = vmatpush1.msra.mxu0 0.0
      %4612 = vmatprep.subr.mxu0 0.0
      %4613 = vmatpush1.msra.mxu0 0.0
      %4614 = vmatprep.subr.mxu0 0.0
      %4615 = vmatpush1.msra.mxu0 0.0
      %4616 = vmatprep.subr.mxu0 0.0
      %4617 = vmatpush1.msra.mxu0 0.0
      %4618 = vmatprep.subr.mxu0 0.0
      %4619 = vmatpush1.msra.mxu0 0.0
      %4620 = vmatprep.subr.mxu0 0.0
      %4621 = vmatpush1.msra.mxu0 0.0
      %4622 = vmatprep.subr.mxu0 0.0
      %4623 = vmatpush1.msra.mxu0 0.0
      %4624 = vmatprep.subr.mxu0 0.0
      %4625 = vmatpush1.msra.mxu0 0.0
      %4626 = vmatprep.subr.mxu0 0.0
      %4627 = vmatpush1.msra.mxu0 0.0
      %4628 = vmatprep.subr.mxu0 0.0
      %4629 = vmatpush1.msra.mxu0 0.0
      %4630 = vmatprep.subr.mxu0 0.0
      %4631 = vmatpush1.msra.mxu0 0.0
      %4632 = vmatprep.subr.mxu0 0.0
      %4633 = vmatpush1.msra.mxu0 0.0
      %4634 = vmatprep.subr.mxu0 0.0
      %4635 = vmatpush1.msra.mxu0 0.0
      %4636 = vmatprep.subr.mxu0 0.0
      %4637 = vmatpush1.msra.mxu0 0.0
      %4638 = vmatprep.subr.mxu0 0.0
      %4639 = vmatpush1.msra.mxu0 0.0
      %4640 = vmatprep.subr.mxu0 0.0
      %4641 = vmatpush1.msra.mxu0 0.0
      %4642 = vmatprep.subr.mxu0 0.0
      %4643 = vmatpush1.msra.mxu0 0.0
      %4644 = vmatprep.subr.mxu0 0.0
      %4645 = vmatpush1.msra.mxu0 0.0
      %4646 = vmatprep.subr.mxu0 0.0
      %4647 = vmatpush1.msra.mxu0 0.0
      %4648 = vmatprep.subr.mxu0 0.0
      %4649 = vmatpush1.msra.mxu0 0.0
      %4650 = vmatprep.subr.mxu0 0.0
      %4651 = vmatpush1.msra.mxu0 0.0
      %4652 = vmatprep.subr.mxu0 0.0
      %4653 = vmatpush1.msra.mxu0 0.0
      %4654 = vmatprep.subr.mxu0 0.0
      %4655 = vmatpush1.msra.mxu0 0.0
      %4656 = vmatprep.mubr.f32.mxu0 0.0
      %4657 = vmatmul.mubr.f32.gmra.mrb[0].mxu0 %v4587
      %v4658 = vpop.f32.mrb[0].mxu0
      %v4659 = vadd.f32 0.0, %v4658
      %v4660 = vpop.f32.mrb[0].mxu0
      %4661 = vdwg.mxu0
      %v4662 = vlaneseq
      %v4663 = vshrl.u32 %v4662, 7
      %v4664 = vsub.s32 0, %v4663
      %v4665 = vrot.slane %v4659, %v4664
      %v4666 = vsub.f32 %v4132, %v4665
      %v4667 = vsub.f32 %v4135, %v4665
      %v4668 = vsub.f32 %v4140, %v4665
      %v4669 = vsub.f32 %v4143, %v4665
      %v4670 = vsub.f32 %v4148, %v4665
      %v4671 = vsub.f32 %v4151, %v4665
      %v4672 = vsub.f32 %v4156, %v4665
      %v4673 = vsub.f32 %v4159, %v4665
      %v4674 = vsub.f32 %v4164, %v4665
      %v4675 = vsub.f32 %v4167, %v4665
      %v4676 = vsub.f32 %v4172, %v4665
      %v4677 = vsub.f32 %v4175, %v4665
      %v4678 = vsub.f32 %v4180, %v4665
      %v4679 = vsub.f32 %v4183, %v4665
      %v4680 = vsub.f32 %v4188, %v4665
      %v4681 = vsub.f32 %v4191, %v4665
      %v4682 = vsub.f32 %v4196, %v4665
      %v4683 = vsub.f32 %v4199, %v4665
      %v4684 = vsub.f32 %v4204, %v4665
      %v4685 = vsub.f32 %v4207, %v4665
      %v4686 = vsub.f32 %v4212, %v4665
      %v4687 = vsub.f32 %v4215, %v4665
      %v4688 = vsub.f32 %v4220, %v4665
      %v4689 = vsub.f32 %v4223, %v4665
      %v4690 = vsub.f32 %v4228, %v4665
      %v4691 = vsub.f32 %v4231, %v4665
      %v4692 = vsub.f32 %v4236, %v4665
      %v4693 = vsub.f32 %v4239, %v4665
      %v4694 = vsub.f32 %v4244, %v4665
      %v4695 = vsub.f32 %v4247, %v4665
      %v4696 = vsub.f32 %v4252, %v4665
      %v4697 = vsub.f32 %v4255, %v4665
      %v4699 = vsel %vm584, %v4584, 0
      %4701 = vmatprep.subr.mxu0 0.0
      %4702 = vmatpush1.msra.mxu0 %v4590
      %4703 = vmatprep.subr.mxu0 0.0
      %4704 = vmatpush1.msra.mxu0 0.0
      %4705 = vmatprep.subr.mxu0 0.0
      %4706 = vmatpush1.msra.mxu0 0.0
      %4707 = vmatprep.subr.mxu0 0.0
      %4708 = vmatpush1.msra.mxu0 0.0
      %4709 = vmatprep.subr.mxu0 0.0
      %4710 = vmatpush1.msra.mxu0 0.0
      %4711 = vmatprep.subr.mxu0 0.0
      %4712 = vmatpush1.msra.mxu0 0.0
      %4713 = vmatprep.subr.mxu0 0.0
      %4714 = vmatpush1.msra.mxu0 0.0
      %4715 = vmatprep.subr.mxu0 0.0
      %4716 = vmatpush1.msra.mxu0 0.0
      %4717 = vmatprep.subr.mxu0 0.0
      %4718 = vmatpush1.msra.mxu0 0.0
      %4719 = vmatprep.subr.mxu0 0.0
      %4720 = vmatpush1.msra.mxu0 0.0
      %4721 = vmatprep.subr.mxu0 0.0
      %4722 = vmatpush1.msra.mxu0 0.0
      %4723 = vmatprep.subr.mxu0 0.0
      %4724 = vmatpush1.msra.mxu0 0.0
      %4725 = vmatprep.subr.mxu0 0.0
      %4726 = vmatpush1.msra.mxu0 0.0
      %4727 = vmatprep.subr.mxu0 0.0
      %4728 = vmatpush1.msra.mxu0 0.0
      %4729 = vmatprep.subr.mxu0 0.0
      %4730 = vmatpush1.msra.mxu0 0.0
      %4731 = vmatprep.subr.mxu0 0.0
      %4732 = vmatpush1.msra.mxu0 0.0
      %4733 = vmatprep.subr.mxu0 0.0
      %4734 = vmatpush1.msra.mxu0 0.0
      %4735 = vmatprep.subr.mxu0 0.0
      %4736 = vmatpush1.msra.mxu0 0.0
      %4737 = vmatprep.subr.mxu0 0.0
      %4738 = vmatpush1.msra.mxu0 0.0
      %4739 = vmatprep.subr.mxu0 0.0
      %4740 = vmatpush1.msra.mxu0 0.0
      %4741 = vmatprep.subr.mxu0 0.0
      %4742 = vmatpush1.msra.mxu0 0.0
      %4743 = vmatprep.subr.mxu0 0.0
      %4744 = vmatpush1.msra.mxu0 0.0
      %4745 = vmatprep.subr.mxu0 0.0
      %4746 = vmatpush1.msra.mxu0 0.0
      %4747 = vmatprep.subr.mxu0 0.0
      %4748 = vmatpush1.msra.mxu0 0.0
      %4749 = vmatprep.subr.mxu0 0.0
      %4750 = vmatpush1.msra.mxu0 0.0
      %4751 = vmatprep.subr.mxu0 0.0
      %4752 = vmatpush1.msra.mxu0 0.0
      %4753 = vmatprep.subr.mxu0 0.0
      %4754 = vmatpush1.msra.mxu0 0.0
      %4755 = vmatprep.subr.mxu0 0.0
      %4756 = vmatpush1.msra.mxu0 0.0
      %4757 = vmatprep.subr.mxu0 0.0
      %4758 = vmatpush1.msra.mxu0 0.0
      %4759 = vmatprep.subr.mxu0 0.0
      %4760 = vmatpush1.msra.mxu0 0.0
      %4761 = vmatprep.subr.mxu0 0.0
      %4762 = vmatpush1.msra.mxu0 0.0
      %4763 = vmatprep.subr.mxu0 0.0
      %4764 = vmatpush1.msra.mxu0 0.0
      %4765 = vmatprep.mubr.f32.mxu0 0.0
      %4766 = vmatmul.mubr.f32.gmra.mrb[0].mxu0 %v4699
      %v4767 = vpop.f32.mrb[0].mxu0
      %v4768 = vadd.f32 1e-05, %v4767
      %v4769 = vpop.f32.mrb[0].mxu0
      %4770 = vdwg.mxu0
      %v4771 = vrsqrt.pop %v4768
      %v4772 = vlaneseq
      %v4773 = vshrl.u32 %v4772, 7
      %v4774 = vsub.s32 0, %v4773
      %v4775 = vrot.slane %v4771, %v4774
      %v4776 = vmul.f32 %v4666, %v4775
      %v4777 = vmul.f32 %v4667, %v4775
      %v4778 = vmul.f32 %v4668, %v4775
      %v4779 = vmul.f32 %v4669, %v4775
      %v4780 = vmul.f32 %v4670, %v4775
      %v4781 = vmul.f32 %v4671, %v4775
      %v4782 = vmul.f32 %v4672, %v4775
      %v4783 = vmul.f32 %v4673, %v4775
      %v4784 = vmul.f32 %v4674, %v4775
      %v4785 = vmul.f32 %v4675, %v4775
      %v4786 = vmul.f32 %v4676, %v4775
      %v4787 = vmul.f32 %v4677, %v4775
      %v4788 = vmul.f32 %v4678, %v4775
      %v4789 = vmul.f32 %v4679, %v4775
      %v4790 = vmul.f32 %v4680, %v4775
      %v4791 = vmul.f32 %v4681, %v4775
      %v4792 = vmul.f32 %v4682, %v4775
      %v4793 = vmul.f32 %v4683, %v4775
      %v4794 = vmul.f32 %v4684, %v4775
      %v4795 = vmul.f32 %v4685, %v4775
      %v4796 = vmul.f32 %v4686, %v4775
      %v4797 = vmul.f32 %v4687, %v4775
      %v4798 = vmul.f32 %v4688, %v4775
      %v4799 = vmul.f32 %v4689, %v4775
      %v4800 = vmul.f32 %v4690, %v4775
      %v4801 = vmul.f32 %v4691, %v4775
      %v4802 = vmul.f32 %v4692, %v4775
      %v4803 = vmul.f32 %v4693, %v4775
      %v4804 = vmul.f32 %v4694, %v4775
      %v4805 = vmul.f32 %v4695, %v4775
      %v4806 = vmul.f32 %v4696, %v4775
      %v4807 = vmul.f32 %v4697, %v4775
      %v4809 = vlaneseq
      %v4810 = vshrl.u32 %v4809, 7
      %v4811 = vsub.s32 0, %v4810
      %v4812 = vrot.slane %v4258, %v4811
      %v4814 = vmul.f32 %v4776, %v4812
      %v4815 = vmul.f32 %v4777, %v4812
      %v4816 = vmul.f32 %v4778, %v4812
      %v4817 = vmul.f32 %v4779, %v4812
      %v4818 = vmul.f32 %v4780, %v4812
      %v4819 = vmul.f32 %v4781, %v4812
      %v4820 = vmul.f32 %v4782, %v4812
      %v4821 = vmul.f32 %v4783, %v4812
      %v4822 = vmul.f32 %v4784, %v4812
      %v4823 = vmul.f32 %v4785, %v4812
      %v4824 = vmul.f32 %v4786, %v4812
      %v4825 = vmul.f32 %v4787, %v4812
      %v4826 = vmul.f32 %v4788, %v4812
      %v4827 = vmul.f32 %v4789, %v4812
      %v4828 = vmul.f32 %v4790, %v4812
      %v4829 = vmul.f32 %v4791, %v4812
      %v4830 = vmul.f32 %v4792, %v4812
      %v4831 = vmul.f32 %v4793, %v4812
      %v4832 = vmul.f32 %v4794, %v4812
      %v4833 = vmul.f32 %v4795, %v4812
      %v4834 = vmul.f32 %v4796, %v4812
      %v4835 = vmul.f32 %v4797, %v4812
      %v4836 = vmul.f32 %v4798, %v4812
      %v4837 = vmul.f32 %v4799, %v4812
      %v4838 = vmul.f32 %v4800, %v4812
      %v4839 = vmul.f32 %v4801, %v4812
      %v4840 = vmul.f32 %v4802, %v4812
      %v4841 = vmul.f32 %v4803, %v4812
      %v4842 = vmul.f32 %v4804, %v4812
      %v4843 = vmul.f32 %v4805, %v4812
      %v4844 = vmul.f32 %v4806, %v4812
      %v4845 = vmul.f32 %v4807, %v4812
      %v4847 = vlaneseq
      %v4848 = vshrl.u32 %v4847, 7
      %v4849 = vsub.s32 0, %v4848
      %v4850 = vrot.slane %v4259, %v4849
      %v4852 = vadd.f32 %v4814, %v4850
      %v4853 = vadd.f32 %v4815, %v4850
      %v4854 = vadd.f32 %v4816, %v4850
      %v4855 = vadd.f32 %v4817, %v4850
      %v4856 = vadd.f32 %v4818, %v4850
      %v4857 = vadd.f32 %v4819, %v4850
      %v4858 = vadd.f32 %v4820, %v4850
      %v4859 = vadd.f32 %v4821, %v4850
      %v4860 = vadd.f32 %v4822, %v4850
      %v4861 = vadd.f32 %v4823, %v4850
      %v4862 = vadd.f32 %v4824, %v4850
      %v4863 = vadd.f32 %v4825, %v4850
      %v4864 = vadd.f32 %v4826, %v4850
      %v4865 = vadd.f32 %v4827, %v4850
      %v4866 = vadd.f32 %v4828, %v4850
      %v4867 = vadd.f32 %v4829, %v4850
      %v4868 = vadd.f32 %v4830, %v4850
      %v4869 = vadd.f32 %v4831, %v4850
      %v4870 = vadd.f32 %v4832, %v4850
      %v4871 = vadd.f32 %v4833, %v4850
      %v4872 = vadd.f32 %v4834, %v4850
      %v4873 = vadd.f32 %v4835, %v4850
      %v4874 = vadd.f32 %v4836, %v4850
      %v4875 = vadd.f32 %v4837, %v4850
      %v4876 = vadd.f32 %v4838, %v4850
      %v4877 = vadd.f32 %v4839, %v4850
      %v4878 = vadd.f32 %v4840, %v4850
      %v4879 = vadd.f32 %v4841, %v4850
      %v4880 = vadd.f32 %v4842, %v4850
      %v4881 = vadd.f32 %v4843, %v4850
      %v4882 = vadd.f32 %v4844, %v4850
      %v4883 = vadd.f32 %v4845, %v4850
      %v4884 = vmax.f32 %v4852, 0.0
      %v4885 = vmax.f32 %v4853, 0.0
      %v4886 = vmax.f32 %v4854, 0.0
      %v4887 = vmax.f32 %v4855, 0.0
      %v4888 = vmax.f32 %v4856, 0.0
      %v4889 = vmax.f32 %v4857, 0.0
      %v4890 = vmax.f32 %v4858, 0.0
      %v4891 = vmax.f32 %v4859, 0.0
      %v4892 = vmax.f32 %v4860, 0.0
      %v4893 = vmax.f32 %v4861, 0.0
      %v4894 = vmax.f32 %v4862, 0.0
      %v4895 = vmax.f32 %v4863, 0.0
      %v4896 = vmax.f32 %v4864, 0.0
      %v4897 = vmax.f32 %v4865, 0.0
      %v4898 = vmax.f32 %v4866, 0.0
      %v4899 = vmax.f32 %v4867, 0.0
      %v4900 = vmax.f32 %v4868, 0.0
      %v4901 = vmax.f32 %v4869, 0.0
      %v4902 = vmax.f32 %v4870, 0.0
      %v4903 = vmax.f32 %v4871, 0.0
      %v4904 = vmax.f32 %v4872, 0.0
      %v4905 = vmax.f32 %v4873, 0.0
      %v4906 = vmax.f32 %v4874, 0.0
      %v4907 = vmax.f32 %v4875, 0.0
      %v4908 = vmax.f32 %v4876, 0.0
      %v4909 = vmax.f32 %v4877, 0.0
      %v4910 = vmax.f32 %v4878, 0.0
      %v4911 = vmax.f32 %v4879, 0.0
      %v4912 = vmax.f32 %v4880, 0.0
      %v4913 = vmax.f32 %v4881, 0.0
      %v4914 = vmax.f32 %v4882, 0.0
      %v4915 = vmax.f32 %v4883, 0.0
      %4916 = vst.msk [vmem:[%s433] sm:$0xff] %vm584, %v4884
      %4917 = vst.msk [vmem:[%s433 + $0x8] sm:$0xff] %vm584, %v4885
      %4918 = vst.msk [vmem:[%s433 + $0x10] sm:$0xff] %vm584, %v4886
      %4919 = vst.msk [vmem:[%s433 + $0x18] sm:$0xff] %vm584, %v4887
      %4920 = vst.msk [vmem:[%s433 + $0x20] sm:$0xff] %vm584, %v4888
      %4921 = vst.msk [vmem:[%s433 + $0x28] sm:$0xff] %vm584, %v4889
      %4922 = vst.msk [vmem:[%s433 + $0x30] sm:$0xff] %vm584, %v4890
      %4923 = vst.msk [vmem:[%s433 + $0x38] sm:$0xff] %vm584, %v4891
      %4924 = vst.msk [vmem:[%s433 + $0x40] sm:$0xff] %vm584, %v4892
      %4925 = vst.msk [vmem:[%s433 + $0x48] sm:$0xff] %vm584, %v4893
      %4926 = vst.msk [vmem:[%s433 + $0x50] sm:$0xff] %vm584, %v4894
      %4927 = vst.msk [vmem:[%s433 + $0x58] sm:$0xff] %vm584, %v4895
      %4928 = vst.msk [vmem:[%s433 + $0x60] sm:$0xff] %vm584, %v4896
      %4929 = vst.msk [vmem:[%s433 + $0x68] sm:$0xff] %vm584, %v4897
      %4930 = vst.msk [vmem:[%s433 + $0x70] sm:$0xff] %vm584, %v4898
      %4931 = vst.msk [vmem:[%s433 + $0x78] sm:$0xff] %vm584, %v4899
      %4932 = vst.msk [vmem:[%s433 + $0x80] sm:$0xff] %vm584, %v4900
      %4933 = vst.msk [vmem:[%s433 + $0x88] sm:$0xff] %vm584, %v4901
      %4934 = vst.msk [vmem:[%s433 + $0x90] sm:$0xff] %vm584, %v4902
      %4935 = vst.msk [vmem:[%s433 + $0x98] sm:$0xff] %vm584, %v4903
      %4936 = vst.msk [vmem:[%s433 + $0xa0] sm:$0xff] %vm584, %v4904
      %4937 = vst.msk [vmem:[%s433 + $0xa8] sm:$0xff] %vm584, %v4905
      %4938 = vst.msk [vmem:[%s433 + $0xb0] sm:$0xff] %vm584, %v4906
      %4939 = vst.msk [vmem:[%s433 + $0xb8] sm:$0xff] %vm584, %v4907
      %4940 = vst.msk [vmem:[%s433 + $0xc0] sm:$0xff] %vm584, %v4908
      %4941 = vst.msk [vmem:[%s433 + $0xc8] sm:$0xff] %vm584, %v4909
      %4942 = vst.msk [vmem:[%s433 + $0xd0] sm:$0xff] %vm584, %v4910
      %4943 = vst.msk [vmem:[%s433 + $0xd8] sm:$0xff] %vm584, %v4911
      %4944 = vst.msk [vmem:[%s433 + $0xe0] sm:$0xff] %vm584, %v4912
      %4945 = vst.msk [vmem:[%s433 + $0xe8] sm:$0xff] %vm584, %v4913
      %4946 = vst.msk [vmem:[%s433 + $0xf0] sm:$0xff] %vm584, %v4914
      %4947 = vst.msk [vmem:[%s433 + $0xf8] sm:$0xff] %vm584, %v4915
      %p4948 = scmp.lt.s32.totalorder %s23, 1
      %s4949 = scalar_select %p4948, %s23, 1
      %s4950 = smul.addr %s4949, 32
      %s4951 = smul.addr %s4950, 8
      %s4952 = scalar_lea.vmem %s12, %s4951
      // Predicated region
      $region73: #{_lambda_.3} parent=67 // pred_check
        %p4953 = pneg %p303
      $region74: #{_lambda_.3} parent=67 // pred_check_branch
        %4955 = sbr.rel (%p4953) target = $region76
      $region75: #{_lambda_.3} parent=67 // pred_region
        _
      $region76: #{_lambda_.3} parent=67 // pred_fallthru
        _
    $region68: #{_lambda_.3} parent=5 // pred_fallthru
      _
    %p4956 = scmp.le.s32.totalorder 2, %s18
    // Predicated region
    $region77: #{_lambda_.3} parent=5 // pred_check
      %p4957 = pneg %p4956
    $region78: #{_lambda_.3} parent=5 // pred_check_branch
      %4959 = sbr.rel (%p4957) target = $region80
    $region79: #{_lambda_.3} parent=5 // pred_region
      %s4960 = ssub.s32 %s18, 2
      // Predicated region
      $region81: #{_lambda_.3} parent=79 // pred_check
        %p4961 = pneg %p309
      $region82: #{_lambda_.3} parent=79 // pred_check_branch
        %4963 = sbr.rel (%p4961) target = $region84
      $region83: #{_lambda_.3} parent=79 // pred_region
        %p4964 = scmp.lt.s32.totalorder %s24, 1
        %s4965 = scalar_select %p4964, %s24, 1
        %s4966 = smul.addr %s4965, 32
        %s4967 = smul.addr %s4966, 8
        %s4968 = scalar_lea.vmem %s12, %s4967
      $region84: #{_lambda_.3} parent=79 // pred_fallthru
        _
    $region80: #{_lambda_.3} parent=5 // pred_fallthru
      _
  $region6: #{_lambda_.3} parent=0 // loop_footer
    %s22 = sadd.s32 1, %s18
  $region7: #{_lambda_.3} parent=0 // loop_footer_branch
    %17 = sbr.rel target = $region3
  $region8: #{_lambda_.3} parent=0 // loop_exit
    _

</llo_original>
